<compile_context>
chip_gen: v6e
topology: v6e:2x2x1
jax: 0.10.0
libtpu: 0.0.40
codegen_flags: <defaults>
</compile_context>

<pallas_src>
import jax
import jax.numpy as jnp
from jax.experimental import pallas as pl
from jax.experimental.pallas import tpu as pltpu

EPS = 1e-5
LANE = 128


def _round_up(x, m):
    return (x + m - 1) // m * m


def _compiler_params():
    # 32 MiB is safe on v5e/v6e/v7x; raise toward 64-96 MiB on v5e/v6e if you
    # deliberately choose larger per-step tiles.
    return pltpu.CompilerParams(
        dimension_semantics=("parallel",),
        vmem_limit_bytes=32 * 1024 * 1024,
    )


def _im2col(src, H, W, C):
    """src: (1, H+2, W+2, C) Ref or array -> (H*W, 9*C), tap-major (ky, kx, c)."""
    cols = [src[:, ky:ky + H, kx:kx + W, :] for ky in range(3) for kx in range(3)]
    patch = jnp.concatenate(cols, axis=-1)          # (1, H, W, 9*C)
    return patch.reshape(H * W, 9 * C)


# ------------------------- kernels -------------------------

def conv_stats_kernel(xp_ref, w_ref, raw_ref, stats_ref):
    """3x3 conv (stride 1, pre-padded input) for one image + BN partial stats."""
    _, Hp, Wp, Cin = xp_ref.shape
    H, W = Hp - 2, Wp - 2
    Cp = w_ref.shape[1]
    patch = _im2col(xp_ref, H, W, Cin).astype(jnp.bfloat16)          # (M, 9*Cin)
    acc = jnp.dot(patch, w_ref[...], preferred_element_type=jnp.float32)  # (M, Cp) f32
    raw_ref[...] = acc.reshape(1, H, W, Cp).astype(raw_ref.dtype)
    s1 = jnp.sum(acc, axis=0, keepdims=True)                         # (1, Cp)
    s2 = jnp.sum(acc * acc, axis=0, keepdims=True)                   # (1, Cp)
    stats_ref[...] = jnp.concatenate([s1, s2], axis=0).reshape(1, 2, Cp)


def bn_relu_conv_stats_kernel(raw1_ref, scale_ref, bias_ref, w_ref, raw2_ref, stats_ref):
    """Fused bn1-normalize + ReLU + in-VMEM halo pad + conv2 + BN2 partial stats."""
    _, H, W, Cp = raw1_ref.shape
    Cin2 = w_ref.shape[0] // 9
    scale = scale_ref[...].reshape(1, 1, 1, Cp)
    bias = bias_ref[...].reshape(1, 1, 1, Cp)
    y1 = raw1_ref[...].astype(jnp.float32) * scale + bias            # (1, H, W, Cp)
    y1 = jnp.maximum(y1, 0.0)[:, :, :, :Cin2]                        # (1, H, W, Cout)
    y1p = jnp.pad(y1, ((0, 0), (1, 1), (1, 1), (0, 0)))              # halo pad in VMEM
    patch = _im2col(y1p, H, W, Cin2).astype(jnp.bfloat16)            # (M, 9*Cout)
    acc = jnp.dot(patch, w_ref[...], preferred_element_type=jnp.float32)
    raw2_ref[...] = acc.reshape(1, H, W, Cp).astype(raw2_ref.dtype)
    s1 = jnp.sum(acc, axis=0, keepdims=True)
    s2 = jnp.sum(acc * acc, axis=0, keepdims=True)
    stats_ref[...] = jnp.concatenate([s1, s2], axis=0).reshape(1, 2, Cp)


def bn_add_relu_kernel(raw_ref, scale_ref, bias_ref, id_ref, o_ref):
    """bn2-normalize + identity residual + ReLU."""
    _, H, W, Cp = raw_ref.shape
    Cout = o_ref.shape[3]
    scale = scale_ref[...].reshape(1, 1, 1, Cp)
    bias = bias_ref[...].reshape(1, 1, 1, Cp)
    y = raw_ref[...].astype(jnp.float32) * scale + bias
    y = y[:, :, :, :Cout] + id_ref[...].astype(jnp.float32)
    o_ref[...] = jnp.maximum(y, 0.0).astype(o_ref.dtype)


# ------------------------- pallas_call wrappers -------------------------

def _conv_stats_call(xp, w, N, H, W, Cp):
    _, Hp, Wp, Cin = xp.shape
    return pl.pallas_call(
        conv_stats_kernel,
        grid=(N,),
        in_specs=[
            pl.BlockSpec((1, Hp, Wp, Cin), lambda n: (n, 0, 0, 0)),
            pl.BlockSpec((9 * Cin, Cp), lambda n: (0, 0)),
        ],
        out_specs=(
            pl.BlockSpec((1, H, W, Cp), lambda n: (n, 0, 0, 0)),
            pl.BlockSpec((1, 2, Cp), lambda n: (n, 0, 0)),
        ),
        out_shape=(
            jax.ShapeDtypeStruct((N, H, W, Cp), jnp.bfloat16),
            jax.ShapeDtypeStruct((N, 2, Cp), jnp.float32),
        ),
        compiler_params=_compiler_params(),
    )(xp, w)


def _bn_relu_conv_stats_call(raw1, scale1, bias1, w2, N, H, W, Cp):
    Cin2 = w2.shape[0] // 9
    return pl.pallas_call(
        bn_relu_conv_stats_kernel,
        grid=(N,),
        in_specs=[
            pl.BlockSpec((1, H, W, Cp), lambda n: (n, 0, 0, 0)),
            pl.BlockSpec((1, Cp), lambda n: (0, 0)),
            pl.BlockSpec((1, Cp), lambda n: (0, 0)),
            pl.BlockSpec((9 * Cin2, Cp), lambda n: (0, 0)),
        ],
        out_specs=(
            pl.BlockSpec((1, H, W, Cp), lambda n: (n, 0, 0, 0)),
            pl.BlockSpec((1, 2, Cp), lambda n: (n, 0, 0)),
        ),
        out_shape=(
            jax.ShapeDtypeStruct((N, H, W, Cp), jnp.bfloat16),
            jax.ShapeDtypeStruct((N, 2, Cp), jnp.float32),
        ),
        compiler_params=_compiler_params(),
    )(raw1, scale1, bias1, w2)


def _bn_add_relu_call(raw2, scale2, bias2, identity, N, H, W, Cp, Cout):
    return pl.pallas_call(
        bn_add_relu_kernel,
        grid=(N,),
        in_specs=[
            pl.BlockSpec((1, H, W, Cp), lambda n: (n, 0, 0, 0)),
            pl.BlockSpec((1, Cp), lambda n: (0, 0)),
            pl.BlockSpec((1, Cp), lambda n: (0, 0)),
            pl.BlockSpec((1, H, W, Cout), lambda n: (n, 0, 0, 0)),
        ],
        out_specs=pl.BlockSpec((1, H, W, Cout), lambda n: (n, 0, 0, 0)),
        out_shape=jax.ShapeDtypeStruct((N, H, W, Cout), jnp.float32),
        compiler_params=_compiler_params(),
    )(raw2, scale2, bias2, identity)


# ------------------------- BN stats finalize (tiny XLA op) -------------------------

def _bn_scale_bias(stats, gamma, beta, m_total, Cp):
    """Fold batch mean/var + gamma/beta into per-channel scale & bias."""
    c = gamma.shape[0]
    gamma_p = jnp.zeros((Cp,), jnp.float32).at[:c].set(gamma.astype(jnp.float32))
    beta_p = jnp.zeros((Cp,), jnp.float32).at[:c].set(beta.astype(jnp.float32))
    s1 = jnp.sum(stats[:, 0, :], axis=0)                 # (Cp,)
    s2 = jnp.sum(stats[:, 1, :], axis=0)                 # (Cp,)
    mean = s1 / m_total
    var = jnp.maximum(s2 / m_total - mean * mean, 0.0)   # biased variance; clamp cancellation
    scale = gamma_p * jax.lax.rsqrt(var + EPS)
    bias = beta_p - mean * scale
    return scale.reshape(1, Cp), bias.reshape(1, Cp)


# ------------------------- forward -------------------------

def basic_block_forward(x_nchw, params):
    """BasicBlock forward. x_nchw: (N, C, H, W) float32 (PyTorch convention)."""
    x = jnp.transpose(x_nchw, (0, 2, 3, 1)).astype(jnp.float32)      # NHWC
    N, H, W, Cin = x.shape
    w1, w2 = params["w1"], params["w2"]                              # (Cout, Cin, 3, 3)
    Cout = w1.shape[0]
    Cp = _round_up(Cout, LANE)
    m_total = N * H * W

    # Repack conv weights tap-major (ky, kx, cin) x cout, zero-pad cout -> Cp, bf16.
    def repack(w, cin):
        wm = jnp.transpose(w, (2, 3, 1, 0)).reshape(9 * cin, Cout)
        wm = jnp.pad(wm, ((0, 0), (0, Cp - Cout)))
        return wm.astype(jnp.bfloat16)

    w1m = repack(w1, Cin)
    w2m = repack(w2, Cout)

    # conv1 + BN1 partial stats (one image per grid step, single fat bf16 matmul).
    xp = jnp.pad(x, ((0, 0), (1, 1), (1, 1), (0, 0)))
    raw1, stats1 = _conv_stats_call(xp, w1m, N, H, W, Cp)
    scale1, bias1 = _bn_scale_bias(stats1, params["gamma1"], params["beta1"], m_total, Cp)

    # bn1-normalize + relu fused into conv2 (+ BN2 partial stats) — no y1 HBM round trip.
    raw2, stats2 = _bn_relu_conv_stats_call(raw1, scale1, bias1, w2m, N, H, W, Cp)
    scale2, bias2 = _bn_scale_bias(stats2, params["gamma2"], params["beta2"], m_total, Cp)

    # bn2-normalize + identity residual + relu.
    out = _bn_add_relu_call(raw2, scale2, bias2, x, N, H, W, Cp, Cout)

    return jnp.transpose(out, (0, 3, 1, 2))


# ---------- pure-JAX reference (for correctness check) ----------
def _ref_forward(x_nchw, params):
    def conv(x, w):
        return jax.lax.conv_general_dilated(
            x, w, window_strides=(1, 1), padding=((1, 1), (1, 1)),
            dimension_numbers=("NCHW", "OIHW", "NCHW"))

    def bn(x, g, b):
        mean = jnp.mean(x, axis=(0, 2, 3), keepdims=True)
        var = jnp.mean((x - mean) ** 2, axis=(0, 2, 3), keepdims=True)
        xn = (x - mean) * jax.lax.rsqrt(var + EPS)
        return xn * g.reshape(1, -1, 1, 1) + b.reshape(1, -1, 1, 1)

    out = jnp.maximum(bn(conv(x_nchw, params["w1"]),
                         params["gamma1"], params["beta1"]), 0.0)
    out = bn(conv(out, params["w2"]), params["gamma2"], params["beta2"]) + x_nchw
    return jnp.maximum(out, 0.0)


if __name__ == "__main__":
    key = jax.random.PRNGKey(0)
    k_x, k_w1, k_w2, k_g1, k_b1, k_g2, k_b2 = jax.random.split(key, 7)

    N, C, H, W = 2, 8, 16, 16          # in_channel == out_channel, stride=1
    x = jax.random.normal(k_x, (N, C, H, W), jnp.float32)

    params = {
        "w1": 0.1 * jax.random.normal(k_w1, (C, C, 3, 3), jnp.float32),
        "w2": 0.1 * jax.random.normal(k_w2, (C, C, 3, 3), jnp.float32),
        "gamma1": 1.0 + 0.1 * jax.random.normal(k_g1, (C,), jnp.float32),
        "beta1": 0.1 * jax.random.normal(k_b1, (C,), jnp.float32),
        "gamma2": 1.0 + 0.1 * jax.random.normal(k_g2, (C,), jnp.float32),
        "beta2": 0.1 * jax.random.normal(k_b2, (C,), jnp.float32),
    }

    out = jax.jit(basic_block_forward)(x, params)
    out = jax.block_until_ready(out)

    ref = jax.block_until_ready(_ref_forward(x, params))
    assert out.shape == (N, C, H, W)
    assert jnp.allclose(out, ref, atol=5e-2, rtol=5e-2), "mismatch vs JAX reference"

    print("KERNEL_OK")
</pallas_src>

<mosaic_0001>
module attributes {stable_mosaic.version = 11 : i64} {
  func.func @bn_relu_conv_stats_kernel(%arg0: i32, %arg1: memref<1x16x16x128xbf16, #tpu.memory_space<vmem>>, %arg2: memref<1x128xf32, #tpu.memory_space<vmem>>, %arg3: memref<1x128xf32, #tpu.memory_space<vmem>>, %arg4: memref<72x128xbf16, #tpu.memory_space<vmem>>, %arg5: memref<1x16x16x128xbf16, #tpu.memory_space<vmem>>, %arg6: memref<1x2x128xf32, #tpu.memory_space<vmem>>) attributes {dimension_semantics = [#tpu.dimension_semantics<parallel>], iteration_bounds = array<i64: 2>, scalar_prefetch = 0 : i64, scratch_operands = 0 : i64, tpu.core_type = #tpu.core_type<tc>, window_params = [{transform_indices = @transform_0, window_bounds = array<i64: 1, 16, 16, 128>}, {pipeline_mode = #tpu.pipeline_mode<synchronous>, transform_indices = @transform_1, window_bounds = array<i64: 1, 128>}, {pipeline_mode = #tpu.pipeline_mode<synchronous>, transform_indices = @transform_2, window_bounds = array<i64: 1, 128>}, {pipeline_mode = #tpu.pipeline_mode<synchronous>, transform_indices = @transform_3, window_bounds = array<i64: 72, 128>}, {transform_indices = @transform_4, window_bounds = array<i64: 1, 16, 16, 128>}, {transform_indices = @transform_5, window_bounds = array<i64: 1, 2, 128>}]} {
    %c0 = arith.constant 0 : index
    %c0_0 = arith.constant 0 : index
    %0 = vector.load %arg2[%c0, %c0_0] : memref<1x128xf32, #tpu.memory_space<vmem>>, vector<1x128xf32>
    %1 = vector.shape_cast %0 : vector<1x128xf32> to vector<1x1x1x128xf32>
    %c0_1 = arith.constant 0 : index
    %c0_2 = arith.constant 0 : index
    %2 = vector.load %arg3[%c0_1, %c0_2] : memref<1x128xf32, #tpu.memory_space<vmem>>, vector<1x128xf32>
    %3 = vector.shape_cast %2 : vector<1x128xf32> to vector<1x1x1x128xf32>
    %c0_3 = arith.constant 0 : index
    %c0_4 = arith.constant 0 : index
    %c0_5 = arith.constant 0 : index
    %c0_6 = arith.constant 0 : index
    %4 = vector.load %arg1[%c0_3, %c0_4, %c0_5, %c0_6] : memref<1x16x16x128xbf16, #tpu.memory_space<vmem>>, vector<1x16x16x128xbf16>
    %5 = arith.extf %4 : vector<1x16x16x128xbf16> to vector<1x16x16x128xf32>
    %6 = vector.broadcast %1 : vector<1x1x1x128xf32> to vector<1x16x16x128xf32>
    %7 = arith.mulf %5, %6 : vector<1x16x16x128xf32>
    %8 = vector.broadcast %3 : vector<1x1x1x128xf32> to vector<1x16x16x128xf32>
    %9 = arith.addf %7, %8 : vector<1x16x16x128xf32>
    %cst = arith.constant 0.000000e+00 : f32
    %10 = vector.broadcast %cst : f32 to vector<1x16x16x128xf32>
    %11 = arith.maximumf %9, %10 : vector<1x16x16x128xf32>
    %12 = vector.extract_strided_slice %11 {offsets = [0, 0, 0, 0], sizes = [1, 16, 16, 8], strides = [1, 1, 1, 1]} : vector<1x16x16x128xf32> to vector<1x16x16x8xf32>
    %c0_i32 = arith.constant 0 : i32
    %13 = arith.sitofp %c0_i32 : i32 to f32
    %14 = vector.broadcast %13 : f32 to vector<1x1x16x8xf32>
    %15 = tpu.concatenate %14, %12 in 1 : vector<1x1x16x8xf32>, vector<1x16x16x8xf32> -> vector<1x17x16x8xf32>
    %16 = vector.broadcast %13 : f32 to vector<1x1x16x8xf32>
    %17 = tpu.concatenate %15, %16 in 1 : vector<1x17x16x8xf32>, vector<1x1x16x8xf32> -> vector<1x18x16x8xf32>
    %18 = vector.broadcast %13 : f32 to vector<1x18x1x8xf32>
    %19 = tpu.concatenate %18, %17 in 2 : vector<1x18x1x8xf32>, vector<1x18x16x8xf32> -> vector<1x18x17x8xf32>
    %20 = vector.broadcast %13 : f32 to vector<1x18x1x8xf32>
    %21 = tpu.concatenate %19, %20 in 2 : vector<1x18x17x8xf32>, vector<1x18x1x8xf32> -> vector<1x18x18x8xf32>
    %22 = vector.extract_strided_slice %21 {offsets = [0, 0, 0, 0], sizes = [1, 16, 16, 8], strides = [1, 1, 1, 1]} : vector<1x18x18x8xf32> to vector<1x16x16x8xf32>
    %23 = vector.extract_strided_slice %21 {offsets = [0, 0, 1, 0], sizes = [1, 16, 16, 8], strides = [1, 1, 1, 1]} : vector<1x18x18x8xf32> to vector<1x16x16x8xf32>
    %24 = vector.extract_strided_slice %21 {offsets = [0, 0, 2, 0], sizes = [1, 16, 16, 8], strides = [1, 1, 1, 1]} : vector<1x18x18x8xf32> to vector<1x16x16x8xf32>
    %25 = vector.extract_strided_slice %21 {offsets = [0, 1, 0, 0], sizes = [1, 16, 16, 8], strides = [1, 1, 1, 1]} : vector<1x18x18x8xf32> to vector<1x16x16x8xf32>
    %26 = vector.extract_strided_slice %21 {offsets = [0, 1, 1, 0], sizes = [1, 16, 16, 8], strides = [1, 1, 1, 1]} : vector<1x18x18x8xf32> to vector<1x16x16x8xf32>
    %27 = vector.extract_strided_slice %21 {offsets = [0, 1, 2, 0], sizes = [1, 16, 16, 8], strides = [1, 1, 1, 1]} : vector<1x18x18x8xf32> to vector<1x16x16x8xf32>
    %28 = vector.extract_strided_slice %21 {offsets = [0, 2, 0, 0], sizes = [1, 16, 16, 8], strides = [1, 1, 1, 1]} : vector<1x18x18x8xf32> to vector<1x16x16x8xf32>
    %29 = vector.extract_strided_slice %21 {offsets = [0, 2, 1, 0], sizes = [1, 16, 16, 8], strides = [1, 1, 1, 1]} : vector<1x18x18x8xf32> to vector<1x16x16x8xf32>
    %30 = vector.extract_strided_slice %21 {offsets = [0, 2, 2, 0], sizes = [1, 16, 16, 8], strides = [1, 1, 1, 1]} : vector<1x18x18x8xf32> to vector<1x16x16x8xf32>
    %31 = tpu.concatenate %22, %23, %24, %25, %26, %27, %28, %29, %30 in 3 : vector<1x16x16x8xf32>, vector<1x16x16x8xf32>, vector<1x16x16x8xf32>, vector<1x16x16x8xf32>, vector<1x16x16x8xf32>, vector<1x16x16x8xf32>, vector<1x16x16x8xf32>, vector<1x16x16x8xf32>, vector<1x16x16x8xf32> -> vector<1x16x16x72xf32>
    %32 = vector.shape_cast %31 : vector<1x16x16x72xf32> to vector<256x72xf32>
    %33 = arith.truncf %32 : vector<256x72xf32> to vector<256x72xbf16>
    %c0_7 = arith.constant 0 : index
    %c0_8 = arith.constant 0 : index
    %34 = vector.load %arg4[%c0_7, %c0_8] : memref<72x128xbf16, #tpu.memory_space<vmem>>, vector<72x128xbf16>
    %cst_9 = arith.constant dense<0.000000e+00> : vector<256x128xf32>
    %35 = tpu.matmul %33, %34, %cst_9 {dimension_numbers = #tpu.dot_dimension_numbers<[1], [0], [0], [1], [0, 0, 1, 1], [], []>} : vector<256x72xbf16>, vector<72x128xbf16>, vector<256x128xf32> -> vector<256x128xf32>
    %36 = vector.shape_cast %35 : vector<256x128xf32> to vector<1x16x16x128xf32>
    %37 = arith.truncf %36 : vector<1x16x16x128xf32> to vector<1x16x16x128xbf16>
    %c0_10 = arith.constant 0 : index
    %c0_11 = arith.constant 0 : index
    %c0_12 = arith.constant 0 : index
    %c0_13 = arith.constant 0 : index
    %38 = vector.load %arg5[%c0_10, %c0_11, %c0_12, %c0_13] : memref<1x16x16x128xbf16, #tpu.memory_space<vmem>>, vector<1x16x16x128xbf16>
    tpu.vector_store %arg5[%c0_10, %c0_11, %c0_12, %c0_13], %37 {strides = array<i32>} : memref<1x16x16x128xbf16, #tpu.memory_space<vmem>>, vector<1x16x16x128xbf16>,
    %cst_14 = arith.constant dense<0.000000e+00> : vector<128xf32>
    %39 = vector.multi_reduction <add>, %35, %cst_14 [0] : vector<256x128xf32> to vector<128xf32>
    %40 = vector.shape_cast %39 : vector<128xf32> to vector<1x128xf32>
    %41 = arith.mulf %35, %35 : vector<256x128xf32>
    %cst_15 = arith.constant dense<0.000000e+00> : vector<128xf32>
    %42 = vector.multi_reduction <add>, %41, %cst_15 [0] : vector<256x128xf32> to vector<128xf32>
    %43 = vector.shape_cast %42 : vector<128xf32> to vector<1x128xf32>
    %44 = tpu.concatenate %40, %43 in 0 : vector<1x128xf32>, vector<1x128xf32> -> vector<2x128xf32>
    %45 = vector.shape_cast %44 : vector<2x128xf32> to vector<1x2x128xf32>
    %c0_16 = arith.constant 0 : index
    %c0_17 = arith.constant 0 : index
    %c0_18 = arith.constant 0 : index
    %46 = vector.load %arg6[%c0_16, %c0_17, %c0_18] : memref<1x2x128xf32, #tpu.memory_space<vmem>>, vector<1x2x128xf32>
    tpu.vector_store %arg6[%c0_16, %c0_17, %c0_18], %45 {strides = array<i32>} : memref<1x2x128xf32, #tpu.memory_space<vmem>>, vector<1x2x128xf32>,
    return
  }
  func.func @transform_0(%arg0: i32) -> (i32, i32, i32, i32) {
    %c0_i32 = arith.constant 0 : i32
    %c0_i32_0 = arith.constant 0 : i32
    %c0_i32_1 = arith.constant 0 : i32
    %c0_i32_2 = arith.constant 0 : i32
    return %arg0, %c0_i32, %c0_i32_0, %c0_i32_1 : i32, i32, i32, i32
  }
  func.func @transform_1(%arg0: i32) -> (i32, i32) {
    %c0_i32 = arith.constant 0 : i32
    %c0_i32_0 = arith.constant 0 : i32
    %c0_i32_1 = arith.constant 0 : i32
    return %c0_i32, %c0_i32_0 : i32, i32
  }
  func.func @transform_2(%arg0: i32) -> (i32, i32) {
    %c0_i32 = arith.constant 0 : i32
    %c0_i32_0 = arith.constant 0 : i32
    %c0_i32_1 = arith.constant 0 : i32
    return %c0_i32, %c0_i32_0 : i32, i32
  }
  func.func @transform_3(%arg0: i32) -> (i32, i32) {
    %c0_i32 = arith.constant 0 : i32
    %c0_i32_0 = arith.constant 0 : i32
    %c0_i32_1 = arith.constant 0 : i32
    return %c0_i32, %c0_i32_0 : i32, i32
  }
  func.func @transform_4(%arg0: i32) -> (i32, i32, i32, i32) {
    %c0_i32 = arith.constant 0 : i32
    %c0_i32_0 = arith.constant 0 : i32
    %c0_i32_1 = arith.constant 0 : i32
    %c0_i32_2 = arith.constant 0 : i32
    return %arg0, %c0_i32, %c0_i32_0, %c0_i32_1 : i32, i32, i32, i32
  }
  func.func @transform_5(%arg0: i32) -> (i32, i32, i32) {
    %c0_i32 = arith.constant 0 : i32
    %c0_i32_0 = arith.constant 0 : i32
    %c0_i32_1 = arith.constant 0 : i32
    return %arg0, %c0_i32, %c0_i32_0 : i32, i32, i32
  }
}

module attributes {stable_mosaic.version = 11 : i64} {
  func.func @conv_stats_kernel(%arg0: i32, %arg1: memref<1x18x18x8xf32, #tpu.memory_space<vmem>>, %arg2: memref<72x128xbf16, #tpu.memory_space<vmem>>, %arg3: memref<1x16x16x128xbf16, #tpu.memory_space<vmem>>, %arg4: memref<1x2x128xf32, #tpu.memory_space<vmem>>) attributes {dimension_semantics = [#tpu.dimension_semantics<parallel>], iteration_bounds = array<i64: 2>, scalar_prefetch = 0 : i64, scratch_operands = 0 : i64, tpu.core_type = #tpu.core_type<tc>, window_params = [{transform_indices = @transform_0, window_bounds = array<i64: 1, 18, 18, 8>}, {pipeline_mode = #tpu.pipeline_mode<synchronous>, transform_indices = @transform_1, window_bounds = array<i64: 72, 128>}, {transform_indices = @transform_2, window_bounds = array<i64: 1, 16, 16, 128>}, {transform_indices = @transform_3, window_bounds = array<i64: 1, 2, 128>}]} {
    %c0 = arith.constant 0 : index
    %c0_0 = arith.constant 0 : index
    %c0_1 = arith.constant 0 : index
    %c0_2 = arith.constant 0 : index
    %0 = vector.load %arg1[%c0, %c0_0, %c0_1, %c0_2] : memref<1x18x18x8xf32, #tpu.memory_space<vmem>>, vector<1x16x16x8xf32>
    %c0_3 = arith.constant 0 : index
    %c0_4 = arith.constant 0 : index
    %c1 = arith.constant 1 : index
    %c0_5 = arith.constant 0 : index
    %1 = vector.load %arg1[%c0_3, %c0_4, %c1, %c0_5] : memref<1x18x18x8xf32, #tpu.memory_space<vmem>>, vector<1x16x16x8xf32>
    %c0_6 = arith.constant 0 : index
    %c0_7 = arith.constant 0 : index
    %c2 = arith.constant 2 : index
    %c0_8 = arith.constant 0 : index
    %2 = vector.load %arg1[%c0_6, %c0_7, %c2, %c0_8] : memref<1x18x18x8xf32, #tpu.memory_space<vmem>>, vector<1x16x16x8xf32>
    %c0_9 = arith.constant 0 : index
    %c1_10 = arith.constant 1 : index
    %c0_11 = arith.constant 0 : index
    %c0_12 = arith.constant 0 : index
    %3 = vector.load %arg1[%c0_9, %c1_10, %c0_11, %c0_12] : memref<1x18x18x8xf32, #tpu.memory_space<vmem>>, vector<1x16x16x8xf32>
    %c0_13 = arith.constant 0 : index
    %c1_14 = arith.constant 1 : index
    %c1_15 = arith.constant 1 : index
    %c0_16 = arith.constant 0 : index
    %4 = vector.load %arg1[%c0_13, %c1_14, %c1_15, %c0_16] : memref<1x18x18x8xf32, #tpu.memory_space<vmem>>, vector<1x16x16x8xf32>
    %c0_17 = arith.constant 0 : index
    %c1_18 = arith.constant 1 : index
    %c2_19 = arith.constant 2 : index
    %c0_20 = arith.constant 0 : index
    %5 = vector.load %arg1[%c0_17, %c1_18, %c2_19, %c0_20] : memref<1x18x18x8xf32, #tpu.memory_space<vmem>>, vector<1x16x16x8xf32>
    %c0_21 = arith.constant 0 : index
    %c2_22 = arith.constant 2 : index
    %c0_23 = arith.constant 0 : index
    %c0_24 = arith.constant 0 : index
    %6 = vector.load %arg1[%c0_21, %c2_22, %c0_23, %c0_24] : memref<1x18x18x8xf32, #tpu.memory_space<vmem>>, vector<1x16x16x8xf32>
    %c0_25 = arith.constant 0 : index
    %c2_26 = arith.constant 2 : index
    %c1_27 = arith.constant 1 : index
    %c0_28 = arith.constant 0 : index
    %7 = vector.load %arg1[%c0_25, %c2_26, %c1_27, %c0_28] : memref<1x18x18x8xf32, #tpu.memory_space<vmem>>, vector<1x16x16x8xf32>
    %c0_29 = arith.constant 0 : index
    %c2_30 = arith.constant 2 : index
    %c2_31 = arith.constant 2 : index
    %c0_32 = arith.constant 0 : index
    %8 = vector.load %arg1[%c0_29, %c2_30, %c2_31, %c0_32] : memref<1x18x18x8xf32, #tpu.memory_space<vmem>>, vector<1x16x16x8xf32>
    %9 = tpu.concatenate %0, %1, %2, %3, %4, %5, %6, %7, %8 in 3 : vector<1x16x16x8xf32>, vector<1x16x16x8xf32>, vector<1x16x16x8xf32>, vector<1x16x16x8xf32>, vector<1x16x16x8xf32>, vector<1x16x16x8xf32>, vector<1x16x16x8xf32>, vector<1x16x16x8xf32>, vector<1x16x16x8xf32> -> vector<1x16x16x72xf32>
    %10 = vector.shape_cast %9 : vector<1x16x16x72xf32> to vector<256x72xf32>
    %11 = arith.truncf %10 : vector<256x72xf32> to vector<256x72xbf16>
    %c0_33 = arith.constant 0 : index
    %c0_34 = arith.constant 0 : index
    %12 = vector.load %arg2[%c0_33, %c0_34] : memref<72x128xbf16, #tpu.memory_space<vmem>>, vector<72x128xbf16>
    %cst = arith.constant dense<0.000000e+00> : vector<256x128xf32>
    %13 = tpu.matmul %11, %12, %cst {dimension_numbers = #tpu.dot_dimension_numbers<[1], [0], [0], [1], [0, 0, 1, 1], [], []>} : vector<256x72xbf16>, vector<72x128xbf16>, vector<256x128xf32> -> vector<256x128xf32>
    %14 = vector.shape_cast %13 : vector<256x128xf32> to vector<1x16x16x128xf32>
    %15 = arith.truncf %14 : vector<1x16x16x128xf32> to vector<1x16x16x128xbf16>
    %c0_35 = arith.constant 0 : index
    %c0_36 = arith.constant 0 : index
    %c0_37 = arith.constant 0 : index
    %c0_38 = arith.constant 0 : index
    %16 = vector.load %arg3[%c0_35, %c0_36, %c0_37, %c0_38] : memref<1x16x16x128xbf16, #tpu.memory_space<vmem>>, vector<1x16x16x128xbf16>
    tpu.vector_store %arg3[%c0_35, %c0_36, %c0_37, %c0_38], %15 {strides = array<i32>} : memref<1x16x16x128xbf16, #tpu.memory_space<vmem>>, vector<1x16x16x128xbf16>,
    %cst_39 = arith.constant dense<0.000000e+00> : vector<128xf32>
    %17 = vector.multi_reduction <add>, %13, %cst_39 [0] : vector<256x128xf32> to vector<128xf32>
    %18 = vector.shape_cast %17 : vector<128xf32> to vector<1x128xf32>
    %19 = arith.mulf %13, %13 : vector<256x128xf32>
    %cst_40 = arith.constant dense<0.000000e+00> : vector<128xf32>
    %20 = vector.multi_reduction <add>, %19, %cst_40 [0] : vector<256x128xf32> to vector<128xf32>
    %21 = vector.shape_cast %20 : vector<128xf32> to vector<1x128xf32>
    %22 = tpu.concatenate %18, %21 in 0 : vector<1x128xf32>, vector<1x128xf32> -> vector<2x128xf32>
    %23 = vector.shape_cast %22 : vector<2x128xf32> to vector<1x2x128xf32>
    %c0_41 = arith.constant 0 : index
    %c0_42 = arith.constant 0 : index
    %c0_43 = arith.constant 0 : index
    %24 = vector.load %arg4[%c0_41, %c0_42, %c0_43] : memref<1x2x128xf32, #tpu.memory_space<vmem>>, vector<1x2x128xf32>
    tpu.vector_store %arg4[%c0_41, %c0_42, %c0_43], %23 {strides = array<i32>} : memref<1x2x128xf32, #tpu.memory_space<vmem>>, vector<1x2x128xf32>,
    return
  }
  func.func @transform_0(%arg0: i32) -> (i32, i32, i32, i32) {
    %c0_i32 = arith.constant 0 : i32
    %c0_i32_0 = arith.constant 0 : i32
    %c0_i32_1 = arith.constant 0 : i32
    %c0_i32_2 = arith.constant 0 : i32
    return %arg0, %c0_i32, %c0_i32_0, %c0_i32_1 : i32, i32, i32, i32
  }
  func.func @transform_1(%arg0: i32) -> (i32, i32) {
    %c0_i32 = arith.constant 0 : i32
    %c0_i32_0 = arith.constant 0 : i32
    %c0_i32_1 = arith.constant 0 : i32
    return %c0_i32, %c0_i32_0 : i32, i32
  }
  func.func @transform_2(%arg0: i32) -> (i32, i32, i32, i32) {
    %c0_i32 = arith.constant 0 : i32
    %c0_i32_0 = arith.constant 0 : i32
    %c0_i32_1 = arith.constant 0 : i32
    %c0_i32_2 = arith.constant 0 : i32
    return %arg0, %c0_i32, %c0_i32_0, %c0_i32_1 : i32, i32, i32, i32
  }
  func.func @transform_3(%arg0: i32) -> (i32, i32, i32) {
    %c0_i32 = arith.constant 0 : i32
    %c0_i32_0 = arith.constant 0 : i32
    %c0_i32_1 = arith.constant 0 : i32
    return %arg0, %c0_i32, %c0_i32_0 : i32, i32, i32
  }
}

module attributes {stable_mosaic.version = 11 : i64} {
  func.func @bn_add_relu_kernel(%arg0: i32, %arg1: memref<1x16x16x128xbf16, #tpu.memory_space<vmem>>, %arg2: memref<1x128xf32, #tpu.memory_space<vmem>>, %arg3: memref<1x128xf32, #tpu.memory_space<vmem>>, %arg4: memref<1x16x16x8xf32, #tpu.memory_space<vmem>>, %arg5: memref<1x16x16x8xf32, #tpu.memory_space<vmem>>) attributes {dimension_semantics = [#tpu.dimension_semantics<parallel>], iteration_bounds = array<i64: 2>, scalar_prefetch = 0 : i64, scratch_operands = 0 : i64, tpu.core_type = #tpu.core_type<tc>, window_params = [{transform_indices = @transform_0, window_bounds = array<i64: 1, 16, 16, 128>}, {pipeline_mode = #tpu.pipeline_mode<synchronous>, transform_indices = @transform_1, window_bounds = array<i64: 1, 128>}, {pipeline_mode = #tpu.pipeline_mode<synchronous>, transform_indices = @transform_2, window_bounds = array<i64: 1, 128>}, {transform_indices = @transform_3, window_bounds = array<i64: 1, 16, 16, 8>}, {transform_indices = @transform_4, window_bounds = array<i64: 1, 16, 16, 8>}]} {
    %c0 = arith.constant 0 : index
    %c0_0 = arith.constant 0 : index
    %0 = vector.load %arg2[%c0, %c0_0] : memref<1x128xf32, #tpu.memory_space<vmem>>, vector<1x128xf32>
    %1 = vector.shape_cast %0 : vector<1x128xf32> to vector<1x1x1x128xf32>
    %c0_1 = arith.constant 0 : index
    %c0_2 = arith.constant 0 : index
    %2 = vector.load %arg3[%c0_1, %c0_2] : memref<1x128xf32, #tpu.memory_space<vmem>>, vector<1x128xf32>
    %3 = vector.shape_cast %2 : vector<1x128xf32> to vector<1x1x1x128xf32>
    %c0_3 = arith.constant 0 : index
    %c0_4 = arith.constant 0 : index
    %c0_5 = arith.constant 0 : index
    %c0_6 = arith.constant 0 : index
    %4 = vector.load %arg1[%c0_3, %c0_4, %c0_5, %c0_6] : memref<1x16x16x128xbf16, #tpu.memory_space<vmem>>, vector<1x16x16x128xbf16>
    %5 = arith.extf %4 : vector<1x16x16x128xbf16> to vector<1x16x16x128xf32>
    %6 = vector.broadcast %1 : vector<1x1x1x128xf32> to vector<1x16x16x128xf32>
    %7 = arith.mulf %5, %6 : vector<1x16x16x128xf32>
    %8 = vector.broadcast %3 : vector<1x1x1x128xf32> to vector<1x16x16x128xf32>
    %9 = arith.addf %7, %8 : vector<1x16x16x128xf32>
    %10 = vector.extract_strided_slice %9 {offsets = [0, 0, 0, 0], sizes = [1, 16, 16, 8], strides = [1, 1, 1, 1]} : vector<1x16x16x128xf32> to vector<1x16x16x8xf32>
    %c0_7 = arith.constant 0 : index
    %c0_8 = arith.constant 0 : index
    %c0_9 = arith.constant 0 : index
    %c0_10 = arith.constant 0 : index
    %11 = vector.load %arg4[%c0_7, %c0_8, %c0_9, %c0_10] : memref<1x16x16x8xf32, #tpu.memory_space<vmem>>, vector<1x16x16x8xf32>
    %12 = arith.addf %10, %11 : vector<1x16x16x8xf32>
    %cst = arith.constant 0.000000e+00 : f32
    %13 = vector.broadcast %cst : f32 to vector<1x16x16x8xf32>
    %14 = arith.maximumf %12, %13 : vector<1x16x16x8xf32>
    %c0_11 = arith.constant 0 : index
    %c0_12 = arith.constant 0 : index
    %c0_13 = arith.constant 0 : index
    %c0_14 = arith.constant 0 : index
    %15 = vector.load %arg5[%c0_11, %c0_12, %c0_13, %c0_14] : memref<1x16x16x8xf32, #tpu.memory_space<vmem>>, vector<1x16x16x8xf32>
    tpu.vector_store %arg5[%c0_11, %c0_12, %c0_13, %c0_14], %14 {strides = array<i32>} : memref<1x16x16x8xf32, #tpu.memory_space<vmem>>, vector<1x16x16x8xf32>,
    return
  }
  func.func @transform_0(%arg0: i32) -> (i32, i32, i32, i32) {
    %c0_i32 = arith.constant 0 : i32
    %c0_i32_0 = arith.constant 0 : i32
    %c0_i32_1 = arith.constant 0 : i32
    %c0_i32_2 = arith.constant 0 : i32
    return %arg0, %c0_i32, %c0_i32_0, %c0_i32_1 : i32, i32, i32, i32
  }
  func.func @transform_1(%arg0: i32) -> (i32, i32) {
    %c0_i32 = arith.constant 0 : i32
    %c0_i32_0 = arith.constant 0 : i32
    %c0_i32_1 = arith.constant 0 : i32
    return %c0_i32, %c0_i32_0 : i32, i32
  }
  func.func @transform_2(%arg0: i32) -> (i32, i32) {
    %c0_i32 = arith.constant 0 : i32
    %c0_i32_0 = arith.constant 0 : i32
    %c0_i32_1 = arith.constant 0 : i32
    return %c0_i32, %c0_i32_0 : i32, i32
  }
  func.func @transform_3(%arg0: i32) -> (i32, i32, i32, i32) {
    %c0_i32 = arith.constant 0 : i32
    %c0_i32_0 = arith.constant 0 : i32
    %c0_i32_1 = arith.constant 0 : i32
    %c0_i32_2 = arith.constant 0 : i32
    return %arg0, %c0_i32, %c0_i32_0, %c0_i32_1 : i32, i32, i32, i32
  }
  func.func @transform_4(%arg0: i32) -> (i32, i32, i32, i32) {
    %c0_i32 = arith.constant 0 : i32
    %c0_i32_0 = arith.constant 0 : i32
    %c0_i32_1 = arith.constant 0 : i32
    %c0_i32_2 = arith.constant 0 : i32
    return %arg0, %c0_i32, %c0_i32_0, %c0_i32_1 : i32, i32, i32, i32
  }
}

</mosaic_0001>

<llo_original>
// kernel: basic_block_forward.5
$region0: #{basic_block_forward.5}
  #allocation0 [shape = 'u32[]', space=smem, size = 0x4, offset = 0x4, fixed_abs, tag = 'smem constant byte address 0x4 - core index']
  #allocation1 [shape = 'u32[144,128]{1,0:T(1,128)}', space=vmem, size = 0x12000, scoped, tag = 'internal scratch']
  %s0 = inlined_call_operand.vmem [shape: bf16[2,16,16,128], index: 0, kind: input, shape index: {}]
  %s1 = inlined_call_operand.vmem [shape: f32[1,128], index: 1, kind: input, shape index: {}]
  %s2 = inlined_call_operand.vmem [shape: f32[1,128], index: 2, kind: input, shape index: {}]
  %s3 = inlined_call_operand.vmem [shape: f32[2,16,16,8], index: 3, kind: input, shape index: {}]
  %s4 = inlined_call_operand.vmem [shape: f32[2,16,16,8], index: 4, kind: output, shape index: {}]
  %s5 = sld [smem:[#allocation0]]
  $region49: #{basic_block_forward.5} parent=0
    _
  %s7 = ssub.s32 1, %s5
  %s8 = scalar_select 0, %s7, %s5
  loop: start=0, step=1, limit=4
  $region2: #{basic_block_forward.5} parent=0 // loop_pre_header
    _
  $region3: #{basic_block_forward.5} parent=0 // loop_header
    %s10 = sphi 0, %s14
    %p11 = scmp.ge.s32.totalorder %s10, 4
    %s20 = sphi 0, %s22
    %s23 = sphi 0, %s20
    %s24 = sphi 0, %s23
    %s40 = sphi 0, %s24
    %s44 = sphi 0, %s44
    %s46 = sphi 0, %s44
    %s47 = sphi 0, %s46
    %s61 = sphi 0, %s47
    %s65 = sphi 0, %s65
    %s67 = sphi 0, %s65
    %s68 = sphi 0, %s67
    %s82 = sphi 0, %s68
    %s88 = sphi 0, %s90
    %s91 = sphi 0, %s88
    %s92 = sphi 0, %s91
    %s108 = sphi 0, %s92
    %s114 = sphi 0, %s116
    %s117 = sphi 0, %s114
    %s118 = sphi 0, %s117
    %s134 = sphi 0, %s118
  $region4: #{basic_block_forward.5} parent=0 // loop_header_branch
    %13 = sbr.rel (%p11) target = $region8
  $region5: #{basic_block_forward.5} parent=0 // loop_body
    %s15 = ssub.s32 %s10, 1
    %s16 = ssub.s32 %s10, 2
    %s17 = sadd.s32 %s10, 1
    %s18 = ssub.s32 %s10, %s17
    %p19 = scmp.eq.s32.totalorder %s18, 0
    %s21 = sadd.s32 %s20, 1
    %s22 = scalar_select %p19, %s20, %s21
    %p25 = pneg %p19
    %p26 = scmp.eq.s32.totalorder %s10, 1
    %p27 = por %p25, %p26
    %p28 = scmp.ne.s32.totalorder %s20, %s23
    %p29 = scmp.eq.s32.totalorder %s10, 0
    %p30 = por %p28, %p29
    %p31 = scmp.ne.s32.totalorder %s20, %s23
    %p32 = scmp.eq.s32.totalorder %s15, 1
    %p33 = por %p31, %p32
    %p34 = scmp.ne.s32.totalorder %s23, %s24
    %p35 = scmp.eq.s32.totalorder %s15, 0
    %p36 = por %p34, %p35
    %p37 = scmp.ne.s32.totalorder %s23, %s24
    %p38 = scmp.eq.s32.totalorder %s16, 1
    %p39 = por %p37, %p38
    %p41 = scmp.ne.s32.totalorder %s24, %s40
    %p42 = scmp.eq.s32.totalorder %s16, 0
    %p43 = por %p41, %p42
    %s45 = sadd.s32 %s44, 1
    %p48 = scmp.eq.s32.totalorder %s10, 1
    %p49 = scmp.ne.s32.totalorder %s44, %s46
    %p50 = scmp.eq.s32.totalorder %s10, 0
    %p51 = por %p49, %p50
    %p52 = scmp.ne.s32.totalorder %s44, %s46
    %p53 = scmp.eq.s32.totalorder %s15, 1
    %p54 = por %p52, %p53
    %p55 = scmp.ne.s32.totalorder %s46, %s47
    %p56 = scmp.eq.s32.totalorder %s15, 0
    %p57 = por %p55, %p56
    %p58 = scmp.ne.s32.totalorder %s46, %s47
    %p59 = scmp.eq.s32.totalorder %s16, 1
    %p60 = por %p58, %p59
    %p62 = scmp.ne.s32.totalorder %s47, %s61
    %p63 = scmp.eq.s32.totalorder %s16, 0
    %p64 = por %p62, %p63
    %s66 = sadd.s32 %s65, 1
    %p69 = scmp.eq.s32.totalorder %s10, 1
    %p70 = scmp.ne.s32.totalorder %s65, %s67
    %p71 = scmp.eq.s32.totalorder %s10, 0
    %p72 = por %p70, %p71
    %p73 = scmp.ne.s32.totalorder %s65, %s67
    %p74 = scmp.eq.s32.totalorder %s15, 1
    %p75 = por %p73, %p74
    %p76 = scmp.ne.s32.totalorder %s67, %s68
    %p77 = scmp.eq.s32.totalorder %s15, 0
    %p78 = por %p76, %p77
    %p79 = scmp.ne.s32.totalorder %s67, %s68
    %p80 = scmp.eq.s32.totalorder %s16, 1
    %p81 = por %p79, %p80
    %p83 = scmp.ne.s32.totalorder %s68, %s82
    %p84 = scmp.eq.s32.totalorder %s16, 0
    %p85 = por %p83, %p84
    %s86 = ssub.s32 %s10, %s17
    %p87 = scmp.eq.s32.totalorder %s86, 0
    %s89 = sadd.s32 %s88, 1
    %s90 = scalar_select %p87, %s88, %s89
    %p93 = pneg %p87
    %p94 = scmp.eq.s32.totalorder %s10, 1
    %p95 = por %p93, %p94
    %p96 = scmp.ne.s32.totalorder %s88, %s91
    %p97 = scmp.eq.s32.totalorder %s10, 0
    %p98 = por %p96, %p97
    %p99 = scmp.ne.s32.totalorder %s88, %s91
    %p100 = scmp.eq.s32.totalorder %s15, 1
    %p101 = por %p99, %p100
    %p102 = scmp.ne.s32.totalorder %s91, %s92
    %p103 = scmp.eq.s32.totalorder %s15, 0
    %p104 = por %p102, %p103
    %p105 = scmp.ne.s32.totalorder %s91, %s92
    %p106 = scmp.eq.s32.totalorder %s16, 1
    %p107 = por %p105, %p106
    %p109 = scmp.ne.s32.totalorder %s92, %s108
    %p110 = scmp.eq.s32.totalorder %s16, 0
    %p111 = por %p109, %p110
    %s112 = ssub.s32 %s10, %s17
    %p113 = scmp.eq.s32.totalorder %s112, 0
    %s115 = sadd.s32 %s114, 1
    %s116 = scalar_select %p113, %s114, %s115
    %p119 = pneg %p113
    %p120 = scmp.eq.s32.totalorder %s10, 1
    %p121 = por %p119, %p120
    %p122 = scmp.ne.s32.totalorder %s114, %s117
    %p123 = scmp.eq.s32.totalorder %s10, 0
    %p124 = por %p122, %p123
    %p125 = scmp.ne.s32.totalorder %s114, %s117
    %p126 = scmp.eq.s32.totalorder %s15, 1
    %p127 = por %p125, %p126
    %p128 = scmp.ne.s32.totalorder %s117, %s118
    %p129 = scmp.eq.s32.totalorder %s15, 0
    %p130 = por %p128, %p129
    %p131 = scmp.ne.s32.totalorder %s117, %s118
    %p132 = scmp.eq.s32.totalorder %s16, 1
    %p133 = por %p131, %p132
    %p135 = scmp.ne.s32.totalorder %s118, %s134
    %p136 = scmp.eq.s32.totalorder %s16, 0
    %p137 = por %p135, %p136
    %p138 = scmp.le.s32.totalorder 1, %s10
    %p139 = scmp.lt.s32.totalorder %s10, 3
    %p140 = pnand %p138, %p139
    %p141 = pneg %p140
    // Predicated region
    $region9: #{basic_block_forward.5} parent=5 // pred_check
      _
    $region10: #{basic_block_forward.5} parent=5 // pred_check_branch
      %143 = sbr.rel (%p140) target = $region12
    $region11: #{basic_block_forward.5} parent=5 // pred_region
      %s144 = ssub.s32 %s10, 1
      // Predicated region
      $region13: #{basic_block_forward.5} parent=11 // pred_check
        %p145 = pneg %p57
      $region14: #{basic_block_forward.5} parent=11 // pred_check_branch
        %147 = sbr.rel (%p145) target = $region16
      $region15: #{basic_block_forward.5} parent=11 // pred_region
        _
      $region16: #{basic_block_forward.5} parent=11 // pred_fallthru
        _
      // Predicated region
      $region17: #{basic_block_forward.5} parent=11 // pred_check
        %p148 = pneg %p78
      $region18: #{basic_block_forward.5} parent=11 // pred_check_branch
        %150 = sbr.rel (%p148) target = $region20
      $region19: #{basic_block_forward.5} parent=11 // pred_region
        _
      $region20: #{basic_block_forward.5} parent=11 // pred_fallthru
        _
    $region12: #{basic_block_forward.5} parent=5 // pred_fallthru
      _
    %p151 = scmp.lt.s32.totalorder %s10, 2
    // Predicated region
    $region21: #{basic_block_forward.5} parent=5 // pred_check
      %p152 = pneg %p151
    $region22: #{basic_block_forward.5} parent=5 // pred_check_branch
      %154 = sbr.rel (%p152) target = $region24
    $region23: #{basic_block_forward.5} parent=5 // pred_region
      // Predicated region
      $region25: #{basic_block_forward.5} parent=23 // pred_check
        %p155 = pneg %p30
      $region26: #{basic_block_forward.5} parent=23 // pred_check_branch
        %157 = sbr.rel (%p155) target = $region28
      $region27: #{basic_block_forward.5} parent=23 // pred_region
        %p158 = scmp.lt.s32.totalorder %s10, 1
        %s159 = scalar_select %p158, %s10, 1
        %s160 = smul.addr %s159, 32
        %s161 = smul.addr %s160, 4
        %s162 = scalar_lea.vmem %s0, %s161
      $region28: #{basic_block_forward.5} parent=23 // pred_fallthru
        _
      // Predicated region
      $region29: #{basic_block_forward.5} parent=23 // pred_check
        %p163 = pneg %p98
      $region30: #{basic_block_forward.5} parent=23 // pred_check_branch
        %165 = sbr.rel (%p163) target = $region32
      $region31: #{basic_block_forward.5} parent=23 // pred_region
        %p166 = scmp.lt.s32.totalorder %s10, 1
        %s167 = scalar_select %p166, %s10, 1
        %s168 = smul.addr %s167, 32
        %s169 = smul.addr %s168, 8
        %s170 = scalar_lea.vmem %s3, %s169
      $region32: #{basic_block_forward.5} parent=23 // pred_fallthru
        _
    $region24: #{basic_block_forward.5} parent=5 // pred_fallthru
      _
    %p171 = scmp.le.s32.totalorder 1, %s10
    %p172 = scmp.lt.s32.totalorder %s10, 3
    %p173 = pnand %p171, %p172
    %p174 = pneg %p173
    // Predicated region
    $region33: #{basic_block_forward.5} parent=5 // pred_check
      _
    $region34: #{basic_block_forward.5} parent=5 // pred_check_branch
      %176 = sbr.rel (%p173) target = $region36
    $region35: #{basic_block_forward.5} parent=5 // pred_region
      %s177 = ssub.s32 %s10, 1
      %p178 = scmp.lt.s32.totalorder %s15, 1
      %s179 = scalar_select %p178, %s15, 1
      %s180 = smul.addr %s179, 32
      %s181 = smul.addr %s180, 4
      %s182 = scalar_lea.vmem %s0, %s181
      %p183 = pneg %p36
      %p184 = pneg %p33
      %p185 = pneg %p57
      %p186 = pneg %p54
      %p187 = pneg %p78
      %p188 = pneg %p75
      %p189 = scmp.lt.s32.totalorder %s15, 1
      %s190 = scalar_select %p189, %s15, 1
      %s191 = smul.addr %s190, 32
      %s192 = smul.addr %s191, 8
      %s193 = scalar_lea.vmem %s3, %s192
      %p194 = pneg %p104
      %p195 = pneg %p101
      %p196 = pneg %p130
      %p197 = pneg %p127
      %p198 = scmp.lt.s32.totalorder %s15, 1
      %s199 = scalar_select %p198, %s15, 1
      %s200 = smul.addr %s199, 32
      %s201 = smul.addr %s200, 8
      %s202 = scalar_lea.vmem %s4, %s201
      %p203 = scmp.lt.s32.totalorder %s15, 1
      %s204 = scalar_select %p203, %s15, 1
      %s205 = smul.addr %s204, 32
      %s206 = smul.addr %s205, 4
      %s207 = scalar_lea.vmem %s0, %s206
      %p208 = scmp.lt.s32.totalorder %s15, 1
      %s209 = scalar_select %p208, %s15, 1
      %s210 = smul.addr %s209, 32
      %s211 = smul.addr %s210, 8
      %s212 = scalar_lea.vmem %s3, %s211
      %p213 = scmp.lt.s32.totalorder %s15, 1
      %s214 = scalar_select %p213, %s15, 1
      %s215 = smul.addr %s214, 32
      %s216 = smul.addr %s215, 8
      %s217 = scalar_lea.vmem %s4, %s216
      %v218 = vld [vmem:[%s1] sm:$0x1]
      %v219 = vld [vmem:[%s2] sm:$0x1]
      %v220 = vld [vmem:[%s207] sm:$0xf]
      %v221 = vld [vmem:[%s207 + $0x4] sm:$0xf]
      %v222 = vld [vmem:[%s207 + $0x8] sm:$0xf]
      %v223 = vld [vmem:[%s207 + $0xc] sm:$0xf]
      %v224 = vld [vmem:[%s207 + $0x10] sm:$0xf]
      %v225 = vld [vmem:[%s207 + $0x14] sm:$0xf]
      %v226 = vld [vmem:[%s207 + $0x18] sm:$0xf]
      %v227 = vld [vmem:[%s207 + $0x1c] sm:$0xf]
      %v228 = vld [vmem:[%s207 + $0x20] sm:$0xf]
      %v229 = vld [vmem:[%s207 + $0x24] sm:$0xf]
      %v230 = vld [vmem:[%s207 + $0x28] sm:$0xf]
      %v231 = vld [vmem:[%s207 + $0x2c] sm:$0xf]
      %v232 = vld [vmem:[%s207 + $0x30] sm:$0xf]
      %v233 = vld [vmem:[%s207 + $0x34] sm:$0xf]
      %v234 = vld [vmem:[%s207 + $0x38] sm:$0xf]
      %v235 = vld [vmem:[%s207 + $0x3c] sm:$0xf]
      %v236 = vld [vmem:[%s207 + $0x40] sm:$0xf]
      %v237 = vld [vmem:[%s207 + $0x44] sm:$0xf]
      %v238 = vld [vmem:[%s207 + $0x48] sm:$0xf]
      %v239 = vld [vmem:[%s207 + $0x4c] sm:$0xf]
      %v240 = vld [vmem:[%s207 + $0x50] sm:$0xf]
      %v241 = vld [vmem:[%s207 + $0x54] sm:$0xf]
      %v242 = vld [vmem:[%s207 + $0x58] sm:$0xf]
      %v243 = vld [vmem:[%s207 + $0x5c] sm:$0xf]
      %v244 = vld [vmem:[%s207 + $0x60] sm:$0xf]
      %v245 = vld [vmem:[%s207 + $0x64] sm:$0xf]
      %v246 = vld [vmem:[%s207 + $0x68] sm:$0xf]
      %v247 = vld [vmem:[%s207 + $0x6c] sm:$0xf]
      %v248 = vld [vmem:[%s207 + $0x70] sm:$0xf]
      %v249 = vld [vmem:[%s207 + $0x74] sm:$0xf]
      %v250 = vld [vmem:[%s207 + $0x78] sm:$0xf]
      %v251 = vld [vmem:[%s207 + $0x7c] sm:$0xf]
      %v252 = vunpack.c.l.bf16 %v220
      %v253 = vunpack.c.l.bf16 %v221
      %v254 = vunpack.c.l.bf16 %v222
      %v255 = vunpack.c.l.bf16 %v223
      %v256 = vunpack.c.l.bf16 %v224
      %v257 = vunpack.c.l.bf16 %v225
      %v258 = vunpack.c.l.bf16 %v226
      %v259 = vunpack.c.l.bf16 %v227
      %v260 = vunpack.c.l.bf16 %v228
      %v261 = vunpack.c.l.bf16 %v229
      %v262 = vunpack.c.l.bf16 %v230
      %v263 = vunpack.c.l.bf16 %v231
      %v264 = vunpack.c.l.bf16 %v232
      %v265 = vunpack.c.l.bf16 %v233
      %v266 = vunpack.c.l.bf16 %v234
      %v267 = vunpack.c.l.bf16 %v235
      %v268 = vunpack.c.l.bf16 %v236
      %v269 = vunpack.c.l.bf16 %v237
      %v270 = vunpack.c.l.bf16 %v238
      %v271 = vunpack.c.l.bf16 %v239
      %v272 = vunpack.c.l.bf16 %v240
      %v273 = vunpack.c.l.bf16 %v241
      %v274 = vunpack.c.l.bf16 %v242
      %v275 = vunpack.c.l.bf16 %v243
      %v276 = vunpack.c.l.bf16 %v244
      %v277 = vunpack.c.l.bf16 %v245
      %v278 = vunpack.c.l.bf16 %v246
      %v279 = vunpack.c.l.bf16 %v247
      %v280 = vunpack.c.l.bf16 %v248
      %v281 = vunpack.c.l.bf16 %v249
      %v282 = vunpack.c.l.bf16 %v250
      %v283 = vunpack.c.l.bf16 %v251
      %v285 = vlaneseq
      %v286 = vshrl.u32 %v285, 7
      %v287 = vsub.s32 0, %v286
      %v288 = vrot.slane %v218, %v287
      %v290 = vmul.f32 %v252, %v288
      %v291 = vmul.f32 %v253, %v288
      %v292 = vmul.f32 %v254, %v288
      %v293 = vmul.f32 %v255, %v288
      %v294 = vmul.f32 %v256, %v288
      %v295 = vmul.f32 %v257, %v288
      %v296 = vmul.f32 %v258, %v288
      %v297 = vmul.f32 %v259, %v288
      %v298 = vmul.f32 %v260, %v288
      %v299 = vmul.f32 %v261, %v288
      %v300 = vmul.f32 %v262, %v288
      %v301 = vmul.f32 %v263, %v288
      %v302 = vmul.f32 %v264, %v288
      %v303 = vmul.f32 %v265, %v288
      %v304 = vmul.f32 %v266, %v288
      %v305 = vmul.f32 %v267, %v288
      %v306 = vmul.f32 %v268, %v288
      %v307 = vmul.f32 %v269, %v288
      %v308 = vmul.f32 %v270, %v288
      %v309 = vmul.f32 %v271, %v288
      %v310 = vmul.f32 %v272, %v288
      %v311 = vmul.f32 %v273, %v288
      %v312 = vmul.f32 %v274, %v288
      %v313 = vmul.f32 %v275, %v288
      %v314 = vmul.f32 %v276, %v288
      %v315 = vmul.f32 %v277, %v288
      %v316 = vmul.f32 %v278, %v288
      %v317 = vmul.f32 %v279, %v288
      %v318 = vmul.f32 %v280, %v288
      %v319 = vmul.f32 %v281, %v288
      %v320 = vmul.f32 %v282, %v288
      %v321 = vmul.f32 %v283, %v288
      %v323 = vlaneseq
      %v324 = vshrl.u32 %v323, 7
      %v325 = vsub.s32 0, %v324
      %v326 = vrot.slane %v219, %v325
      %v328 = vadd.f32 %v290, %v326
      %v329 = vadd.f32 %v291, %v326
      %v330 = vadd.f32 %v292, %v326
      %v331 = vadd.f32 %v293, %v326
      %v332 = vadd.f32 %v294, %v326
      %v333 = vadd.f32 %v295, %v326
      %v334 = vadd.f32 %v296, %v326
      %v335 = vadd.f32 %v297, %v326
      %v336 = vadd.f32 %v298, %v326
      %v337 = vadd.f32 %v299, %v326
      %v338 = vadd.f32 %v300, %v326
      %v339 = vadd.f32 %v301, %v326
      %v340 = vadd.f32 %v302, %v326
      %v341 = vadd.f32 %v303, %v326
      %v342 = vadd.f32 %v304, %v326
      %v343 = vadd.f32 %v305, %v326
      %v344 = vadd.f32 %v306, %v326
      %v345 = vadd.f32 %v307, %v326
      %v346 = vadd.f32 %v308, %v326
      %v347 = vadd.f32 %v309, %v326
      %v348 = vadd.f32 %v310, %v326
      %v349 = vadd.f32 %v311, %v326
      %v350 = vadd.f32 %v312, %v326
      %v351 = vadd.f32 %v313, %v326
      %v352 = vadd.f32 %v314, %v326
      %v353 = vadd.f32 %v315, %v326
      %v354 = vadd.f32 %v316, %v326
      %v355 = vadd.f32 %v317, %v326
      %v356 = vadd.f32 %v318, %v326
      %v357 = vadd.f32 %v319, %v326
      %v358 = vadd.f32 %v320, %v326
      %v359 = vadd.f32 %v321, %v326
      %v360 = vld [vmem:[%s212] sm:$0xff]
      %v361 = vld [vmem:[%s212 + $0x8] sm:$0xff]
      %v362 = vld [vmem:[%s212 + $0x10] sm:$0xff]
      %v363 = vld [vmem:[%s212 + $0x18] sm:$0xff]
      %v364 = vld [vmem:[%s212 + $0x20] sm:$0xff]
      %v365 = vld [vmem:[%s212 + $0x28] sm:$0xff]
      %v366 = vld [vmem:[%s212 + $0x30] sm:$0xff]
      %v367 = vld [vmem:[%s212 + $0x38] sm:$0xff]
      %v368 = vld [vmem:[%s212 + $0x40] sm:$0xff]
      %v369 = vld [vmem:[%s212 + $0x48] sm:$0xff]
      %v370 = vld [vmem:[%s212 + $0x50] sm:$0xff]
      %v371 = vld [vmem:[%s212 + $0x58] sm:$0xff]
      %v372 = vld [vmem:[%s212 + $0x60] sm:$0xff]
      %v373 = vld [vmem:[%s212 + $0x68] sm:$0xff]
      %v374 = vld [vmem:[%s212 + $0x70] sm:$0xff]
      %v375 = vld [vmem:[%s212 + $0x78] sm:$0xff]
      %v376 = vld [vmem:[%s212 + $0x80] sm:$0xff]
      %v377 = vld [vmem:[%s212 + $0x88] sm:$0xff]
      %v378 = vld [vmem:[%s212 + $0x90] sm:$0xff]
      %v379 = vld [vmem:[%s212 + $0x98] sm:$0xff]
      %v380 = vld [vmem:[%s212 + $0xa0] sm:$0xff]
      %v381 = vld [vmem:[%s212 + $0xa8] sm:$0xff]
      %v382 = vld [vmem:[%s212 + $0xb0] sm:$0xff]
      %v383 = vld [vmem:[%s212 + $0xb8] sm:$0xff]
      %v384 = vld [vmem:[%s212 + $0xc0] sm:$0xff]
      %v385 = vld [vmem:[%s212 + $0xc8] sm:$0xff]
      %v386 = vld [vmem:[%s212 + $0xd0] sm:$0xff]
      %v387 = vld [vmem:[%s212 + $0xd8] sm:$0xff]
      %v388 = vld [vmem:[%s212 + $0xe0] sm:$0xff]
      %v389 = vld [vmem:[%s212 + $0xe8] sm:$0xff]
      %v390 = vld [vmem:[%s212 + $0xf0] sm:$0xff]
      %v391 = vld [vmem:[%s212 + $0xf8] sm:$0xff]
      %v392 = vadd.f32 %v328, %v360
      %v393 = vadd.f32 %v329, %v361
      %v394 = vadd.f32 %v330, %v362
      %v395 = vadd.f32 %v331, %v363
      %v396 = vadd.f32 %v332, %v364
      %v397 = vadd.f32 %v333, %v365
      %v398 = vadd.f32 %v334, %v366
      %v399 = vadd.f32 %v335, %v367
      %v400 = vadd.f32 %v336, %v368
      %v401 = vadd.f32 %v337, %v369
      %v402 = vadd.f32 %v338, %v370
      %v403 = vadd.f32 %v339, %v371
      %v404 = vadd.f32 %v340, %v372
      %v405 = vadd.f32 %v341, %v373
      %v406 = vadd.f32 %v342, %v374
      %v407 = vadd.f32 %v343, %v375
      %v408 = vadd.f32 %v344, %v376
      %v409 = vadd.f32 %v345, %v377
      %v410 = vadd.f32 %v346, %v378
      %v411 = vadd.f32 %v347, %v379
      %v412 = vadd.f32 %v348, %v380
      %v413 = vadd.f32 %v349, %v381
      %v414 = vadd.f32 %v350, %v382
      %v415 = vadd.f32 %v351, %v383
      %v416 = vadd.f32 %v352, %v384
      %v417 = vadd.f32 %v353, %v385
      %v418 = vadd.f32 %v354, %v386
      %v419 = vadd.f32 %v355, %v387
      %v420 = vadd.f32 %v356, %v388
      %v421 = vadd.f32 %v357, %v389
      %v422 = vadd.f32 %v358, %v390
      %v423 = vadd.f32 %v359, %v391
      %v424 = vmax.f32 %v392, 0.0
      %v425 = vmax.f32 %v393, 0.0
      %v426 = vmax.f32 %v394, 0.0
      %v427 = vmax.f32 %v395, 0.0
      %v428 = vmax.f32 %v396, 0.0
      %v429 = vmax.f32 %v397, 0.0
      %v430 = vmax.f32 %v398, 0.0
      %v431 = vmax.f32 %v399, 0.0
      %v432 = vmax.f32 %v400, 0.0
      %v433 = vmax.f32 %v401, 0.0
      %v434 = vmax.f32 %v402, 0.0
      %v435 = vmax.f32 %v403, 0.0
      %v436 = vmax.f32 %v404, 0.0
      %v437 = vmax.f32 %v405, 0.0
      %v438 = vmax.f32 %v406, 0.0
      %v439 = vmax.f32 %v407, 0.0
      %v440 = vmax.f32 %v408, 0.0
      %v441 = vmax.f32 %v409, 0.0
      %v442 = vmax.f32 %v410, 0.0
      %v443 = vmax.f32 %v411, 0.0
      %v444 = vmax.f32 %v412, 0.0
      %v445 = vmax.f32 %v413, 0.0
      %v446 = vmax.f32 %v414, 0.0
      %v447 = vmax.f32 %v415, 0.0
      %v448 = vmax.f32 %v416, 0.0
      %v449 = vmax.f32 %v417, 0.0
      %v450 = vmax.f32 %v418, 0.0
      %v451 = vmax.f32 %v419, 0.0
      %v452 = vmax.f32 %v420, 0.0
      %v453 = vmax.f32 %v421, 0.0
      %v454 = vmax.f32 %v422, 0.0
      %v455 = vmax.f32 %v423, 0.0
      %vm456 = vcmask 64512
      %457 = vst.msk [vmem:[%s217] sm:$0xff] %vm456, %v424
      %458 = vst.msk [vmem:[%s217 + $0x8] sm:$0xff] %vm456, %v425
      %459 = vst.msk [vmem:[%s217 + $0x10] sm:$0xff] %vm456, %v426
      %460 = vst.msk [vmem:[%s217 + $0x18] sm:$0xff] %vm456, %v427
      %461 = vst.msk [vmem:[%s217 + $0x20] sm:$0xff] %vm456, %v428
      %462 = vst.msk [vmem:[%s217 + $0x28] sm:$0xff] %vm456, %v429
      %463 = vst.msk [vmem:[%s217 + $0x30] sm:$0xff] %vm456, %v430
      %464 = vst.msk [vmem:[%s217 + $0x38] sm:$0xff] %vm456, %v431
      %465 = vst.msk [vmem:[%s217 + $0x40] sm:$0xff] %vm456, %v432
      %466 = vst.msk [vmem:[%s217 + $0x48] sm:$0xff] %vm456, %v433
      %467 = vst.msk [vmem:[%s217 + $0x50] sm:$0xff] %vm456, %v434
      %468 = vst.msk [vmem:[%s217 + $0x58] sm:$0xff] %vm456, %v435
      %469 = vst.msk [vmem:[%s217 + $0x60] sm:$0xff] %vm456, %v436
      %470 = vst.msk [vmem:[%s217 + $0x68] sm:$0xff] %vm456, %v437
      %471 = vst.msk [vmem:[%s217 + $0x70] sm:$0xff] %vm456, %v438
      %472 = vst.msk [vmem:[%s217 + $0x78] sm:$0xff] %vm456, %v439
      %473 = vst.msk [vmem:[%s217 + $0x80] sm:$0xff] %vm456, %v440
      %474 = vst.msk [vmem:[%s217 + $0x88] sm:$0xff] %vm456, %v441
      %475 = vst.msk [vmem:[%s217 + $0x90] sm:$0xff] %vm456, %v442
      %476 = vst.msk [vmem:[%s217 + $0x98] sm:$0xff] %vm456, %v443
      %477 = vst.msk [vmem:[%s217 + $0xa0] sm:$0xff] %vm456, %v444
      %478 = vst.msk [vmem:[%s217 + $0xa8] sm:$0xff] %vm456, %v445
      %479 = vst.msk [vmem:[%s217 + $0xb0] sm:$0xff] %vm456, %v446
      %480 = vst.msk [vmem:[%s217 + $0xb8] sm:$0xff] %vm456, %v447
      %481 = vst.msk [vmem:[%s217 + $0xc0] sm:$0xff] %vm456, %v448
      %482 = vst.msk [vmem:[%s217 + $0xc8] sm:$0xff] %vm456, %v449
      %483 = vst.msk [vmem:[%s217 + $0xd0] sm:$0xff] %vm456, %v450
      %484 = vst.msk [vmem:[%s217 + $0xd8] sm:$0xff] %vm456, %v451
      %485 = vst.msk [vmem:[%s217 + $0xe0] sm:$0xff] %vm456, %v452
      %486 = vst.msk [vmem:[%s217 + $0xe8] sm:$0xff] %vm456, %v453
      %487 = vst.msk [vmem:[%s217 + $0xf0] sm:$0xff] %vm456, %v454
      %488 = vst.msk [vmem:[%s217 + $0xf8] sm:$0xff] %vm456, %v455
      %p489 = scmp.lt.s32.totalorder %s15, 1
      %s490 = scalar_select %p489, %s15, 1
      %s491 = smul.addr %s490, 32
      %s492 = smul.addr %s491, 8
      %s493 = scalar_lea.vmem %s4, %s492
      // Predicated region
      $region37: #{basic_block_forward.5} parent=35 // pred_check
        %p494 = pneg %p127
      $region38: #{basic_block_forward.5} parent=35 // pred_check_branch
        %496 = sbr.rel (%p494) target = $region40
      $region39: #{basic_block_forward.5} parent=35 // pred_region
        _
      $region40: #{basic_block_forward.5} parent=35 // pred_fallthru
        _
    $region36: #{basic_block_forward.5} parent=5 // pred_fallthru
      _
    %p497 = scmp.le.s32.totalorder 2, %s10
    // Predicated region
    $region41: #{basic_block_forward.5} parent=5 // pred_check
      %p498 = pneg %p497
    $region42: #{basic_block_forward.5} parent=5 // pred_check_branch
      %500 = sbr.rel (%p498) target = $region44
    $region43: #{basic_block_forward.5} parent=5 // pred_region
      %s501 = ssub.s32 %s10, 2
      // Predicated region
      $region45: #{basic_block_forward.5} parent=43 // pred_check
        %p502 = pneg %p133
      $region46: #{basic_block_forward.5} parent=43 // pred_check_branch
        %504 = sbr.rel (%p502) target = $region48
      $region47: #{basic_block_forward.5} parent=43 // pred_region
        %p505 = scmp.lt.s32.totalorder %s16, 1
        %s506 = scalar_select %p505, %s16, 1
        %s507 = smul.addr %s506, 32
        %s508 = smul.addr %s507, 8
        %s509 = scalar_lea.vmem %s4, %s508
      $region48: #{basic_block_forward.5} parent=43 // pred_fallthru
        _
    $region44: #{basic_block_forward.5} parent=5 // pred_fallthru
      _
  $region6: #{basic_block_forward.5} parent=0 // loop_footer
    %s14 = sadd.s32 1, %s10
  $region7: #{basic_block_forward.5} parent=0 // loop_footer_branch
    %9 = sbr.rel target = $region3
  $region8: #{basic_block_forward.5} parent=0 // loop_exit
    _

// kernel: basic_block_forward.4
$region0: #{basic_block_forward.4}
  #allocation0 [shape = 'u32[]', space=smem, size = 0x4, offset = 0x4, fixed_abs, tag = 'smem constant byte address 0x4 - core index']
  #allocation1 [shape = 'u32[144,128]{1,0:T(1,128)}', space=vmem, size = 0x12000, scoped, tag = 'internal scratch']
  %s0 = inlined_call_operand.vmem [shape: bf16[2,16,16,128], index: 0, kind: input, shape index: {}]
  %s1 = inlined_call_operand.vmem [shape: f32[1,128], index: 1, kind: input, shape index: {}]
  %s2 = inlined_call_operand.vmem [shape: f32[1,128], index: 2, kind: input, shape index: {}]
  %s3 = inlined_call_operand.vmem [shape: bf16[72,128], index: 3, kind: input, shape index: {}]
  %s4 = inlined_call_operand.vmem [shape: bf16[2,16,16,128], index: 4, kind: output, shape index: {0}]
  %s5 = inlined_call_operand.vmem [shape: f32[2,2,128], index: 5, kind: output, shape index: {1}]
  %6 = xla_tuple %s4, %s5
  %s7 = sld [smem:[#allocation0]]
  $region57: #{basic_block_forward.4} parent=0
    _
  %s9 = ssub.s32 1, %s7
  %s10 = scalar_select 0, %s9, %s7
  loop: start=0, step=1, limit=4
  $region2: #{basic_block_forward.4} parent=0 // loop_pre_header
    _
  $region3: #{basic_block_forward.4} parent=0 // loop_header
    %s12 = sphi 0, %s16
    %p13 = scmp.ge.s32.totalorder %s12, 4
    %s22 = sphi 0, %s24
    %s25 = sphi 0, %s22
    %s26 = sphi 0, %s25
    %s42 = sphi 0, %s26
    %s46 = sphi 0, %s46
    %s48 = sphi 0, %s46
    %s49 = sphi 0, %s48
    %s63 = sphi 0, %s49
    %s67 = sphi 0, %s67
    %s69 = sphi 0, %s67
    %s70 = sphi 0, %s69
    %s84 = sphi 0, %s70
    %s88 = sphi 0, %s88
    %s90 = sphi 0, %s88
    %s91 = sphi 0, %s90
    %s105 = sphi 0, %s91
    %s111 = sphi 0, %s113
    %s114 = sphi 0, %s111
    %s115 = sphi 0, %s114
    %s131 = sphi 0, %s115
    %s137 = sphi 0, %s139
    %s140 = sphi 0, %s137
    %s141 = sphi 0, %s140
    %s157 = sphi 0, %s141
  $region4: #{basic_block_forward.4} parent=0 // loop_header_branch
    %15 = sbr.rel (%p13) target = $region8
  $region5: #{basic_block_forward.4} parent=0 // loop_body
    %s17 = ssub.s32 %s12, 1
    %s18 = ssub.s32 %s12, 2
    %s19 = sadd.s32 %s12, 1
    %s20 = ssub.s32 %s12, %s19
    %p21 = scmp.eq.s32.totalorder %s20, 0
    %s23 = sadd.s32 %s22, 1
    %s24 = scalar_select %p21, %s22, %s23
    %p27 = pneg %p21
    %p28 = scmp.eq.s32.totalorder %s12, 1
    %p29 = por %p27, %p28
    %p30 = scmp.ne.s32.totalorder %s22, %s25
    %p31 = scmp.eq.s32.totalorder %s12, 0
    %p32 = por %p30, %p31
    %p33 = scmp.ne.s32.totalorder %s22, %s25
    %p34 = scmp.eq.s32.totalorder %s17, 1
    %p35 = por %p33, %p34
    %p36 = scmp.ne.s32.totalorder %s25, %s26
    %p37 = scmp.eq.s32.totalorder %s17, 0
    %p38 = por %p36, %p37
    %p39 = scmp.ne.s32.totalorder %s25, %s26
    %p40 = scmp.eq.s32.totalorder %s18, 1
    %p41 = por %p39, %p40
    %p43 = scmp.ne.s32.totalorder %s26, %s42
    %p44 = scmp.eq.s32.totalorder %s18, 0
    %p45 = por %p43, %p44
    %s47 = sadd.s32 %s46, 1
    %p50 = scmp.eq.s32.totalorder %s12, 1
    %p51 = scmp.ne.s32.totalorder %s46, %s48
    %p52 = scmp.eq.s32.totalorder %s12, 0
    %p53 = por %p51, %p52
    %p54 = scmp.ne.s32.totalorder %s46, %s48
    %p55 = scmp.eq.s32.totalorder %s17, 1
    %p56 = por %p54, %p55
    %p57 = scmp.ne.s32.totalorder %s48, %s49
    %p58 = scmp.eq.s32.totalorder %s17, 0
    %p59 = por %p57, %p58
    %p60 = scmp.ne.s32.totalorder %s48, %s49
    %p61 = scmp.eq.s32.totalorder %s18, 1
    %p62 = por %p60, %p61
    %p64 = scmp.ne.s32.totalorder %s49, %s63
    %p65 = scmp.eq.s32.totalorder %s18, 0
    %p66 = por %p64, %p65
    %s68 = sadd.s32 %s67, 1
    %p71 = scmp.eq.s32.totalorder %s12, 1
    %p72 = scmp.ne.s32.totalorder %s67, %s69
    %p73 = scmp.eq.s32.totalorder %s12, 0
    %p74 = por %p72, %p73
    %p75 = scmp.ne.s32.totalorder %s67, %s69
    %p76 = scmp.eq.s32.totalorder %s17, 1
    %p77 = por %p75, %p76
    %p78 = scmp.ne.s32.totalorder %s69, %s70
    %p79 = scmp.eq.s32.totalorder %s17, 0
    %p80 = por %p78, %p79
    %p81 = scmp.ne.s32.totalorder %s69, %s70
    %p82 = scmp.eq.s32.totalorder %s18, 1
    %p83 = por %p81, %p82
    %p85 = scmp.ne.s32.totalorder %s70, %s84
    %p86 = scmp.eq.s32.totalorder %s18, 0
    %p87 = por %p85, %p86
    %s89 = sadd.s32 %s88, 1
    %p92 = scmp.eq.s32.totalorder %s12, 1
    %p93 = scmp.ne.s32.totalorder %s88, %s90
    %p94 = scmp.eq.s32.totalorder %s12, 0
    %p95 = por %p93, %p94
    %p96 = scmp.ne.s32.totalorder %s88, %s90
    %p97 = scmp.eq.s32.totalorder %s17, 1
    %p98 = por %p96, %p97
    %p99 = scmp.ne.s32.totalorder %s90, %s91
    %p100 = scmp.eq.s32.totalorder %s17, 0
    %p101 = por %p99, %p100
    %p102 = scmp.ne.s32.totalorder %s90, %s91
    %p103 = scmp.eq.s32.totalorder %s18, 1
    %p104 = por %p102, %p103
    %p106 = scmp.ne.s32.totalorder %s91, %s105
    %p107 = scmp.eq.s32.totalorder %s18, 0
    %p108 = por %p106, %p107
    %s109 = ssub.s32 %s12, %s19
    %p110 = scmp.eq.s32.totalorder %s109, 0
    %s112 = sadd.s32 %s111, 1
    %s113 = scalar_select %p110, %s111, %s112
    %p116 = pneg %p110
    %p117 = scmp.eq.s32.totalorder %s12, 1
    %p118 = por %p116, %p117
    %p119 = scmp.ne.s32.totalorder %s111, %s114
    %p120 = scmp.eq.s32.totalorder %s12, 0
    %p121 = por %p119, %p120
    %p122 = scmp.ne.s32.totalorder %s111, %s114
    %p123 = scmp.eq.s32.totalorder %s17, 1
    %p124 = por %p122, %p123
    %p125 = scmp.ne.s32.totalorder %s114, %s115
    %p126 = scmp.eq.s32.totalorder %s17, 0
    %p127 = por %p125, %p126
    %p128 = scmp.ne.s32.totalorder %s114, %s115
    %p129 = scmp.eq.s32.totalorder %s18, 1
    %p130 = por %p128, %p129
    %p132 = scmp.ne.s32.totalorder %s115, %s131
    %p133 = scmp.eq.s32.totalorder %s18, 0
    %p134 = por %p132, %p133
    %s135 = ssub.s32 %s12, %s19
    %p136 = scmp.eq.s32.totalorder %s135, 0
    %s138 = sadd.s32 %s137, 1
    %s139 = scalar_select %p136, %s137, %s138
    %p142 = pneg %p136
    %p143 = scmp.eq.s32.totalorder %s12, 1
    %p144 = por %p142, %p143
    %p145 = scmp.ne.s32.totalorder %s137, %s140
    %p146 = scmp.eq.s32.totalorder %s12, 0
    %p147 = por %p145, %p146
    %p148 = scmp.ne.s32.totalorder %s137, %s140
    %p149 = scmp.eq.s32.totalorder %s17, 1
    %p150 = por %p148, %p149
    %p151 = scmp.ne.s32.totalorder %s140, %s141
    %p152 = scmp.eq.s32.totalorder %s17, 0
    %p153 = por %p151, %p152
    %p154 = scmp.ne.s32.totalorder %s140, %s141
    %p155 = scmp.eq.s32.totalorder %s18, 1
    %p156 = por %p154, %p155
    %p158 = scmp.ne.s32.totalorder %s141, %s157
    %p159 = scmp.eq.s32.totalorder %s18, 0
    %p160 = por %p158, %p159
    %p161 = scmp.le.s32.totalorder 1, %s12
    %p162 = scmp.lt.s32.totalorder %s12, 3
    %p163 = pnand %p161, %p162
    %p164 = pneg %p163
    // Predicated region
    $region9: #{basic_block_forward.4} parent=5 // pred_check
      _
    $region10: #{basic_block_forward.4} parent=5 // pred_check_branch
      %166 = sbr.rel (%p163) target = $region12
    $region11: #{basic_block_forward.4} parent=5 // pred_region
      %s167 = ssub.s32 %s12, 1
      // Predicated region
      $region13: #{basic_block_forward.4} parent=11 // pred_check
        %p168 = pneg %p59
      $region14: #{basic_block_forward.4} parent=11 // pred_check_branch
        %170 = sbr.rel (%p168) target = $region16
      $region15: #{basic_block_forward.4} parent=11 // pred_region
        _
      $region16: #{basic_block_forward.4} parent=11 // pred_fallthru
        _
      // Predicated region
      $region17: #{basic_block_forward.4} parent=11 // pred_check
        %p171 = pneg %p80
      $region18: #{basic_block_forward.4} parent=11 // pred_check_branch
        %173 = sbr.rel (%p171) target = $region20
      $region19: #{basic_block_forward.4} parent=11 // pred_region
        _
      $region20: #{basic_block_forward.4} parent=11 // pred_fallthru
        _
      // Predicated region
      $region21: #{basic_block_forward.4} parent=11 // pred_check
        %p174 = pneg %p101
      $region22: #{basic_block_forward.4} parent=11 // pred_check_branch
        %176 = sbr.rel (%p174) target = $region24
      $region23: #{basic_block_forward.4} parent=11 // pred_region
        _
      $region24: #{basic_block_forward.4} parent=11 // pred_fallthru
        _
    $region12: #{basic_block_forward.4} parent=5 // pred_fallthru
      _
    %p177 = scmp.lt.s32.totalorder %s12, 2
    // Predicated region
    $region25: #{basic_block_forward.4} parent=5 // pred_check
      %p178 = pneg %p177
    $region26: #{basic_block_forward.4} parent=5 // pred_check_branch
      %180 = sbr.rel (%p178) target = $region28
    $region27: #{basic_block_forward.4} parent=5 // pred_region
      // Predicated region
      $region29: #{basic_block_forward.4} parent=27 // pred_check
        %p181 = pneg %p32
      $region30: #{basic_block_forward.4} parent=27 // pred_check_branch
        %183 = sbr.rel (%p181) target = $region32
      $region31: #{basic_block_forward.4} parent=27 // pred_region
        %p184 = scmp.lt.s32.totalorder %s12, 1
        %s185 = scalar_select %p184, %s12, 1
        %s186 = smul.addr %s185, 32
        %s187 = smul.addr %s186, 4
        %s188 = scalar_lea.vmem %s0, %s187
      $region32: #{basic_block_forward.4} parent=27 // pred_fallthru
        _
    $region28: #{basic_block_forward.4} parent=5 // pred_fallthru
      _
    %p189 = scmp.le.s32.totalorder 1, %s12
    %p190 = scmp.lt.s32.totalorder %s12, 3
    %p191 = pnand %p189, %p190
    %p192 = pneg %p191
    // Predicated region
    $region33: #{basic_block_forward.4} parent=5 // pred_check
      _
    $region34: #{basic_block_forward.4} parent=5 // pred_check_branch
      %194 = sbr.rel (%p191) target = $region36
    $region35: #{basic_block_forward.4} parent=5 // pred_region
      %s195 = ssub.s32 %s12, 1
      %p196 = scmp.lt.s32.totalorder %s17, 1
      %s197 = scalar_select %p196, %s17, 1
      %s198 = smul.addr %s197, 32
      %s199 = smul.addr %s198, 4
      %s200 = scalar_lea.vmem %s0, %s199
      %p201 = pneg %p38
      %p202 = pneg %p35
      %p203 = pneg %p59
      %p204 = pneg %p56
      %p205 = pneg %p80
      %p206 = pneg %p77
      %p207 = pneg %p101
      %p208 = pneg %p98
      %p209 = pneg %p127
      %p210 = pneg %p124
      %p211 = scmp.lt.s32.totalorder %s17, 1
      %s212 = scalar_select %p211, %s17, 1
      %s213 = smul.addr %s212, 32
      %s214 = smul.addr %s213, 4
      %s215 = scalar_lea.vmem %s4, %s214
      %p216 = pneg %p153
      %p217 = pneg %p150
      %p218 = scmp.lt.s32.totalorder %s17, 1
      %s219 = scalar_select %p218, %s17, 1
      %s220 = smul.addr %s219, 2
      %s221 = scalar_lea.vmem %s5, %s220
      %p222 = scmp.lt.s32.totalorder %s17, 1
      %s223 = scalar_select %p222, %s17, 1
      %s224 = smul.addr %s223, 32
      %s225 = smul.addr %s224, 4
      %s226 = scalar_lea.vmem %s0, %s225
      %p227 = scmp.lt.s32.totalorder %s17, 1
      %s228 = scalar_select %p227, %s17, 1
      %s229 = smul.addr %s228, 32
      %s230 = smul.addr %s229, 4
      %s231 = scalar_lea.vmem %s4, %s230
      %p232 = scmp.lt.s32.totalorder %s17, 1
      %s233 = scalar_select %p232, %s17, 1
      %s234 = smul.addr %s233, 2
      %s235 = scalar_lea.vmem %s5, %s234
      %v237 = vld [vmem:[%s1] sm:$0x1]
      %v238 = vld [vmem:[%s2] sm:$0x1]
      %v239 = vld [vmem:[%s226] sm:$0xf]
      %v240 = vld [vmem:[%s226 + $0x4] sm:$0xf]
      %v241 = vld [vmem:[%s226 + $0x8] sm:$0xf]
      %v242 = vld [vmem:[%s226 + $0xc] sm:$0xf]
      %v243 = vld [vmem:[%s226 + $0x10] sm:$0xf]
      %v244 = vld [vmem:[%s226 + $0x14] sm:$0xf]
      %v245 = vld [vmem:[%s226 + $0x18] sm:$0xf]
      %v246 = vld [vmem:[%s226 + $0x1c] sm:$0xf]
      %v247 = vld [vmem:[%s226 + $0x20] sm:$0xf]
      %v248 = vld [vmem:[%s226 + $0x24] sm:$0xf]
      %v249 = vld [vmem:[%s226 + $0x28] sm:$0xf]
      %v250 = vld [vmem:[%s226 + $0x2c] sm:$0xf]
      %v251 = vld [vmem:[%s226 + $0x30] sm:$0xf]
      %v252 = vld [vmem:[%s226 + $0x34] sm:$0xf]
      %v253 = vld [vmem:[%s226 + $0x38] sm:$0xf]
      %v254 = vld [vmem:[%s226 + $0x3c] sm:$0xf]
      %v255 = vld [vmem:[%s226 + $0x40] sm:$0xf]
      %v256 = vld [vmem:[%s226 + $0x44] sm:$0xf]
      %v257 = vld [vmem:[%s226 + $0x48] sm:$0xf]
      %v258 = vld [vmem:[%s226 + $0x4c] sm:$0xf]
      %v259 = vld [vmem:[%s226 + $0x50] sm:$0xf]
      %v260 = vld [vmem:[%s226 + $0x54] sm:$0xf]
      %v261 = vld [vmem:[%s226 + $0x58] sm:$0xf]
      %v262 = vld [vmem:[%s226 + $0x5c] sm:$0xf]
      %v263 = vld [vmem:[%s226 + $0x60] sm:$0xf]
      %v264 = vld [vmem:[%s226 + $0x64] sm:$0xf]
      %v265 = vld [vmem:[%s226 + $0x68] sm:$0xf]
      %v266 = vld [vmem:[%s226 + $0x6c] sm:$0xf]
      %v267 = vld [vmem:[%s226 + $0x70] sm:$0xf]
      %v268 = vld [vmem:[%s226 + $0x74] sm:$0xf]
      %v269 = vld [vmem:[%s226 + $0x78] sm:$0xf]
      %v270 = vld [vmem:[%s226 + $0x7c] sm:$0xf]
      %v271 = vunpack.c.l.bf16 %v239
      %v272 = vunpack.c.l.bf16 %v240
      %v273 = vunpack.c.l.bf16 %v241
      %v274 = vunpack.c.l.bf16 %v242
      %v275 = vunpack.c.l.bf16 %v243
      %v276 = vunpack.c.l.bf16 %v244
      %v277 = vunpack.c.l.bf16 %v245
      %v278 = vunpack.c.l.bf16 %v246
      %v279 = vunpack.c.l.bf16 %v247
      %v280 = vunpack.c.l.bf16 %v248
      %v281 = vunpack.c.l.bf16 %v249
      %v282 = vunpack.c.l.bf16 %v250
      %v283 = vunpack.c.l.bf16 %v251
      %v284 = vunpack.c.l.bf16 %v252
      %v285 = vunpack.c.l.bf16 %v253
      %v286 = vunpack.c.l.bf16 %v254
      %v287 = vunpack.c.l.bf16 %v255
      %v288 = vunpack.c.l.bf16 %v256
      %v289 = vunpack.c.l.bf16 %v257
      %v290 = vunpack.c.l.bf16 %v258
      %v291 = vunpack.c.l.bf16 %v259
      %v292 = vunpack.c.l.bf16 %v260
      %v293 = vunpack.c.l.bf16 %v261
      %v294 = vunpack.c.l.bf16 %v262
      %v295 = vunpack.c.l.bf16 %v263
      %v296 = vunpack.c.l.bf16 %v264
      %v297 = vunpack.c.l.bf16 %v265
      %v298 = vunpack.c.l.bf16 %v266
      %v299 = vunpack.c.l.bf16 %v267
      %v300 = vunpack.c.l.bf16 %v268
      %v301 = vunpack.c.l.bf16 %v269
      %v302 = vunpack.c.l.bf16 %v270
      %v304 = vlaneseq
      %v305 = vshrl.u32 %v304, 7
      %v306 = vsub.s32 0, %v305
      %v307 = vrot.slane %v237, %v306
      %v309 = vmul.f32 %v271, %v307
      %v310 = vmul.f32 %v272, %v307
      %v311 = vmul.f32 %v273, %v307
      %v312 = vmul.f32 %v274, %v307
      %v313 = vmul.f32 %v275, %v307
      %v314 = vmul.f32 %v276, %v307
      %v315 = vmul.f32 %v277, %v307
      %v316 = vmul.f32 %v278, %v307
      %v317 = vmul.f32 %v279, %v307
      %v318 = vmul.f32 %v280, %v307
      %v319 = vmul.f32 %v281, %v307
      %v320 = vmul.f32 %v282, %v307
      %v321 = vmul.f32 %v283, %v307
      %v322 = vmul.f32 %v284, %v307
      %v323 = vmul.f32 %v285, %v307
      %v324 = vmul.f32 %v286, %v307
      %v325 = vmul.f32 %v287, %v307
      %v326 = vmul.f32 %v288, %v307
      %v327 = vmul.f32 %v289, %v307
      %v328 = vmul.f32 %v290, %v307
      %v329 = vmul.f32 %v291, %v307
      %v330 = vmul.f32 %v292, %v307
      %v331 = vmul.f32 %v293, %v307
      %v332 = vmul.f32 %v294, %v307
      %v333 = vmul.f32 %v295, %v307
      %v334 = vmul.f32 %v296, %v307
      %v335 = vmul.f32 %v297, %v307
      %v336 = vmul.f32 %v298, %v307
      %v337 = vmul.f32 %v299, %v307
      %v338 = vmul.f32 %v300, %v307
      %v339 = vmul.f32 %v301, %v307
      %v340 = vmul.f32 %v302, %v307
      %v342 = vlaneseq
      %v343 = vshrl.u32 %v342, 7
      %v344 = vsub.s32 0, %v343
      %v345 = vrot.slane %v238, %v344
      %v347 = vadd.f32 %v309, %v345
      %v348 = vadd.f32 %v310, %v345
      %v349 = vadd.f32 %v311, %v345
      %v350 = vadd.f32 %v312, %v345
      %v351 = vadd.f32 %v313, %v345
      %v352 = vadd.f32 %v314, %v345
      %v353 = vadd.f32 %v315, %v345
      %v354 = vadd.f32 %v316, %v345
      %v355 = vadd.f32 %v317, %v345
      %v356 = vadd.f32 %v318, %v345
      %v357 = vadd.f32 %v319, %v345
      %v358 = vadd.f32 %v320, %v345
      %v359 = vadd.f32 %v321, %v345
      %v360 = vadd.f32 %v322, %v345
      %v361 = vadd.f32 %v323, %v345
      %v362 = vadd.f32 %v324, %v345
      %v363 = vadd.f32 %v325, %v345
      %v364 = vadd.f32 %v326, %v345
      %v365 = vadd.f32 %v327, %v345
      %v366 = vadd.f32 %v328, %v345
      %v367 = vadd.f32 %v329, %v345
      %v368 = vadd.f32 %v330, %v345
      %v369 = vadd.f32 %v331, %v345
      %v370 = vadd.f32 %v332, %v345
      %v371 = vadd.f32 %v333, %v345
      %v372 = vadd.f32 %v334, %v345
      %v373 = vadd.f32 %v335, %v345
      %v374 = vadd.f32 %v336, %v345
      %v375 = vadd.f32 %v337, %v345
      %v376 = vadd.f32 %v338, %v345
      %v377 = vadd.f32 %v339, %v345
      %v378 = vadd.f32 %v340, %v345
      %v379 = vmax.f32 %v347, 0.0
      %v380 = vmax.f32 %v348, 0.0
      %v381 = vmax.f32 %v349, 0.0
      %v382 = vmax.f32 %v350, 0.0
      %v383 = vmax.f32 %v351, 0.0
      %v384 = vmax.f32 %v352, 0.0
      %v385 = vmax.f32 %v353, 0.0
      %v386 = vmax.f32 %v354, 0.0
      %v387 = vmax.f32 %v355, 0.0
      %v388 = vmax.f32 %v356, 0.0
      %v389 = vmax.f32 %v357, 0.0
      %v390 = vmax.f32 %v358, 0.0
      %v391 = vmax.f32 %v359, 0.0
      %v392 = vmax.f32 %v360, 0.0
      %v393 = vmax.f32 %v361, 0.0
      %v394 = vmax.f32 %v362, 0.0
      %v395 = vmax.f32 %v363, 0.0
      %v396 = vmax.f32 %v364, 0.0
      %v397 = vmax.f32 %v365, 0.0
      %v398 = vmax.f32 %v366, 0.0
      %v399 = vmax.f32 %v367, 0.0
      %v400 = vmax.f32 %v368, 0.0
      %v401 = vmax.f32 %v369, 0.0
      %v402 = vmax.f32 %v370, 0.0
      %v403 = vmax.f32 %v371, 0.0
      %v404 = vmax.f32 %v372, 0.0
      %v405 = vmax.f32 %v373, 0.0
      %v406 = vmax.f32 %v374, 0.0
      %v407 = vmax.f32 %v375, 0.0
      %v408 = vmax.f32 %v376, 0.0
      %v409 = vmax.f32 %v377, 0.0
      %v410 = vmax.f32 %v378, 0.0
      %vm444 = vcmask 1040384
      %v445 = vrot.slane 0.0, 7
      %v446 = vsel %vm444, %v445, %v445
      %v447 = vrot.slane %v379, 7
      %v448 = vrot.slane %v380, 7
      %v449 = vsel %vm444, %v447, %v448
      %v450 = vrot.slane %v381, 7
      %v451 = vrot.slane %v382, 7
      %v452 = vsel %vm444, %v450, %v451
      %v453 = vrot.slane %v383, 7
      %v454 = vrot.slane %v384, 7
      %v455 = vsel %vm444, %v453, %v454
      %v456 = vrot.slane %v385, 7
      %v457 = vrot.slane %v386, 7
      %v458 = vsel %vm444, %v456, %v457
      %v459 = vrot.slane %v387, 7
      %v460 = vrot.slane %v388, 7
      %v461 = vsel %vm444, %v459, %v460
      %v462 = vrot.slane %v389, 7
      %v463 = vrot.slane %v390, 7
      %v464 = vsel %vm444, %v462, %v463
      %v465 = vrot.slane %v391, 7
      %v466 = vrot.slane %v392, 7
      %v467 = vsel %vm444, %v465, %v466
      %v468 = vrot.slane %v393, 7
      %v469 = vrot.slane %v394, 7
      %v470 = vsel %vm444, %v468, %v469
      %v471 = vrot.slane %v395, 7
      %v472 = vrot.slane %v396, 7
      %v473 = vsel %vm444, %v471, %v472
      %v474 = vrot.slane %v397, 7
      %v475 = vrot.slane %v398, 7
      %v476 = vsel %vm444, %v474, %v475
      %v477 = vrot.slane %v399, 7
      %v478 = vrot.slane %v400, 7
      %v479 = vsel %vm444, %v477, %v478
      %v480 = vrot.slane %v401, 7
      %v481 = vrot.slane %v402, 7
      %v482 = vsel %vm444, %v480, %v481
      %v483 = vrot.slane %v403, 7
      %v484 = vrot.slane %v404, 7
      %v485 = vsel %vm444, %v483, %v484
      %v486 = vrot.slane %v405, 7
      %v487 = vrot.slane %v406, 7
      %v488 = vsel %vm444, %v486, %v487
      %v489 = vrot.slane %v407, 7
      %v490 = vrot.slane %v408, 7
      %v491 = vsel %vm444, %v489, %v490
      %v492 = vrot.slane %v409, 7
      %v493 = vrot.slane %v410, 7
      %v494 = vsel %vm444, %v492, %v493
      %v544 = vsel %vm444, 0.0, %v445
      %v545 = vsel %vm444, 0.0, %v447
      %v546 = vsel %vm444, 0.0, %v450
      %v547 = vsel %vm444, 0.0, %v453
      %v548 = vsel %vm444, 0.0, %v456
      %v549 = vsel %vm444, 0.0, %v459
      %v550 = vsel %vm444, 0.0, %v462
      %v551 = vsel %vm444, 0.0, %v465
      %v552 = vsel %vm444, 0.0, %v468
      %v553 = vsel %vm444, 0.0, %v471
      %v554 = vsel %vm444, 0.0, %v474
      %v555 = vsel %vm444, 0.0, %v477
      %v556 = vsel %vm444, 0.0, %v480
      %v557 = vsel %vm444, 0.0, %v483
      %v558 = vsel %vm444, 0.0, %v486
      %v559 = vsel %vm444, 0.0, %v489
      %v560 = vsel %vm444, 0.0, %v492
      %v561 = vsel %vm444, %v445, 0.0
      %v562 = vsel %vm444, %v448, 0.0
      %v563 = vsel %vm444, %v451, 0.0
      %v564 = vsel %vm444, %v454, 0.0
      %v565 = vsel %vm444, %v457, 0.0
      %v566 = vsel %vm444, %v460, 0.0
      %v567 = vsel %vm444, %v463, 0.0
      %v568 = vsel %vm444, %v466, 0.0
      %v569 = vsel %vm444, %v469, 0.0
      %v570 = vsel %vm444, %v472, 0.0
      %v571 = vsel %vm444, %v475, 0.0
      %v572 = vsel %vm444, %v478, 0.0
      %v573 = vsel %vm444, %v481, 0.0
      %v574 = vsel %vm444, %v484, 0.0
      %v575 = vsel %vm444, %v487, 0.0
      %v576 = vsel %vm444, %v490, 0.0
      %v577 = vsel %vm444, %v493, 0.0
      %vm610 = vcmask 1046528
      %v611 = vrot.slane %v544, 1
      %v612 = vrot.slane %v446, 1
      %v613 = vsel %vm610, %v611, %v612
      %v614 = vrot.slane %v561, 1
      %v615 = vsel %vm610, %v612, %v614
      %v616 = vrot.slane %v545, 1
      %v617 = vrot.slane %v449, 1
      %v618 = vsel %vm610, %v616, %v617
      %v619 = vrot.slane %v562, 1
      %v620 = vsel %vm610, %v617, %v619
      %v621 = vrot.slane %v546, 1
      %v622 = vrot.slane %v452, 1
      %v623 = vsel %vm610, %v621, %v622
      %v624 = vrot.slane %v563, 1
      %v625 = vsel %vm610, %v622, %v624
      %v626 = vrot.slane %v547, 1
      %v627 = vrot.slane %v455, 1
      %v628 = vsel %vm610, %v626, %v627
      %v629 = vrot.slane %v564, 1
      %v630 = vsel %vm610, %v627, %v629
      %v631 = vrot.slane %v548, 1
      %v632 = vrot.slane %v458, 1
      %v633 = vsel %vm610, %v631, %v632
      %v634 = vrot.slane %v565, 1
      %v635 = vsel %vm610, %v632, %v634
      %v636 = vrot.slane %v549, 1
      %v637 = vrot.slane %v461, 1
      %v638 = vsel %vm610, %v636, %v637
      %v639 = vrot.slane %v566, 1
      %v640 = vsel %vm610, %v637, %v639
      %v641 = vrot.slane %v550, 1
      %v642 = vrot.slane %v464, 1
      %v643 = vsel %vm610, %v641, %v642
      %v644 = vrot.slane %v567, 1
      %v645 = vsel %vm610, %v642, %v644
      %v646 = vrot.slane %v551, 1
      %v647 = vrot.slane %v467, 1
      %v648 = vsel %vm610, %v646, %v647
      %v649 = vrot.slane %v568, 1
      %v650 = vsel %vm610, %v647, %v649
      %v651 = vrot.slane %v552, 1
      %v652 = vrot.slane %v470, 1
      %v653 = vsel %vm610, %v651, %v652
      %v654 = vrot.slane %v569, 1
      %v655 = vsel %vm610, %v652, %v654
      %v656 = vrot.slane %v553, 1
      %v657 = vrot.slane %v473, 1
      %v658 = vsel %vm610, %v656, %v657
      %v659 = vrot.slane %v570, 1
      %v660 = vsel %vm610, %v657, %v659
      %v661 = vrot.slane %v554, 1
      %v662 = vrot.slane %v476, 1
      %v663 = vsel %vm610, %v661, %v662
      %v664 = vrot.slane %v571, 1
      %v665 = vsel %vm610, %v662, %v664
      %v666 = vrot.slane %v555, 1
      %v667 = vrot.slane %v479, 1
      %v668 = vsel %vm610, %v666, %v667
      %v669 = vrot.slane %v572, 1
      %v670 = vsel %vm610, %v667, %v669
      %v671 = vrot.slane %v556, 1
      %v672 = vrot.slane %v482, 1
      %v673 = vsel %vm610, %v671, %v672
      %v674 = vrot.slane %v573, 1
      %v675 = vsel %vm610, %v672, %v674
      %v676 = vrot.slane %v557, 1
      %v677 = vrot.slane %v485, 1
      %v678 = vsel %vm610, %v676, %v677
      %v679 = vrot.slane %v574, 1
      %v680 = vsel %vm610, %v677, %v679
      %v681 = vrot.slane %v558, 1
      %v682 = vrot.slane %v488, 1
      %v683 = vsel %vm610, %v681, %v682
      %v684 = vrot.slane %v575, 1
      %v685 = vsel %vm610, %v682, %v684
      %v686 = vrot.slane %v559, 1
      %v687 = vrot.slane %v491, 1
      %v688 = vsel %vm610, %v686, %v687
      %v689 = vrot.slane %v576, 1
      %v690 = vsel %vm610, %v687, %v689
      %691 = vrot.lane.b32.xlu0 %v613, 8
      %v692 = vpop.permute.xlu0 %691
      %693 = vrot.lane.b32.xlu0 %v615, 8
      %v694 = vpop.permute.xlu0 %693
      %695 = vrot.lane.b32.xlu0 %v618, 8
      %v696 = vpop.permute.xlu0 %695
      %697 = vrot.lane.b32.xlu0 %v620, 8
      %v698 = vpop.permute.xlu0 %697
      %699 = vrot.lane.b32.xlu0 %v623, 8
      %v700 = vpop.permute.xlu0 %699
      %701 = vrot.lane.b32.xlu0 %v625, 8
      %v702 = vpop.permute.xlu0 %701
      %703 = vrot.lane.b32.xlu0 %v628, 8
      %v704 = vpop.permute.xlu0 %703
      %705 = vrot.lane.b32.xlu0 %v630, 8
      %v706 = vpop.permute.xlu0 %705
      %707 = vrot.lane.b32.xlu0 %v633, 8
      %v708 = vpop.permute.xlu0 %707
      %709 = vrot.lane.b32.xlu0 %v635, 8
      %v710 = vpop.permute.xlu0 %709
      %711 = vrot.lane.b32.xlu0 %v638, 8
      %v712 = vpop.permute.xlu0 %711
      %713 = vrot.lane.b32.xlu0 %v640, 8
      %v714 = vpop.permute.xlu0 %713
      %715 = vrot.lane.b32.xlu0 %v643, 8
      %v716 = vpop.permute.xlu0 %715
      %717 = vrot.lane.b32.xlu0 %v645, 8
      %v718 = vpop.permute.xlu0 %717
      %719 = vrot.lane.b32.xlu0 %v648, 8
      %v720 = vpop.permute.xlu0 %719
      %721 = vrot.lane.b32.xlu0 %v650, 8
      %v722 = vpop.permute.xlu0 %721
      %723 = vrot.lane.b32.xlu0 %v653, 8
      %v724 = vpop.permute.xlu0 %723
      %725 = vrot.lane.b32.xlu0 %v655, 8
      %v726 = vpop.permute.xlu0 %725
      %727 = vrot.lane.b32.xlu0 %v658, 8
      %v728 = vpop.permute.xlu0 %727
      %729 = vrot.lane.b32.xlu0 %v660, 8
      %v730 = vpop.permute.xlu0 %729
      %731 = vrot.lane.b32.xlu0 %v663, 8
      %v732 = vpop.permute.xlu0 %731
      %733 = vrot.lane.b32.xlu0 %v665, 8
      %v734 = vpop.permute.xlu0 %733
      %735 = vrot.lane.b32.xlu0 %v668, 8
      %v736 = vpop.permute.xlu0 %735
      %737 = vrot.lane.b32.xlu0 %v670, 8
      %v738 = vpop.permute.xlu0 %737
      %739 = vrot.lane.b32.xlu0 %v673, 8
      %v740 = vpop.permute.xlu0 %739
      %741 = vrot.lane.b32.xlu0 %v675, 8
      %v742 = vpop.permute.xlu0 %741
      %743 = vrot.lane.b32.xlu0 %v678, 8
      %v744 = vpop.permute.xlu0 %743
      %745 = vrot.lane.b32.xlu0 %v680, 8
      %v746 = vpop.permute.xlu0 %745
      %747 = vrot.lane.b32.xlu0 %v683, 8
      %v748 = vpop.permute.xlu0 %747
      %749 = vrot.lane.b32.xlu0 %v685, 8
      %v750 = vpop.permute.xlu0 %749
      %751 = vrot.lane.b32.xlu0 %v688, 8
      %v752 = vpop.permute.xlu0 %751
      %753 = vrot.lane.b32.xlu0 %v690, 8
      %v754 = vpop.permute.xlu0 %753
      %vm787 = vcmask 1045504
      %v788 = vrot.slane %v544, 2
      %v789 = vrot.slane %v446, 2
      %v790 = vsel %vm787, %v788, %v789
      %v791 = vrot.slane %v561, 2
      %v792 = vsel %vm787, %v789, %v791
      %v793 = vrot.slane %v545, 2
      %v794 = vrot.slane %v449, 2
      %v795 = vsel %vm787, %v793, %v794
      %v796 = vrot.slane %v562, 2
      %v797 = vsel %vm787, %v794, %v796
      %v798 = vrot.slane %v546, 2
      %v799 = vrot.slane %v452, 2
      %v800 = vsel %vm787, %v798, %v799
      %v801 = vrot.slane %v563, 2
      %v802 = vsel %vm787, %v799, %v801
      %v803 = vrot.slane %v547, 2
      %v804 = vrot.slane %v455, 2
      %v805 = vsel %vm787, %v803, %v804
      %v806 = vrot.slane %v564, 2
      %v807 = vsel %vm787, %v804, %v806
      %v808 = vrot.slane %v548, 2
      %v809 = vrot.slane %v458, 2
      %v810 = vsel %vm787, %v808, %v809
      %v811 = vrot.slane %v565, 2
      %v812 = vsel %vm787, %v809, %v811
      %v813 = vrot.slane %v549, 2
      %v814 = vrot.slane %v461, 2
      %v815 = vsel %vm787, %v813, %v814
      %v816 = vrot.slane %v566, 2
      %v817 = vsel %vm787, %v814, %v816
      %v818 = vrot.slane %v550, 2
      %v819 = vrot.slane %v464, 2
      %v820 = vsel %vm787, %v818, %v819
      %v821 = vrot.slane %v567, 2
      %v822 = vsel %vm787, %v819, %v821
      %v823 = vrot.slane %v551, 2
      %v824 = vrot.slane %v467, 2
      %v825 = vsel %vm787, %v823, %v824
      %v826 = vrot.slane %v568, 2
      %v827 = vsel %vm787, %v824, %v826
      %v828 = vrot.slane %v552, 2
      %v829 = vrot.slane %v470, 2
      %v830 = vsel %vm787, %v828, %v829
      %v831 = vrot.slane %v569, 2
      %v832 = vsel %vm787, %v829, %v831
      %v833 = vrot.slane %v553, 2
      %v834 = vrot.slane %v473, 2
      %v835 = vsel %vm787, %v833, %v834
      %v836 = vrot.slane %v570, 2
      %v837 = vsel %vm787, %v834, %v836
      %v838 = vrot.slane %v554, 2
      %v839 = vrot.slane %v476, 2
      %v840 = vsel %vm787, %v838, %v839
      %v841 = vrot.slane %v571, 2
      %v842 = vsel %vm787, %v839, %v841
      %v843 = vrot.slane %v555, 2
      %v844 = vrot.slane %v479, 2
      %v845 = vsel %vm787, %v843, %v844
      %v846 = vrot.slane %v572, 2
      %v847 = vsel %vm787, %v844, %v846
      %v848 = vrot.slane %v556, 2
      %v849 = vrot.slane %v482, 2
      %v850 = vsel %vm787, %v848, %v849
      %v851 = vrot.slane %v573, 2
      %v852 = vsel %vm787, %v849, %v851
      %v853 = vrot.slane %v557, 2
      %v854 = vrot.slane %v485, 2
      %v855 = vsel %vm787, %v853, %v854
      %v856 = vrot.slane %v574, 2
      %v857 = vsel %vm787, %v854, %v856
      %v858 = vrot.slane %v558, 2
      %v859 = vrot.slane %v488, 2
      %v860 = vsel %vm787, %v858, %v859
      %v861 = vrot.slane %v575, 2
      %v862 = vsel %vm787, %v859, %v861
      %v863 = vrot.slane %v559, 2
      %v864 = vrot.slane %v491, 2
      %v865 = vsel %vm787, %v863, %v864
      %v866 = vrot.slane %v576, 2
      %v867 = vsel %vm787, %v864, %v866
      %868 = vrot.lane.b32.xlu0 %v790, 16
      %v869 = vpop.permute.xlu0 %868
      %870 = vrot.lane.b32.xlu0 %v792, 16
      %v871 = vpop.permute.xlu0 %870
      %872 = vrot.lane.b32.xlu0 %v795, 16
      %v873 = vpop.permute.xlu0 %872
      %874 = vrot.lane.b32.xlu0 %v797, 16
      %v875 = vpop.permute.xlu0 %874
      %876 = vrot.lane.b32.xlu0 %v800, 16
      %v877 = vpop.permute.xlu0 %876
      %878 = vrot.lane.b32.xlu0 %v802, 16
      %v879 = vpop.permute.xlu0 %878
      %880 = vrot.lane.b32.xlu0 %v805, 16
      %v881 = vpop.permute.xlu0 %880
      %882 = vrot.lane.b32.xlu0 %v807, 16
      %v883 = vpop.permute.xlu0 %882
      %884 = vrot.lane.b32.xlu0 %v810, 16
      %v885 = vpop.permute.xlu0 %884
      %886 = vrot.lane.b32.xlu0 %v812, 16
      %v887 = vpop.permute.xlu0 %886
      %888 = vrot.lane.b32.xlu0 %v815, 16
      %v889 = vpop.permute.xlu0 %888
      %890 = vrot.lane.b32.xlu0 %v817, 16
      %v891 = vpop.permute.xlu0 %890
      %892 = vrot.lane.b32.xlu0 %v820, 16
      %v893 = vpop.permute.xlu0 %892
      %894 = vrot.lane.b32.xlu0 %v822, 16
      %v895 = vpop.permute.xlu0 %894
      %896 = vrot.lane.b32.xlu0 %v825, 16
      %v897 = vpop.permute.xlu0 %896
      %898 = vrot.lane.b32.xlu0 %v827, 16
      %v899 = vpop.permute.xlu0 %898
      %900 = vrot.lane.b32.xlu0 %v830, 16
      %v901 = vpop.permute.xlu0 %900
      %902 = vrot.lane.b32.xlu0 %v832, 16
      %v903 = vpop.permute.xlu0 %902
      %904 = vrot.lane.b32.xlu0 %v835, 16
      %v905 = vpop.permute.xlu0 %904
      %906 = vrot.lane.b32.xlu0 %v837, 16
      %v907 = vpop.permute.xlu0 %906
      %908 = vrot.lane.b32.xlu0 %v840, 16
      %v909 = vpop.permute.xlu0 %908
      %910 = vrot.lane.b32.xlu0 %v842, 16
      %v911 = vpop.permute.xlu0 %910
      %912 = vrot.lane.b32.xlu0 %v845, 16
      %v913 = vpop.permute.xlu0 %912
      %914 = vrot.lane.b32.xlu0 %v847, 16
      %v915 = vpop.permute.xlu0 %914
      %916 = vrot.lane.b32.xlu0 %v850, 16
      %v917 = vpop.permute.xlu0 %916
      %918 = vrot.lane.b32.xlu0 %v852, 16
      %v919 = vpop.permute.xlu0 %918
      %920 = vrot.lane.b32.xlu0 %v855, 16
      %v921 = vpop.permute.xlu0 %920
      %922 = vrot.lane.b32.xlu0 %v857, 16
      %v923 = vpop.permute.xlu0 %922
      %924 = vrot.lane.b32.xlu0 %v860, 16
      %v925 = vpop.permute.xlu0 %924
      %926 = vrot.lane.b32.xlu0 %v862, 16
      %v927 = vpop.permute.xlu0 %926
      %928 = vrot.lane.b32.xlu0 %v865, 16
      %v929 = vpop.permute.xlu0 %928
      %930 = vrot.lane.b32.xlu0 %v867, 16
      %v931 = vpop.permute.xlu0 %930
      %965 = vrot.lane.b32.xlu0 %v545, 24
      %v966 = vpop.permute.xlu0 %965
      %967 = vrot.lane.b32.xlu0 %v449, 24
      %v968 = vpop.permute.xlu0 %967
      %969 = vrot.lane.b32.xlu0 %v546, 24
      %v970 = vpop.permute.xlu0 %969
      %971 = vrot.lane.b32.xlu0 %v452, 24
      %v972 = vpop.permute.xlu0 %971
      %973 = vrot.lane.b32.xlu0 %v547, 24
      %v974 = vpop.permute.xlu0 %973
      %975 = vrot.lane.b32.xlu0 %v455, 24
      %v976 = vpop.permute.xlu0 %975
      %977 = vrot.lane.b32.xlu0 %v548, 24
      %v978 = vpop.permute.xlu0 %977
      %979 = vrot.lane.b32.xlu0 %v458, 24
      %v980 = vpop.permute.xlu0 %979
      %981 = vrot.lane.b32.xlu0 %v549, 24
      %v982 = vpop.permute.xlu0 %981
      %983 = vrot.lane.b32.xlu0 %v461, 24
      %v984 = vpop.permute.xlu0 %983
      %985 = vrot.lane.b32.xlu0 %v550, 24
      %v986 = vpop.permute.xlu0 %985
      %987 = vrot.lane.b32.xlu0 %v464, 24
      %v988 = vpop.permute.xlu0 %987
      %989 = vrot.lane.b32.xlu0 %v551, 24
      %v990 = vpop.permute.xlu0 %989
      %991 = vrot.lane.b32.xlu0 %v467, 24
      %v992 = vpop.permute.xlu0 %991
      %993 = vrot.lane.b32.xlu0 %v552, 24
      %v994 = vpop.permute.xlu0 %993
      %995 = vrot.lane.b32.xlu0 %v470, 24
      %v996 = vpop.permute.xlu0 %995
      %997 = vrot.lane.b32.xlu0 %v553, 24
      %v998 = vpop.permute.xlu0 %997
      %999 = vrot.lane.b32.xlu0 %v473, 24
      %v1000 = vpop.permute.xlu0 %999
      %1001 = vrot.lane.b32.xlu0 %v554, 24
      %v1002 = vpop.permute.xlu0 %1001
      %1003 = vrot.lane.b32.xlu0 %v476, 24
      %v1004 = vpop.permute.xlu0 %1003
      %1005 = vrot.lane.b32.xlu0 %v555, 24
      %v1006 = vpop.permute.xlu0 %1005
      %1007 = vrot.lane.b32.xlu0 %v479, 24
      %v1008 = vpop.permute.xlu0 %1007
      %1009 = vrot.lane.b32.xlu0 %v556, 24
      %v1010 = vpop.permute.xlu0 %1009
      %1011 = vrot.lane.b32.xlu0 %v482, 24
      %v1012 = vpop.permute.xlu0 %1011
      %1013 = vrot.lane.b32.xlu0 %v557, 24
      %v1014 = vpop.permute.xlu0 %1013
      %1015 = vrot.lane.b32.xlu0 %v485, 24
      %v1016 = vpop.permute.xlu0 %1015
      %1017 = vrot.lane.b32.xlu0 %v558, 24
      %v1018 = vpop.permute.xlu0 %1017
      %1019 = vrot.lane.b32.xlu0 %v488, 24
      %v1020 = vpop.permute.xlu0 %1019
      %1021 = vrot.lane.b32.xlu0 %v559, 24
      %v1022 = vpop.permute.xlu0 %1021
      %1023 = vrot.lane.b32.xlu0 %v491, 24
      %v1024 = vpop.permute.xlu0 %1023
      %1025 = vrot.lane.b32.xlu0 %v560, 24
      %v1026 = vpop.permute.xlu0 %1025
      %1027 = vrot.lane.b32.xlu0 %v494, 24
      %v1028 = vpop.permute.xlu0 %1027
      %v1062 = vrot.slane %v560, 1
      %v1063 = vrot.slane %v494, 1
      %v1064 = vsel %vm610, %v1062, %v1063
      %v1065 = vrot.slane %v577, 1
      %v1066 = vsel %vm610, %v1063, %v1065
      %1067 = vrot.lane.b32.xlu0 %v618, 32
      %v1068 = vpop.permute.xlu0 %1067
      %1069 = vrot.lane.b32.xlu0 %v620, 32
      %v1070 = vpop.permute.xlu0 %1069
      %1071 = vrot.lane.b32.xlu0 %v623, 32
      %v1072 = vpop.permute.xlu0 %1071
      %1073 = vrot.lane.b32.xlu0 %v625, 32
      %v1074 = vpop.permute.xlu0 %1073
      %1075 = vrot.lane.b32.xlu0 %v628, 32
      %v1076 = vpop.permute.xlu0 %1075
      %1077 = vrot.lane.b32.xlu0 %v630, 32
      %v1078 = vpop.permute.xlu0 %1077
      %1079 = vrot.lane.b32.xlu0 %v633, 32
      %v1080 = vpop.permute.xlu0 %1079
      %1081 = vrot.lane.b32.xlu0 %v635, 32
      %v1082 = vpop.permute.xlu0 %1081
      %1083 = vrot.lane.b32.xlu0 %v638, 32
      %v1084 = vpop.permute.xlu0 %1083
      %1085 = vrot.lane.b32.xlu0 %v640, 32
      %v1086 = vpop.permute.xlu0 %1085
      %1087 = vrot.lane.b32.xlu0 %v643, 32
      %v1088 = vpop.permute.xlu0 %1087
      %1089 = vrot.lane.b32.xlu0 %v645, 32
      %v1090 = vpop.permute.xlu0 %1089
      %1091 = vrot.lane.b32.xlu0 %v648, 32
      %v1092 = vpop.permute.xlu0 %1091
      %1093 = vrot.lane.b32.xlu0 %v650, 32
      %v1094 = vpop.permute.xlu0 %1093
      %1095 = vrot.lane.b32.xlu0 %v653, 32
      %v1096 = vpop.permute.xlu0 %1095
      %1097 = vrot.lane.b32.xlu0 %v655, 32
      %v1098 = vpop.permute.xlu0 %1097
      %1099 = vrot.lane.b32.xlu0 %v658, 32
      %v1100 = vpop.permute.xlu0 %1099
      %1101 = vrot.lane.b32.xlu0 %v660, 32
      %v1102 = vpop.permute.xlu0 %1101
      %1103 = vrot.lane.b32.xlu0 %v663, 32
      %v1104 = vpop.permute.xlu0 %1103
      %1105 = vrot.lane.b32.xlu0 %v665, 32
      %v1106 = vpop.permute.xlu0 %1105
      %1107 = vrot.lane.b32.xlu0 %v668, 32
      %v1108 = vpop.permute.xlu0 %1107
      %1109 = vrot.lane.b32.xlu0 %v670, 32
      %v1110 = vpop.permute.xlu0 %1109
      %1111 = vrot.lane.b32.xlu0 %v673, 32
      %v1112 = vpop.permute.xlu0 %1111
      %1113 = vrot.lane.b32.xlu0 %v675, 32
      %v1114 = vpop.permute.xlu0 %1113
      %1115 = vrot.lane.b32.xlu0 %v678, 32
      %v1116 = vpop.permute.xlu0 %1115
      %1117 = vrot.lane.b32.xlu0 %v680, 32
      %v1118 = vpop.permute.xlu0 %1117
      %1119 = vrot.lane.b32.xlu0 %v683, 32
      %v1120 = vpop.permute.xlu0 %1119
      %1121 = vrot.lane.b32.xlu0 %v685, 32
      %v1122 = vpop.permute.xlu0 %1121
      %1123 = vrot.lane.b32.xlu0 %v688, 32
      %v1124 = vpop.permute.xlu0 %1123
      %1125 = vrot.lane.b32.xlu0 %v690, 32
      %v1126 = vpop.permute.xlu0 %1125
      %1127 = vrot.lane.b32.xlu0 %v1064, 32
      %v1128 = vpop.permute.xlu0 %1127
      %1129 = vrot.lane.b32.xlu0 %v1066, 32
      %v1130 = vpop.permute.xlu0 %1129
      %v1163 = vrot.slane %v560, 2
      %v1164 = vrot.slane %v494, 2
      %v1165 = vsel %vm787, %v1163, %v1164
      %v1166 = vrot.slane %v577, 2
      %v1167 = vsel %vm787, %v1164, %v1166
      %1168 = vrot.lane.b32.xlu0 %v795, 40
      %v1169 = vpop.permute.xlu0 %1168
      %1170 = vrot.lane.b32.xlu0 %v797, 40
      %v1171 = vpop.permute.xlu0 %1170
      %1172 = vrot.lane.b32.xlu0 %v800, 40
      %v1173 = vpop.permute.xlu0 %1172
      %1174 = vrot.lane.b32.xlu0 %v802, 40
      %v1175 = vpop.permute.xlu0 %1174
      %1176 = vrot.lane.b32.xlu0 %v805, 40
      %v1177 = vpop.permute.xlu0 %1176
      %1178 = vrot.lane.b32.xlu0 %v807, 40
      %v1179 = vpop.permute.xlu0 %1178
      %1180 = vrot.lane.b32.xlu0 %v810, 40
      %v1181 = vpop.permute.xlu0 %1180
      %1182 = vrot.lane.b32.xlu0 %v812, 40
      %v1183 = vpop.permute.xlu0 %1182
      %1184 = vrot.lane.b32.xlu0 %v815, 40
      %v1185 = vpop.permute.xlu0 %1184
      %1186 = vrot.lane.b32.xlu0 %v817, 40
      %v1187 = vpop.permute.xlu0 %1186
      %1188 = vrot.lane.b32.xlu0 %v820, 40
      %v1189 = vpop.permute.xlu0 %1188
      %1190 = vrot.lane.b32.xlu0 %v822, 40
      %v1191 = vpop.permute.xlu0 %1190
      %1192 = vrot.lane.b32.xlu0 %v825, 40
      %v1193 = vpop.permute.xlu0 %1192
      %1194 = vrot.lane.b32.xlu0 %v827, 40
      %v1195 = vpop.permute.xlu0 %1194
      %1196 = vrot.lane.b32.xlu0 %v830, 40
      %v1197 = vpop.permute.xlu0 %1196
      %1198 = vrot.lane.b32.xlu0 %v832, 40
      %v1199 = vpop.permute.xlu0 %1198
      %1200 = vrot.lane.b32.xlu0 %v835, 40
      %v1201 = vpop.permute.xlu0 %1200
      %1202 = vrot.lane.b32.xlu0 %v837, 40
      %v1203 = vpop.permute.xlu0 %1202
      %1204 = vrot.lane.b32.xlu0 %v840, 40
      %v1205 = vpop.permute.xlu0 %1204
      %1206 = vrot.lane.b32.xlu0 %v842, 40
      %v1207 = vpop.permute.xlu0 %1206
      %1208 = vrot.lane.b32.xlu0 %v845, 40
      %v1209 = vpop.permute.xlu0 %1208
      %1210 = vrot.lane.b32.xlu0 %v847, 40
      %v1211 = vpop.permute.xlu0 %1210
      %1212 = vrot.lane.b32.xlu0 %v850, 40
      %v1213 = vpop.permute.xlu0 %1212
      %1214 = vrot.lane.b32.xlu0 %v852, 40
      %v1215 = vpop.permute.xlu0 %1214
      %1216 = vrot.lane.b32.xlu0 %v855, 40
      %v1217 = vpop.permute.xlu0 %1216
      %1218 = vrot.lane.b32.xlu0 %v857, 40
      %v1219 = vpop.permute.xlu0 %1218
      %1220 = vrot.lane.b32.xlu0 %v860, 40
      %v1221 = vpop.permute.xlu0 %1220
      %1222 = vrot.lane.b32.xlu0 %v862, 40
      %v1223 = vpop.permute.xlu0 %1222
      %1224 = vrot.lane.b32.xlu0 %v865, 40
      %v1225 = vpop.permute.xlu0 %1224
      %1226 = vrot.lane.b32.xlu0 %v867, 40
      %v1227 = vpop.permute.xlu0 %1226
      %1228 = vrot.lane.b32.xlu0 %v1165, 40
      %v1229 = vpop.permute.xlu0 %1228
      %1230 = vrot.lane.b32.xlu0 %v1167, 40
      %v1231 = vpop.permute.xlu0 %1230
      %1264 = vrot.lane.b32.xlu0 %v546, 48
      %v1265 = vpop.permute.xlu0 %1264
      %1266 = vrot.lane.b32.xlu0 %v452, 48
      %v1267 = vpop.permute.xlu0 %1266
      %1268 = vrot.lane.b32.xlu0 %v547, 48
      %v1269 = vpop.permute.xlu0 %1268
      %1270 = vrot.lane.b32.xlu0 %v455, 48
      %v1271 = vpop.permute.xlu0 %1270
      %1272 = vrot.lane.b32.xlu0 %v548, 48
      %v1273 = vpop.permute.xlu0 %1272
      %1274 = vrot.lane.b32.xlu0 %v458, 48
      %v1275 = vpop.permute.xlu0 %1274
      %1276 = vrot.lane.b32.xlu0 %v549, 48
      %v1277 = vpop.permute.xlu0 %1276
      %1278 = vrot.lane.b32.xlu0 %v461, 48
      %v1279 = vpop.permute.xlu0 %1278
      %1280 = vrot.lane.b32.xlu0 %v550, 48
      %v1281 = vpop.permute.xlu0 %1280
      %1282 = vrot.lane.b32.xlu0 %v464, 48
      %v1283 = vpop.permute.xlu0 %1282
      %1284 = vrot.lane.b32.xlu0 %v551, 48
      %v1285 = vpop.permute.xlu0 %1284
      %1286 = vrot.lane.b32.xlu0 %v467, 48
      %v1287 = vpop.permute.xlu0 %1286
      %1288 = vrot.lane.b32.xlu0 %v552, 48
      %v1289 = vpop.permute.xlu0 %1288
      %1290 = vrot.lane.b32.xlu0 %v470, 48
      %v1291 = vpop.permute.xlu0 %1290
      %1292 = vrot.lane.b32.xlu0 %v553, 48
      %v1293 = vpop.permute.xlu0 %1292
      %1294 = vrot.lane.b32.xlu0 %v473, 48
      %v1295 = vpop.permute.xlu0 %1294
      %1296 = vrot.lane.b32.xlu0 %v554, 48
      %v1297 = vpop.permute.xlu0 %1296
      %1298 = vrot.lane.b32.xlu0 %v476, 48
      %v1299 = vpop.permute.xlu0 %1298
      %1300 = vrot.lane.b32.xlu0 %v555, 48
      %v1301 = vpop.permute.xlu0 %1300
      %1302 = vrot.lane.b32.xlu0 %v479, 48
      %v1303 = vpop.permute.xlu0 %1302
      %1304 = vrot.lane.b32.xlu0 %v556, 48
      %v1305 = vpop.permute.xlu0 %1304
      %1306 = vrot.lane.b32.xlu0 %v482, 48
      %v1307 = vpop.permute.xlu0 %1306
      %1308 = vrot.lane.b32.xlu0 %v557, 48
      %v1309 = vpop.permute.xlu0 %1308
      %1310 = vrot.lane.b32.xlu0 %v485, 48
      %v1311 = vpop.permute.xlu0 %1310
      %1312 = vrot.lane.b32.xlu0 %v558, 48
      %v1313 = vpop.permute.xlu0 %1312
      %1314 = vrot.lane.b32.xlu0 %v488, 48
      %v1315 = vpop.permute.xlu0 %1314
      %1316 = vrot.lane.b32.xlu0 %v559, 48
      %v1317 = vpop.permute.xlu0 %1316
      %1318 = vrot.lane.b32.xlu0 %v491, 48
      %v1319 = vpop.permute.xlu0 %1318
      %1320 = vrot.lane.b32.xlu0 %v560, 48
      %v1321 = vpop.permute.xlu0 %1320
      %1322 = vrot.lane.b32.xlu0 %v494, 48
      %v1323 = vpop.permute.xlu0 %1322
      %1324 = vrot.lane.b32.xlu0 %v544, 48
      %v1325 = vpop.permute.xlu0 %1324
      %1326 = vrot.lane.b32.xlu0 %v446, 48
      %v1327 = vpop.permute.xlu0 %1326
      %1360 = vrot.lane.b32.xlu0 %v623, 56
      %v1361 = vpop.permute.xlu0 %1360
      %1362 = vrot.lane.b32.xlu0 %v625, 56
      %v1363 = vpop.permute.xlu0 %1362
      %1364 = vrot.lane.b32.xlu0 %v628, 56
      %v1365 = vpop.permute.xlu0 %1364
      %1366 = vrot.lane.b32.xlu0 %v630, 56
      %v1367 = vpop.permute.xlu0 %1366
      %1368 = vrot.lane.b32.xlu0 %v633, 56
      %v1369 = vpop.permute.xlu0 %1368
      %1370 = vrot.lane.b32.xlu0 %v635, 56
      %v1371 = vpop.permute.xlu0 %1370
      %1372 = vrot.lane.b32.xlu0 %v638, 56
      %v1373 = vpop.permute.xlu0 %1372
      %1374 = vrot.lane.b32.xlu0 %v640, 56
      %v1375 = vpop.permute.xlu0 %1374
      %1376 = vrot.lane.b32.xlu0 %v643, 56
      %v1377 = vpop.permute.xlu0 %1376
      %1378 = vrot.lane.b32.xlu0 %v645, 56
      %v1379 = vpop.permute.xlu0 %1378
      %1380 = vrot.lane.b32.xlu0 %v648, 56
      %v1381 = vpop.permute.xlu0 %1380
      %1382 = vrot.lane.b32.xlu0 %v650, 56
      %v1383 = vpop.permute.xlu0 %1382
      %1384 = vrot.lane.b32.xlu0 %v653, 56
      %v1385 = vpop.permute.xlu0 %1384
      %1386 = vrot.lane.b32.xlu0 %v655, 56
      %v1387 = vpop.permute.xlu0 %1386
      %1388 = vrot.lane.b32.xlu0 %v658, 56
      %v1389 = vpop.permute.xlu0 %1388
      %1390 = vrot.lane.b32.xlu0 %v660, 56
      %v1391 = vpop.permute.xlu0 %1390
      %1392 = vrot.lane.b32.xlu0 %v663, 56
      %v1393 = vpop.permute.xlu0 %1392
      %1394 = vrot.lane.b32.xlu0 %v665, 56
      %v1395 = vpop.permute.xlu0 %1394
      %1396 = vrot.lane.b32.xlu0 %v668, 56
      %v1397 = vpop.permute.xlu0 %1396
      %1398 = vrot.lane.b32.xlu0 %v670, 56
      %v1399 = vpop.permute.xlu0 %1398
      %1400 = vrot.lane.b32.xlu0 %v673, 56
      %v1401 = vpop.permute.xlu0 %1400
      %1402 = vrot.lane.b32.xlu0 %v675, 56
      %v1403 = vpop.permute.xlu0 %1402
      %1404 = vrot.lane.b32.xlu0 %v678, 56
      %v1405 = vpop.permute.xlu0 %1404
      %1406 = vrot.lane.b32.xlu0 %v680, 56
      %v1407 = vpop.permute.xlu0 %1406
      %1408 = vrot.lane.b32.xlu0 %v683, 56
      %v1409 = vpop.permute.xlu0 %1408
      %1410 = vrot.lane.b32.xlu0 %v685, 56
      %v1411 = vpop.permute.xlu0 %1410
      %1412 = vrot.lane.b32.xlu0 %v688, 56
      %v1413 = vpop.permute.xlu0 %1412
      %1414 = vrot.lane.b32.xlu0 %v690, 56
      %v1415 = vpop.permute.xlu0 %1414
      %1416 = vrot.lane.b32.xlu0 %v1064, 56
      %v1417 = vpop.permute.xlu0 %1416
      %1418 = vrot.lane.b32.xlu0 %v1066, 56
      %v1419 = vpop.permute.xlu0 %1418
      %1420 = vrot.lane.b32.xlu0 %v613, 56
      %v1421 = vpop.permute.xlu0 %1420
      %1422 = vrot.lane.b32.xlu0 %v615, 56
      %v1423 = vpop.permute.xlu0 %1422
      %1456 = vrot.lane.b32.xlu0 %v800, 64
      %v1457 = vpop.permute.xlu0 %1456
      %1458 = vrot.lane.b32.xlu0 %v802, 64
      %v1459 = vpop.permute.xlu0 %1458
      %1460 = vrot.lane.b32.xlu0 %v805, 64
      %v1461 = vpop.permute.xlu0 %1460
      %1462 = vrot.lane.b32.xlu0 %v807, 64
      %v1463 = vpop.permute.xlu0 %1462
      %1464 = vrot.lane.b32.xlu0 %v810, 64
      %v1465 = vpop.permute.xlu0 %1464
      %1466 = vrot.lane.b32.xlu0 %v812, 64
      %v1467 = vpop.permute.xlu0 %1466
      %1468 = vrot.lane.b32.xlu0 %v815, 64
      %v1469 = vpop.permute.xlu0 %1468
      %1470 = vrot.lane.b32.xlu0 %v817, 64
      %v1471 = vpop.permute.xlu0 %1470
      %1472 = vrot.lane.b32.xlu0 %v820, 64
      %v1473 = vpop.permute.xlu0 %1472
      %1474 = vrot.lane.b32.xlu0 %v822, 64
      %v1475 = vpop.permute.xlu0 %1474
      %1476 = vrot.lane.b32.xlu0 %v825, 64
      %v1477 = vpop.permute.xlu0 %1476
      %1478 = vrot.lane.b32.xlu0 %v827, 64
      %v1479 = vpop.permute.xlu0 %1478
      %1480 = vrot.lane.b32.xlu0 %v830, 64
      %v1481 = vpop.permute.xlu0 %1480
      %1482 = vrot.lane.b32.xlu0 %v832, 64
      %v1483 = vpop.permute.xlu0 %1482
      %1484 = vrot.lane.b32.xlu0 %v835, 64
      %v1485 = vpop.permute.xlu0 %1484
      %1486 = vrot.lane.b32.xlu0 %v837, 64
      %v1487 = vpop.permute.xlu0 %1486
      %1488 = vrot.lane.b32.xlu0 %v840, 64
      %v1489 = vpop.permute.xlu0 %1488
      %1490 = vrot.lane.b32.xlu0 %v842, 64
      %v1491 = vpop.permute.xlu0 %1490
      %1492 = vrot.lane.b32.xlu0 %v845, 64
      %v1493 = vpop.permute.xlu0 %1492
      %1494 = vrot.lane.b32.xlu0 %v847, 64
      %v1495 = vpop.permute.xlu0 %1494
      %1496 = vrot.lane.b32.xlu0 %v850, 64
      %v1497 = vpop.permute.xlu0 %1496
      %1498 = vrot.lane.b32.xlu0 %v852, 64
      %v1499 = vpop.permute.xlu0 %1498
      %1500 = vrot.lane.b32.xlu0 %v855, 64
      %v1501 = vpop.permute.xlu0 %1500
      %1502 = vrot.lane.b32.xlu0 %v857, 64
      %v1503 = vpop.permute.xlu0 %1502
      %1504 = vrot.lane.b32.xlu0 %v860, 64
      %v1505 = vpop.permute.xlu0 %1504
      %1506 = vrot.lane.b32.xlu0 %v862, 64
      %v1507 = vpop.permute.xlu0 %1506
      %1508 = vrot.lane.b32.xlu0 %v865, 64
      %v1509 = vpop.permute.xlu0 %1508
      %1510 = vrot.lane.b32.xlu0 %v867, 64
      %v1511 = vpop.permute.xlu0 %1510
      %1512 = vrot.lane.b32.xlu0 %v1165, 64
      %v1513 = vpop.permute.xlu0 %1512
      %1514 = vrot.lane.b32.xlu0 %v1167, 64
      %v1515 = vpop.permute.xlu0 %1514
      %1516 = vrot.lane.b32.xlu0 %v790, 64
      %v1517 = vpop.permute.xlu0 %1516
      %1518 = vrot.lane.b32.xlu0 %v792, 64
      %v1519 = vpop.permute.xlu0 %1518
      %vm1552 = vcmask 64512
      %v1553 = vsel %vm1552, %v544, %v692
      %v1554 = vsel %vm1552, %v446, %v694
      %v1555 = vsel %vm1552, %v545, %v696
      %v1556 = vsel %vm1552, %v449, %v698
      %v1557 = vsel %vm1552, %v546, %v700
      %v1558 = vsel %vm1552, %v452, %v702
      %v1559 = vsel %vm1552, %v547, %v704
      %v1560 = vsel %vm1552, %v455, %v706
      %v1561 = vsel %vm1552, %v548, %v708
      %v1562 = vsel %vm1552, %v458, %v710
      %v1563 = vsel %vm1552, %v549, %v712
      %v1564 = vsel %vm1552, %v461, %v714
      %v1565 = vsel %vm1552, %v550, %v716
      %v1566 = vsel %vm1552, %v464, %v718
      %v1567 = vsel %vm1552, %v551, %v720
      %v1568 = vsel %vm1552, %v467, %v722
      %v1569 = vsel %vm1552, %v552, %v724
      %v1570 = vsel %vm1552, %v470, %v726
      %v1571 = vsel %vm1552, %v553, %v728
      %v1572 = vsel %vm1552, %v473, %v730
      %v1573 = vsel %vm1552, %v554, %v732
      %v1574 = vsel %vm1552, %v476, %v734
      %v1575 = vsel %vm1552, %v555, %v736
      %v1576 = vsel %vm1552, %v479, %v738
      %v1577 = vsel %vm1552, %v556, %v740
      %v1578 = vsel %vm1552, %v482, %v742
      %v1579 = vsel %vm1552, %v557, %v744
      %v1580 = vsel %vm1552, %v485, %v746
      %v1581 = vsel %vm1552, %v558, %v748
      %v1582 = vsel %vm1552, %v488, %v750
      %v1583 = vsel %vm1552, %v559, %v752
      %v1584 = vsel %vm1552, %v491, %v754
      %vm1585 = vcmask 130048
      %v1586 = vsel %vm1585, %v1553, %v869
      %v1587 = vsel %vm1585, %v1554, %v871
      %v1588 = vsel %vm1585, %v1555, %v873
      %v1589 = vsel %vm1585, %v1556, %v875
      %v1590 = vsel %vm1585, %v1557, %v877
      %v1591 = vsel %vm1585, %v1558, %v879
      %v1592 = vsel %vm1585, %v1559, %v881
      %v1593 = vsel %vm1585, %v1560, %v883
      %v1594 = vsel %vm1585, %v1561, %v885
      %v1595 = vsel %vm1585, %v1562, %v887
      %v1596 = vsel %vm1585, %v1563, %v889
      %v1597 = vsel %vm1585, %v1564, %v891
      %v1598 = vsel %vm1585, %v1565, %v893
      %v1599 = vsel %vm1585, %v1566, %v895
      %v1600 = vsel %vm1585, %v1567, %v897
      %v1601 = vsel %vm1585, %v1568, %v899
      %v1602 = vsel %vm1585, %v1569, %v901
      %v1603 = vsel %vm1585, %v1570, %v903
      %v1604 = vsel %vm1585, %v1571, %v905
      %v1605 = vsel %vm1585, %v1572, %v907
      %v1606 = vsel %vm1585, %v1573, %v909
      %v1607 = vsel %vm1585, %v1574, %v911
      %v1608 = vsel %vm1585, %v1575, %v913
      %v1609 = vsel %vm1585, %v1576, %v915
      %v1610 = vsel %vm1585, %v1577, %v917
      %v1611 = vsel %vm1585, %v1578, %v919
      %v1612 = vsel %vm1585, %v1579, %v921
      %v1613 = vsel %vm1585, %v1580, %v923
      %v1614 = vsel %vm1585, %v1581, %v925
      %v1615 = vsel %vm1585, %v1582, %v927
      %v1616 = vsel %vm1585, %v1583, %v929
      %v1617 = vsel %vm1585, %v1584, %v931
      %vm1618 = vcmask 195584
      %v1619 = vsel %vm1618, %v1586, %v966
      %v1620 = vsel %vm1618, %v1587, %v968
      %v1621 = vsel %vm1618, %v1588, %v970
      %v1622 = vsel %vm1618, %v1589, %v972
      %v1623 = vsel %vm1618, %v1590, %v974
      %v1624 = vsel %vm1618, %v1591, %v976
      %v1625 = vsel %vm1618, %v1592, %v978
      %v1626 = vsel %vm1618, %v1593, %v980
      %v1627 = vsel %vm1618, %v1594, %v982
      %v1628 = vsel %vm1618, %v1595, %v984
      %v1629 = vsel %vm1618, %v1596, %v986
      %v1630 = vsel %vm1618, %v1597, %v988
      %v1631 = vsel %vm1618, %v1598, %v990
      %v1632 = vsel %vm1618, %v1599, %v992
      %v1633 = vsel %vm1618, %v1600, %v994
      %v1634 = vsel %vm1618, %v1601, %v996
      %v1635 = vsel %vm1618, %v1602, %v998
      %v1636 = vsel %vm1618, %v1603, %v1000
      %v1637 = vsel %vm1618, %v1604, %v1002
      %v1638 = vsel %vm1618, %v1605, %v1004
      %v1639 = vsel %vm1618, %v1606, %v1006
      %v1640 = vsel %vm1618, %v1607, %v1008
      %v1641 = vsel %vm1618, %v1608, %v1010
      %v1642 = vsel %vm1618, %v1609, %v1012
      %v1643 = vsel %vm1618, %v1610, %v1014
      %v1644 = vsel %vm1618, %v1611, %v1016
      %v1645 = vsel %vm1618, %v1612, %v1018
      %v1646 = vsel %vm1618, %v1613, %v1020
      %v1647 = vsel %vm1618, %v1614, %v1022
      %v1648 = vsel %vm1618, %v1615, %v1024
      %v1649 = vsel %vm1618, %v1616, %v1026
      %v1650 = vsel %vm1618, %v1617, %v1028
      %vm1651 = vcmask 261120
      %v1652 = vsel %vm1651, %v1619, %v1068
      %v1653 = vsel %vm1651, %v1620, %v1070
      %v1654 = vsel %vm1651, %v1621, %v1072
      %v1655 = vsel %vm1651, %v1622, %v1074
      %v1656 = vsel %vm1651, %v1623, %v1076
      %v1657 = vsel %vm1651, %v1624, %v1078
      %v1658 = vsel %vm1651, %v1625, %v1080
      %v1659 = vsel %vm1651, %v1626, %v1082
      %v1660 = vsel %vm1651, %v1627, %v1084
      %v1661 = vsel %vm1651, %v1628, %v1086
      %v1662 = vsel %vm1651, %v1629, %v1088
      %v1663 = vsel %vm1651, %v1630, %v1090
      %v1664 = vsel %vm1651, %v1631, %v1092
      %v1665 = vsel %vm1651, %v1632, %v1094
      %v1666 = vsel %vm1651, %v1633, %v1096
      %v1667 = vsel %vm1651, %v1634, %v1098
      %v1668 = vsel %vm1651, %v1635, %v1100
      %v1669 = vsel %vm1651, %v1636, %v1102
      %v1670 = vsel %vm1651, %v1637, %v1104
      %v1671 = vsel %vm1651, %v1638, %v1106
      %v1672 = vsel %vm1651, %v1639, %v1108
      %v1673 = vsel %vm1651, %v1640, %v1110
      %v1674 = vsel %vm1651, %v1641, %v1112
      %v1675 = vsel %vm1651, %v1642, %v1114
      %v1676 = vsel %vm1651, %v1643, %v1116
      %v1677 = vsel %vm1651, %v1644, %v1118
      %v1678 = vsel %vm1651, %v1645, %v1120
      %v1679 = vsel %vm1651, %v1646, %v1122
      %v1680 = vsel %vm1651, %v1647, %v1124
      %v1681 = vsel %vm1651, %v1648, %v1126
      %v1682 = vsel %vm1651, %v1649, %v1128
      %v1683 = vsel %vm1651, %v1650, %v1130
      %vm1684 = vcmask 326656
      %v1685 = vsel %vm1684, %v1652, %v1169
      %v1686 = vsel %vm1684, %v1653, %v1171
      %v1687 = vsel %vm1684, %v1654, %v1173
      %v1688 = vsel %vm1684, %v1655, %v1175
      %v1689 = vsel %vm1684, %v1656, %v1177
      %v1690 = vsel %vm1684, %v1657, %v1179
      %v1691 = vsel %vm1684, %v1658, %v1181
      %v1692 = vsel %vm1684, %v1659, %v1183
      %v1693 = vsel %vm1684, %v1660, %v1185
      %v1694 = vsel %vm1684, %v1661, %v1187
      %v1695 = vsel %vm1684, %v1662, %v1189
      %v1696 = vsel %vm1684, %v1663, %v1191
      %v1697 = vsel %vm1684, %v1664, %v1193
      %v1698 = vsel %vm1684, %v1665, %v1195
      %v1699 = vsel %vm1684, %v1666, %v1197
      %v1700 = vsel %vm1684, %v1667, %v1199
      %v1701 = vsel %vm1684, %v1668, %v1201
      %v1702 = vsel %vm1684, %v1669, %v1203
      %v1703 = vsel %vm1684, %v1670, %v1205
      %v1704 = vsel %vm1684, %v1671, %v1207
      %v1705 = vsel %vm1684, %v1672, %v1209
      %v1706 = vsel %vm1684, %v1673, %v1211
      %v1707 = vsel %vm1684, %v1674, %v1213
      %v1708 = vsel %vm1684, %v1675, %v1215
      %v1709 = vsel %vm1684, %v1676, %v1217
      %v1710 = vsel %vm1684, %v1677, %v1219
      %v1711 = vsel %vm1684, %v1678, %v1221
      %v1712 = vsel %vm1684, %v1679, %v1223
      %v1713 = vsel %vm1684, %v1680, %v1225
      %v1714 = vsel %vm1684, %v1681, %v1227
      %v1715 = vsel %vm1684, %v1682, %v1229
      %v1716 = vsel %vm1684, %v1683, %v1231
      %vm1717 = vcmask 392192
      %v1718 = vsel %vm1717, %v1685, %v1265
      %v1719 = vsel %vm1717, %v1686, %v1267
      %v1720 = vsel %vm1717, %v1687, %v1269
      %v1721 = vsel %vm1717, %v1688, %v1271
      %v1722 = vsel %vm1717, %v1689, %v1273
      %v1723 = vsel %vm1717, %v1690, %v1275
      %v1724 = vsel %vm1717, %v1691, %v1277
      %v1725 = vsel %vm1717, %v1692, %v1279
      %v1726 = vsel %vm1717, %v1693, %v1281
      %v1727 = vsel %vm1717, %v1694, %v1283
      %v1728 = vsel %vm1717, %v1695, %v1285
      %v1729 = vsel %vm1717, %v1696, %v1287
      %v1730 = vsel %vm1717, %v1697, %v1289
      %v1731 = vsel %vm1717, %v1698, %v1291
      %v1732 = vsel %vm1717, %v1699, %v1293
      %v1733 = vsel %vm1717, %v1700, %v1295
      %v1734 = vsel %vm1717, %v1701, %v1297
      %v1735 = vsel %vm1717, %v1702, %v1299
      %v1736 = vsel %vm1717, %v1703, %v1301
      %v1737 = vsel %vm1717, %v1704, %v1303
      %v1738 = vsel %vm1717, %v1705, %v1305
      %v1739 = vsel %vm1717, %v1706, %v1307
      %v1740 = vsel %vm1717, %v1707, %v1309
      %v1741 = vsel %vm1717, %v1708, %v1311
      %v1742 = vsel %vm1717, %v1709, %v1313
      %v1743 = vsel %vm1717, %v1710, %v1315
      %v1744 = vsel %vm1717, %v1711, %v1317
      %v1745 = vsel %vm1717, %v1712, %v1319
      %v1746 = vsel %vm1717, %v1713, %v1321
      %v1747 = vsel %vm1717, %v1714, %v1323
      %v1748 = vsel %vm1717, %v1715, %v1325
      %v1749 = vsel %vm1717, %v1716, %v1327
      %vm1750 = vcmask 457728
      %v1751 = vsel %vm1750, %v1718, %v1361
      %v1752 = vsel %vm1750, %v1719, %v1363
      %v1753 = vsel %vm1750, %v1720, %v1365
      %v1754 = vsel %vm1750, %v1721, %v1367
      %v1755 = vsel %vm1750, %v1722, %v1369
      %v1756 = vsel %vm1750, %v1723, %v1371
      %v1757 = vsel %vm1750, %v1724, %v1373
      %v1758 = vsel %vm1750, %v1725, %v1375
      %v1759 = vsel %vm1750, %v1726, %v1377
      %v1760 = vsel %vm1750, %v1727, %v1379
      %v1761 = vsel %vm1750, %v1728, %v1381
      %v1762 = vsel %vm1750, %v1729, %v1383
      %v1763 = vsel %vm1750, %v1730, %v1385
      %v1764 = vsel %vm1750, %v1731, %v1387
      %v1765 = vsel %vm1750, %v1732, %v1389
      %v1766 = vsel %vm1750, %v1733, %v1391
      %v1767 = vsel %vm1750, %v1734, %v1393
      %v1768 = vsel %vm1750, %v1735, %v1395
      %v1769 = vsel %vm1750, %v1736, %v1397
      %v1770 = vsel %vm1750, %v1737, %v1399
      %v1771 = vsel %vm1750, %v1738, %v1401
      %v1772 = vsel %vm1750, %v1739, %v1403
      %v1773 = vsel %vm1750, %v1740, %v1405
      %v1774 = vsel %vm1750, %v1741, %v1407
      %v1775 = vsel %vm1750, %v1742, %v1409
      %v1776 = vsel %vm1750, %v1743, %v1411
      %v1777 = vsel %vm1750, %v1744, %v1413
      %v1778 = vsel %vm1750, %v1745, %v1415
      %v1779 = vsel %vm1750, %v1746, %v1417
      %v1780 = vsel %vm1750, %v1747, %v1419
      %v1781 = vsel %vm1750, %v1748, %v1421
      %v1782 = vsel %vm1750, %v1749, %v1423
      %vm1783 = vcmask 523264
      %v1784 = vsel %vm1783, %v1751, %v1457
      %v1785 = vsel %vm1783, %v1752, %v1459
      %v1786 = vsel %vm1783, %v1753, %v1461
      %v1787 = vsel %vm1783, %v1754, %v1463
      %v1788 = vsel %vm1783, %v1755, %v1465
      %v1789 = vsel %vm1783, %v1756, %v1467
      %v1790 = vsel %vm1783, %v1757, %v1469
      %v1791 = vsel %vm1783, %v1758, %v1471
      %v1792 = vsel %vm1783, %v1759, %v1473
      %v1793 = vsel %vm1783, %v1760, %v1475
      %v1794 = vsel %vm1783, %v1761, %v1477
      %v1795 = vsel %vm1783, %v1762, %v1479
      %v1796 = vsel %vm1783, %v1763, %v1481
      %v1797 = vsel %vm1783, %v1764, %v1483
      %v1798 = vsel %vm1783, %v1765, %v1485
      %v1799 = vsel %vm1783, %v1766, %v1487
      %v1800 = vsel %vm1783, %v1767, %v1489
      %v1801 = vsel %vm1783, %v1768, %v1491
      %v1802 = vsel %vm1783, %v1769, %v1493
      %v1803 = vsel %vm1783, %v1770, %v1495
      %v1804 = vsel %vm1783, %v1771, %v1497
      %v1805 = vsel %vm1783, %v1772, %v1499
      %v1806 = vsel %vm1783, %v1773, %v1501
      %v1807 = vsel %vm1783, %v1774, %v1503
      %v1808 = vsel %vm1783, %v1775, %v1505
      %v1809 = vsel %vm1783, %v1776, %v1507
      %v1810 = vsel %vm1783, %v1777, %v1509
      %v1811 = vsel %vm1783, %v1778, %v1511
      %v1812 = vsel %vm1783, %v1779, %v1513
      %v1813 = vsel %vm1783, %v1780, %v1515
      %v1814 = vsel %vm1783, %v1781, %v1517
      %v1815 = vsel %vm1783, %v1782, %v1519
      %v1816 = vpack.c.bf16 %v1785, %v1784
      %v1817 = vpack.c.bf16 %v1787, %v1786
      %v1818 = vpack.c.bf16 %v1789, %v1788
      %v1819 = vpack.c.bf16 %v1791, %v1790
      %v1820 = vpack.c.bf16 %v1793, %v1792
      %v1821 = vpack.c.bf16 %v1795, %v1794
      %v1822 = vpack.c.bf16 %v1797, %v1796
      %v1823 = vpack.c.bf16 %v1799, %v1798
      %v1824 = vpack.c.bf16 %v1801, %v1800
      %v1825 = vpack.c.bf16 %v1803, %v1802
      %v1826 = vpack.c.bf16 %v1805, %v1804
      %v1827 = vpack.c.bf16 %v1807, %v1806
      %v1828 = vpack.c.bf16 %v1809, %v1808
      %v1829 = vpack.c.bf16 %v1811, %v1810
      %v1830 = vpack.c.bf16 %v1813, %v1812
      %v1831 = vpack.c.bf16 %v1815, %v1814
      %v1832 = vld [vmem:[%s3] sm:$0xf]
      %v1833 = vld [vmem:[%s3 + $0x4] sm:$0xf]
      %v1834 = vld [vmem:[%s3 + $0x8] sm:$0xf]
      %v1835 = vld [vmem:[%s3 + $0xc] sm:$0xf]
      %v1836 = vld [vmem:[%s3 + $0x10] sm:$0xf]
      %v1837 = vld [vmem:[%s3 + $0x14] sm:$0xf]
      %v1838 = vld [vmem:[%s3 + $0x18] sm:$0xf]
      %v1839 = vld [vmem:[%s3 + $0x1c] sm:$0xf]
      %v1840 = vld [vmem:[%s3 + $0x20] sm:$0xf]
      %v1850 = vunpack.c.l.b16 %v1832
      %v1851 = vunpack.c.l.b16 %v1833
      %v1852 = vunpack.c.l.b16 %v1834
      %v1853 = vunpack.c.l.b16 %v1835
      %v1854 = vunpack.c.l.b16 %v1836
      %v1855 = vunpack.c.l.b16 %v1837
      %v1856 = vunpack.c.l.b16 %v1838
      %v1857 = vunpack.c.l.b16 %v1839
      %v1858 = vunpack.c.l.b16 %v1840
      %v1859 = vpack.c.b16 %v1851, %v1850
      %v1860 = vpack.c.b16 %v1853, %v1852
      %v1861 = vpack.c.b16 %v1855, %v1854
      %v1862 = vpack.c.b16 %v1857, %v1856
      %v1863 = vpack.c.b16 %v1858, %v1858
      %vm1868 = vcmask 588800
      %v1870 = vsel %vm1868, %v1816, 0
      %v1873 = vsel %vm1868, %v1817, 0
      %v1876 = vsel %vm1868, %v1818, 0
      %v1879 = vsel %vm1868, %v1819, 0
      %v1882 = vsel %vm1868, %v1820, 0
      %v1885 = vsel %vm1868, %v1821, 0
      %v1888 = vsel %vm1868, %v1822, 0
      %v1891 = vsel %vm1868, %v1823, 0
      %v1894 = vsel %vm1868, %v1824, 0
      %v1897 = vsel %vm1868, %v1825, 0
      %v1900 = vsel %vm1868, %v1826, 0
      %v1903 = vsel %vm1868, %v1827, 0
      %v1906 = vsel %vm1868, %v1828, 0
      %v1909 = vsel %vm1868, %v1829, 0
      %v1912 = vsel %vm1868, %v1830, 0
      %v1915 = vsel %vm1868, %v1831, 0
      %vm1917 = vcmask 1043456
      %v1919 = vsel %vm1917, %v1863, 0
      %1921 = vmatprep.subr.bf16.mxu0 0
      %1922 = vmatpush1.bf16.msra.mxu0 0
      %1923 = vmatprep.subr.bf16.mxu0 0
      %1924 = vmatpush1.bf16.msra.mxu0 0
      %1925 = vmatprep.subr.bf16.mxu0 0
      %1926 = vmatpush1.bf16.msra.mxu0 0
      %1927 = vmatprep.subr.bf16.mxu0 0
      %1928 = vmatpush1.bf16.msra.mxu0 %v1919
      %1929 = vmatprep.subr.bf16.mxu0 0
      %1930 = vmatpush1.bf16.msra.mxu0 %v1862
      %1931 = vmatprep.subr.bf16.mxu0 0
      %1932 = vmatpush1.bf16.msra.mxu0 %v1861
      %1933 = vmatprep.subr.bf16.mxu0 0
      %1934 = vmatpush1.bf16.msra.mxu0 %v1860
      %1935 = vmatprep.subr.bf16.mxu0 0
      %1936 = vmatpush1.bf16.msra.mxu0 %v1859
      %1937 = vmatprep.subr.bf16.mxu0 0
      %1938 = vmatpush2.bf16.msra.mxu0 0
      %1939 = vmatprep.subr.bf16.mxu0 0
      %1940 = vmatpush2.bf16.msra.mxu0 0
      %1941 = vmatprep.subr.bf16.mxu0 0
      %1942 = vmatpush2.bf16.msra.mxu0 0
      %1943 = vmatprep.subr.bf16.mxu0 0
      %1944 = vmatpush2.bf16.msra.mxu0 0
      %1945 = vmatprep.subr.bf16.mxu0 0
      %1946 = vmatpush2.bf16.msra.mxu0 0
      %1947 = vmatprep.subr.bf16.mxu0 0
      %1948 = vmatpush2.bf16.msra.mxu0 0
      %1949 = vmatprep.subr.bf16.mxu0 0
      %1950 = vmatpush2.bf16.msra.mxu0 0
      %1951 = vmatprep.subr.bf16.mxu0 0
      %1952 = vmatpush2.bf16.msra.mxu0 0
      %1953 = vmatprep.mubr.bf16.mxu0 0
      %1954 = vmatmul.mubr.bf16.gmra.mxu0 %v1870
      %v1955 = vpop.f32.mrf.mxu0
      %v1956 = vadd.f32 0.0, %v1955
      %v1957 = vpop.f32.mrf.mxu0
      %v1958 = vpop.f32.mrf.mxu0
      %v1959 = vadd.f32 0.0, %v1958
      %v1960 = vpop.f32.mrf.mxu0
      %1961 = vmatprep.mubr.bf16.mxu0 0
      %1962 = vmatmul.mubr.bf16.gmra.mxu0 %v1873
      %v1963 = vpop.f32.mrf.mxu0
      %v1964 = vadd.f32 0.0, %v1963
      %v1965 = vpop.f32.mrf.mxu0
      %v1966 = vpop.f32.mrf.mxu0
      %v1967 = vadd.f32 0.0, %v1966
      %v1968 = vpop.f32.mrf.mxu0
      %1969 = vmatprep.mubr.bf16.mxu0 0
      %1970 = vmatmul.mubr.bf16.gmra.mxu0 %v1876
      %v1971 = vpop.f32.mrf.mxu0
      %v1972 = vadd.f32 0.0, %v1971
      %v1973 = vpop.f32.mrf.mxu0
      %v1974 = vpop.f32.mrf.mxu0
      %v1975 = vadd.f32 0.0, %v1974
      %v1976 = vpop.f32.mrf.mxu0
      %1977 = vmatprep.mubr.bf16.mxu0 0
      %1978 = vmatmul.mubr.bf16.gmra.mxu0 %v1879
      %v1979 = vpop.f32.mrf.mxu0
      %v1980 = vadd.f32 0.0, %v1979
      %v1981 = vpop.f32.mrf.mxu0
      %v1982 = vpop.f32.mrf.mxu0
      %v1983 = vadd.f32 0.0, %v1982
      %v1984 = vpop.f32.mrf.mxu0
      %1985 = vmatprep.mubr.bf16.mxu0 0
      %1986 = vmatmul.mubr.bf16.gmra.mxu0 %v1882
      %v1987 = vpop.f32.mrf.mxu0
      %v1988 = vadd.f32 0.0, %v1987
      %v1989 = vpop.f32.mrf.mxu0
      %v1990 = vpop.f32.mrf.mxu0
      %v1991 = vadd.f32 0.0, %v1990
      %v1992 = vpop.f32.mrf.mxu0
      %1993 = vmatprep.mubr.bf16.mxu0 0
      %1994 = vmatmul.mubr.bf16.gmra.mxu0 %v1885
      %v1995 = vpop.f32.mrf.mxu0
      %v1996 = vadd.f32 0.0, %v1995
      %v1997 = vpop.f32.mrf.mxu0
      %v1998 = vpop.f32.mrf.mxu0
      %v1999 = vadd.f32 0.0, %v1998
      %v2000 = vpop.f32.mrf.mxu0
      %2001 = vmatprep.mubr.bf16.mxu0 0
      %2002 = vmatmul.mubr.bf16.gmra.mxu0 %v1888
      %v2003 = vpop.f32.mrf.mxu0
      %v2004 = vadd.f32 0.0, %v2003
      %v2005 = vpop.f32.mrf.mxu0
      %v2006 = vpop.f32.mrf.mxu0
      %v2007 = vadd.f32 0.0, %v2006
      %v2008 = vpop.f32.mrf.mxu0
      %2009 = vmatprep.mubr.bf16.mxu0 0
      %2010 = vmatmul.mubr.bf16.gmra.mxu0 %v1891
      %v2011 = vpop.f32.mrf.mxu0
      %v2012 = vadd.f32 0.0, %v2011
      %v2013 = vpop.f32.mrf.mxu0
      %v2014 = vpop.f32.mrf.mxu0
      %v2015 = vadd.f32 0.0, %v2014
      %v2016 = vpop.f32.mrf.mxu0
      %2017 = vmatprep.mubr.bf16.mxu0 0
      %2018 = vmatmul.mubr.bf16.gmra.mxu0 %v1894
      %v2019 = vpop.f32.mrf.mxu0
      %v2020 = vadd.f32 0.0, %v2019
      %v2021 = vpop.f32.mrf.mxu0
      %v2022 = vpop.f32.mrf.mxu0
      %v2023 = vadd.f32 0.0, %v2022
      %v2024 = vpop.f32.mrf.mxu0
      %2025 = vmatprep.mubr.bf16.mxu0 0
      %2026 = vmatmul.mubr.bf16.gmra.mxu0 %v1897
      %v2027 = vpop.f32.mrf.mxu0
      %v2028 = vadd.f32 0.0, %v2027
      %v2029 = vpop.f32.mrf.mxu0
      %v2030 = vpop.f32.mrf.mxu0
      %v2031 = vadd.f32 0.0, %v2030
      %v2032 = vpop.f32.mrf.mxu0
      %2033 = vmatprep.mubr.bf16.mxu0 0
      %2034 = vmatmul.mubr.bf16.gmra.mxu0 %v1900
      %v2035 = vpop.f32.mrf.mxu0
      %v2036 = vadd.f32 0.0, %v2035
      %v2037 = vpop.f32.mrf.mxu0
      %v2038 = vpop.f32.mrf.mxu0
      %v2039 = vadd.f32 0.0, %v2038
      %v2040 = vpop.f32.mrf.mxu0
      %2041 = vmatprep.mubr.bf16.mxu0 0
      %2042 = vmatmul.mubr.bf16.gmra.mxu0 %v1903
      %v2043 = vpop.f32.mrf.mxu0
      %v2044 = vadd.f32 0.0, %v2043
      %v2045 = vpop.f32.mrf.mxu0
      %v2046 = vpop.f32.mrf.mxu0
      %v2047 = vadd.f32 0.0, %v2046
      %v2048 = vpop.f32.mrf.mxu0
      %2049 = vmatprep.mubr.bf16.mxu0 0
      %2050 = vmatmul.mubr.bf16.gmra.mxu0 %v1906
      %v2051 = vpop.f32.mrf.mxu0
      %v2052 = vadd.f32 0.0, %v2051
      %v2053 = vpop.f32.mrf.mxu0
      %v2054 = vpop.f32.mrf.mxu0
      %v2055 = vadd.f32 0.0, %v2054
      %v2056 = vpop.f32.mrf.mxu0
      %2057 = vmatprep.mubr.bf16.mxu0 0
      %2058 = vmatmul.mubr.bf16.gmra.mxu0 %v1909
      %v2059 = vpop.f32.mrf.mxu0
      %v2060 = vadd.f32 0.0, %v2059
      %v2061 = vpop.f32.mrf.mxu0
      %v2062 = vpop.f32.mrf.mxu0
      %v2063 = vadd.f32 0.0, %v2062
      %v2064 = vpop.f32.mrf.mxu0
      %2065 = vmatprep.mubr.bf16.mxu0 0
      %2066 = vmatmul.mubr.bf16.gmra.mxu0 %v1912
      %v2067 = vpop.f32.mrf.mxu0
      %v2068 = vadd.f32 0.0, %v2067
      %v2069 = vpop.f32.mrf.mxu0
      %v2070 = vpop.f32.mrf.mxu0
      %v2071 = vadd.f32 0.0, %v2070
      %v2072 = vpop.f32.mrf.mxu0
      %2073 = vmatprep.mubr.bf16.mxu0 0
      %2074 = vmatmul.mubr.bf16.gmra.mxu0 %v1915
      %v2075 = vpop.f32.mrf.mxu0
      %v2076 = vadd.f32 0.0, %v2075
      %v2077 = vpop.f32.mrf.mxu0
      %v2078 = vpop.f32.mrf.mxu0
      %v2079 = vadd.f32 0.0, %v2078
      %v2080 = vpop.f32.mrf.mxu0
      %2081 = vdwg.mxu0
      %v2082 = vpack.c.bf16 %v1959, %v1956
      %v2083 = vpack.c.bf16 %v1967, %v1964
      %v2084 = vpack.c.bf16 %v1975, %v1972
      %v2085 = vpack.c.bf16 %v1983, %v1980
      %v2086 = vpack.c.bf16 %v1991, %v1988
      %v2087 = vpack.c.bf16 %v1999, %v1996
      %v2088 = vpack.c.bf16 %v2007, %v2004
      %v2089 = vpack.c.bf16 %v2015, %v2012
      %v2090 = vpack.c.bf16 %v2023, %v2020
      %v2091 = vpack.c.bf16 %v2031, %v2028
      %v2092 = vpack.c.bf16 %v2039, %v2036
      %v2093 = vpack.c.bf16 %v2047, %v2044
      %v2094 = vpack.c.bf16 %v2055, %v2052
      %v2095 = vpack.c.bf16 %v2063, %v2060
      %v2096 = vpack.c.bf16 %v2071, %v2068
      %v2097 = vpack.c.bf16 %v2079, %v2076
      %v2114 = vunpack.c.l.b16 %v2082
      %v2115 = vunpack.c.h.b16 %v2082
      %v2116 = vunpack.c.l.b16 %v2083
      %v2117 = vunpack.c.h.b16 %v2083
      %v2118 = vunpack.c.l.b16 %v2084
      %v2119 = vunpack.c.h.b16 %v2084
      %v2120 = vunpack.c.l.b16 %v2085
      %v2121 = vunpack.c.h.b16 %v2085
      %v2122 = vunpack.c.l.b16 %v2086
      %v2123 = vunpack.c.h.b16 %v2086
      %v2124 = vunpack.c.l.b16 %v2087
      %v2125 = vunpack.c.h.b16 %v2087
      %v2126 = vunpack.c.l.b16 %v2088
      %v2127 = vunpack.c.h.b16 %v2088
      %v2128 = vunpack.c.l.b16 %v2089
      %v2129 = vunpack.c.h.b16 %v2089
      %v2130 = vunpack.c.l.b16 %v2090
      %v2131 = vunpack.c.h.b16 %v2090
      %v2132 = vunpack.c.l.b16 %v2091
      %v2133 = vunpack.c.h.b16 %v2091
      %v2134 = vunpack.c.l.b16 %v2092
      %v2135 = vunpack.c.h.b16 %v2092
      %v2136 = vunpack.c.l.b16 %v2093
      %v2137 = vunpack.c.h.b16 %v2093
      %v2138 = vunpack.c.l.b16 %v2094
      %v2139 = vunpack.c.h.b16 %v2094
      %v2140 = vunpack.c.l.b16 %v2095
      %v2141 = vunpack.c.h.b16 %v2095
      %v2142 = vunpack.c.l.b16 %v2096
      %v2143 = vunpack.c.h.b16 %v2096
      %v2144 = vunpack.c.l.b16 %v2097
      %v2145 = vunpack.c.h.b16 %v2097
      %v2146 = vpack.c.b16 %v2114, %v2114
      %v2147 = vpack.c.b16 %v2115, %v2115
      %v2148 = vpack.c.b16 %v2116, %v2116
      %v2149 = vpack.c.b16 %v2117, %v2117
      %v2150 = vpack.c.b16 %v2118, %v2118
      %v2151 = vpack.c.b16 %v2119, %v2119
      %v2152 = vpack.c.b16 %v2120, %v2120
      %v2153 = vpack.c.b16 %v2121, %v2121
      %v2154 = vpack.c.b16 %v2122, %v2122
      %v2155 = vpack.c.b16 %v2123, %v2123
      %v2156 = vpack.c.b16 %v2124, %v2124
      %v2157 = vpack.c.b16 %v2125, %v2125
      %v2158 = vpack.c.b16 %v2126, %v2126
      %v2159 = vpack.c.b16 %v2127, %v2127
      %v2160 = vpack.c.b16 %v2128, %v2128
      %v2161 = vpack.c.b16 %v2129, %v2129
      %v2162 = vpack.c.b16 %v2130, %v2130
      %v2163 = vpack.c.b16 %v2131, %v2131
      %v2164 = vpack.c.b16 %v2132, %v2132
      %v2165 = vpack.c.b16 %v2133, %v2133
      %v2166 = vpack.c.b16 %v2134, %v2134
      %v2167 = vpack.c.b16 %v2135, %v2135
      %v2168 = vpack.c.b16 %v2136, %v2136
      %v2169 = vpack.c.b16 %v2137, %v2137
      %v2170 = vpack.c.b16 %v2138, %v2138
      %v2171 = vpack.c.b16 %v2139, %v2139
      %v2172 = vpack.c.b16 %v2140, %v2140
      %v2173 = vpack.c.b16 %v2141, %v2141
      %v2174 = vpack.c.b16 %v2142, %v2142
      %v2175 = vpack.c.b16 %v2143, %v2143
      %v2176 = vpack.c.b16 %v2144, %v2144
      %v2177 = vpack.c.b16 %v2145, %v2145
      %2210 = vst [vmem:[%s231] sm:$0xf] %v2146
      %2211 = vst [vmem:[%s231 + $0x4] sm:$0xf] %v2147
      %2212 = vst [vmem:[%s231 + $0x8] sm:$0xf] %v2148
      %2213 = vst [vmem:[%s231 + $0xc] sm:$0xf] %v2149
      %2214 = vst [vmem:[%s231 + $0x10] sm:$0xf] %v2150
      %2215 = vst [vmem:[%s231 + $0x14] sm:$0xf] %v2151
      %2216 = vst [vmem:[%s231 + $0x18] sm:$0xf] %v2152
      %2217 = vst [vmem:[%s231 + $0x1c] sm:$0xf] %v2153
      %2218 = vst [vmem:[%s231 + $0x20] sm:$0xf] %v2154
      %2219 = vst [vmem:[%s231 + $0x24] sm:$0xf] %v2155
      %2220 = vst [vmem:[%s231 + $0x28] sm:$0xf] %v2156
      %2221 = vst [vmem:[%s231 + $0x2c] sm:$0xf] %v2157
      %2222 = vst [vmem:[%s231 + $0x30] sm:$0xf] %v2158
      %2223 = vst [vmem:[%s231 + $0x34] sm:$0xf] %v2159
      %2224 = vst [vmem:[%s231 + $0x38] sm:$0xf] %v2160
      %2225 = vst [vmem:[%s231 + $0x3c] sm:$0xf] %v2161
      %2226 = vst [vmem:[%s231 + $0x40] sm:$0xf] %v2162
      %2227 = vst [vmem:[%s231 + $0x44] sm:$0xf] %v2163
      %2228 = vst [vmem:[%s231 + $0x48] sm:$0xf] %v2164
      %2229 = vst [vmem:[%s231 + $0x4c] sm:$0xf] %v2165
      %2230 = vst [vmem:[%s231 + $0x50] sm:$0xf] %v2166
      %2231 = vst [vmem:[%s231 + $0x54] sm:$0xf] %v2167
      %2232 = vst [vmem:[%s231 + $0x58] sm:$0xf] %v2168
      %2233 = vst [vmem:[%s231 + $0x5c] sm:$0xf] %v2169
      %2234 = vst [vmem:[%s231 + $0x60] sm:$0xf] %v2170
      %2235 = vst [vmem:[%s231 + $0x64] sm:$0xf] %v2171
      %2236 = vst [vmem:[%s231 + $0x68] sm:$0xf] %v2172
      %2237 = vst [vmem:[%s231 + $0x6c] sm:$0xf] %v2173
      %2238 = vst [vmem:[%s231 + $0x70] sm:$0xf] %v2174
      %2239 = vst [vmem:[%s231 + $0x74] sm:$0xf] %v2175
      %2240 = vst [vmem:[%s231 + $0x78] sm:$0xf] %v2176
      %2241 = vst [vmem:[%s231 + $0x7c] sm:$0xf] %v2177
      %v2242 = vadd.f32 %v1956, %v1959
      %v2243 = vadd.f32 %v2242, %v1964
      %v2244 = vadd.f32 %v2243, %v1967
      %v2245 = vadd.f32 %v2244, %v1972
      %v2246 = vadd.f32 %v2245, %v1975
      %v2247 = vadd.f32 %v2246, %v1980
      %v2248 = vadd.f32 %v2247, %v1983
      %v2249 = vadd.f32 %v2248, %v1988
      %v2250 = vadd.f32 %v2249, %v1991
      %v2251 = vadd.f32 %v2250, %v1996
      %v2252 = vadd.f32 %v2251, %v1999
      %v2253 = vadd.f32 %v2252, %v2004
      %v2254 = vadd.f32 %v2253, %v2007
      %v2255 = vadd.f32 %v2254, %v2012
      %v2256 = vadd.f32 %v2255, %v2015
      %v2257 = vadd.f32 %v2256, %v2020
      %v2258 = vadd.f32 %v2257, %v2023
      %v2259 = vadd.f32 %v2258, %v2028
      %v2260 = vadd.f32 %v2259, %v2031
      %v2261 = vadd.f32 %v2260, %v2036
      %v2262 = vadd.f32 %v2261, %v2039
      %v2263 = vadd.f32 %v2262, %v2044
      %v2264 = vadd.f32 %v2263, %v2047
      %v2265 = vadd.f32 %v2264, %v2052
      %v2266 = vadd.f32 %v2265, %v2055
      %v2267 = vadd.f32 %v2266, %v2060
      %v2268 = vadd.f32 %v2267, %v2063
      %v2269 = vadd.f32 %v2268, %v2068
      %v2270 = vadd.f32 %v2269, %v2071
      %v2271 = vadd.f32 %v2270, %v2076
      %v2272 = vadd.f32 %v2271, %v2079
      %v2273 = vrot.slane %v2272, 4
      %v2274 = vadd.f32 %v2272, %v2273
      %v2275 = vrot.slane %v2274, 2
      %v2276 = vadd.f32 %v2274, %v2275
      %v2277 = vrot.slane %v2276, 1
      %v2278 = vadd.f32 %v2276, %v2277
      %v2279 = vmul.f32 %v1956, %v1956
      %v2280 = vmul.f32 %v1959, %v1959
      %v2281 = vmul.f32 %v1964, %v1964
      %v2282 = vmul.f32 %v1967, %v1967
      %v2283 = vmul.f32 %v1972, %v1972
      %v2284 = vmul.f32 %v1975, %v1975
      %v2285 = vmul.f32 %v1980, %v1980
      %v2286 = vmul.f32 %v1983, %v1983
      %v2287 = vmul.f32 %v1988, %v1988
      %v2288 = vmul.f32 %v1991, %v1991
      %v2289 = vmul.f32 %v1996, %v1996
      %v2290 = vmul.f32 %v1999, %v1999
      %v2291 = vmul.f32 %v2004, %v2004
      %v2292 = vmul.f32 %v2007, %v2007
      %v2293 = vmul.f32 %v2012, %v2012
      %v2294 = vmul.f32 %v2015, %v2015
      %v2295 = vmul.f32 %v2020, %v2020
      %v2296 = vmul.f32 %v2023, %v2023
      %v2297 = vmul.f32 %v2028, %v2028
      %v2298 = vmul.f32 %v2031, %v2031
      %v2299 = vmul.f32 %v2036, %v2036
      %v2300 = vmul.f32 %v2039, %v2039
      %v2301 = vmul.f32 %v2044, %v2044
      %v2302 = vmul.f32 %v2047, %v2047
      %v2303 = vmul.f32 %v2052, %v2052
      %v2304 = vmul.f32 %v2055, %v2055
      %v2305 = vmul.f32 %v2060, %v2060
      %v2306 = vmul.f32 %v2063, %v2063
      %v2307 = vmul.f32 %v2068, %v2068
      %v2308 = vmul.f32 %v2071, %v2071
      %v2309 = vmul.f32 %v2076, %v2076
      %v2310 = vmul.f32 %v2079, %v2079
      %v2311 = vadd.f32 %v2279, %v2280
      %v2312 = vadd.f32 %v2311, %v2281
      %v2313 = vadd.f32 %v2312, %v2282
      %v2314 = vadd.f32 %v2313, %v2283
      %v2315 = vadd.f32 %v2314, %v2284
      %v2316 = vadd.f32 %v2315, %v2285
      %v2317 = vadd.f32 %v2316, %v2286
      %v2318 = vadd.f32 %v2317, %v2287
      %v2319 = vadd.f32 %v2318, %v2288
      %v2320 = vadd.f32 %v2319, %v2289
      %v2321 = vadd.f32 %v2320, %v2290
      %v2322 = vadd.f32 %v2321, %v2291
      %v2323 = vadd.f32 %v2322, %v2292
      %v2324 = vadd.f32 %v2323, %v2293
      %v2325 = vadd.f32 %v2324, %v2294
      %v2326 = vadd.f32 %v2325, %v2295
      %v2327 = vadd.f32 %v2326, %v2296
      %v2328 = vadd.f32 %v2327, %v2297
      %v2329 = vadd.f32 %v2328, %v2298
      %v2330 = vadd.f32 %v2329, %v2299
      %v2331 = vadd.f32 %v2330, %v2300
      %v2332 = vadd.f32 %v2331, %v2301
      %v2333 = vadd.f32 %v2332, %v2302
      %v2334 = vadd.f32 %v2333, %v2303
      %v2335 = vadd.f32 %v2334, %v2304
      %v2336 = vadd.f32 %v2335, %v2305
      %v2337 = vadd.f32 %v2336, %v2306
      %v2338 = vadd.f32 %v2337, %v2307
      %v2339 = vadd.f32 %v2338, %v2308
      %v2340 = vadd.f32 %v2339, %v2309
      %v2341 = vadd.f32 %v2340, %v2310
      %v2342 = vrot.slane %v2341, 4
      %v2343 = vadd.f32 %v2341, %v2342
      %v2344 = vrot.slane %v2343, 2
      %v2345 = vadd.f32 %v2343, %v2344
      %v2346 = vrot.slane %v2345, 1
      %v2347 = vadd.f32 %v2345, %v2346
      %v2348 = vsel %vm444, %v2278, %v2347
      %2349 = vst [vmem:[%s235] sm:$0x3] %v2348
      %p2350 = scmp.lt.s32.totalorder %s17, 1
      %s2351 = scalar_select %p2350, %s17, 1
      %s2352 = smul.addr %s2351, 32
      %s2353 = smul.addr %s2352, 4
      %s2354 = scalar_lea.vmem %s4, %s2353
      %p2355 = scmp.lt.s32.totalorder %s17, 1
      %s2356 = scalar_select %p2355, %s17, 1
      %s2357 = smul.addr %s2356, 2
      %s2358 = scalar_lea.vmem %s5, %s2357
      // Predicated region
      $region37: #{basic_block_forward.4} parent=35 // pred_check
        %p2359 = pneg %p124
      $region38: #{basic_block_forward.4} parent=35 // pred_check_branch
        %2361 = sbr.rel (%p2359) target = $region40
      $region39: #{basic_block_forward.4} parent=35 // pred_region
        _
      $region40: #{basic_block_forward.4} parent=35 // pred_fallthru
        _
      // Predicated region
      $region41: #{basic_block_forward.4} parent=35 // pred_check
        %p2362 = pneg %p150
      $region42: #{basic_block_forward.4} parent=35 // pred_check_branch
        %2364 = sbr.rel (%p2362) target = $region44
      $region43: #{basic_block_forward.4} parent=35 // pred_region
        _
      $region44: #{basic_block_forward.4} parent=35 // pred_fallthru
        _
    $region36: #{basic_block_forward.4} parent=5 // pred_fallthru
      _
    %p2365 = scmp.le.s32.totalorder 2, %s12
    // Predicated region
    $region45: #{basic_block_forward.4} parent=5 // pred_check
      %p2366 = pneg %p2365
    $region46: #{basic_block_forward.4} parent=5 // pred_check_branch
      %2368 = sbr.rel (%p2366) target = $region48
    $region47: #{basic_block_forward.4} parent=5 // pred_region
      %s2369 = ssub.s32 %s12, 2
      // Predicated region
      $region49: #{basic_block_forward.4} parent=47 // pred_check
        %p2370 = pneg %p130
      $region50: #{basic_block_forward.4} parent=47 // pred_check_branch
        %2372 = sbr.rel (%p2370) target = $region52
      $region51: #{basic_block_forward.4} parent=47 // pred_region
        %p2373 = scmp.lt.s32.totalorder %s18, 1
        %s2374 = scalar_select %p2373, %s18, 1
        %s2375 = smul.addr %s2374, 32
        %s2376 = smul.addr %s2375, 4
        %s2377 = scalar_lea.vmem %s4, %s2376
      $region52: #{basic_block_forward.4} parent=47 // pred_fallthru
        _
      // Predicated region
      $region53: #{basic_block_forward.4} parent=47 // pred_check
        %p2378 = pneg %p156
      $region54: #{basic_block_forward.4} parent=47 // pred_check_branch
        %2380 = sbr.rel (%p2378) target = $region56
      $region55: #{basic_block_forward.4} parent=47 // pred_region
        %p2381 = scmp.lt.s32.totalorder %s18, 1
        %s2382 = scalar_select %p2381, %s18, 1
        %s2383 = smul.addr %s2382, 2
        %s2384 = scalar_lea.vmem %s5, %s2383
      $region56: #{basic_block_forward.4} parent=47 // pred_fallthru
        _
    $region48: #{basic_block_forward.4} parent=5 // pred_fallthru
      _
  $region6: #{basic_block_forward.4} parent=0 // loop_footer
    %s16 = sadd.s32 1, %s12
  $region7: #{basic_block_forward.4} parent=0 // loop_footer_branch
    %11 = sbr.rel target = $region3
  $region8: #{basic_block_forward.4} parent=0 // loop_exit
    _

// kernel: basic_block_forward.3
$region0: #{basic_block_forward.3}
  #allocation0 [shape = 'u32[]', space=smem, size = 0x4, offset = 0x4, fixed_abs, tag = 'smem constant byte address 0x4 - core index']
  #allocation1 [shape = 'u32[144,128]{1,0:T(1,128)}', space=vmem, size = 0x12000, scoped, tag = 'internal scratch']
  %s0 = inlined_call_operand.vmem [shape: f32[2,18,18,8], index: 0, kind: input, shape index: {}]
  %s1 = inlined_call_operand.vmem [shape: bf16[72,128], index: 1, kind: input, shape index: {}]
  %s2 = inlined_call_operand.vmem [shape: bf16[2,16,16,128], index: 2, kind: output, shape index: {0}]
  %s3 = inlined_call_operand.vmem [shape: f32[2,2,128], index: 3, kind: output, shape index: {1}]
  %4 = xla_tuple %s2, %s3
  %s5 = sld [smem:[#allocation0]]
  $region49: #{basic_block_forward.3} parent=0
    _
  %s7 = ssub.s32 1, %s5
  %s8 = scalar_select 0, %s7, %s5
  loop: start=0, step=1, limit=4
  $region2: #{basic_block_forward.3} parent=0 // loop_pre_header
    _
  $region3: #{basic_block_forward.3} parent=0 // loop_header
    %s10 = sphi 0, %s14
    %p11 = scmp.ge.s32.totalorder %s10, 4
    %s20 = sphi 0, %s22
    %s23 = sphi 0, %s20
    %s24 = sphi 0, %s23
    %s40 = sphi 0, %s24
    %s44 = sphi 0, %s44
    %s46 = sphi 0, %s44
    %s47 = sphi 0, %s46
    %s61 = sphi 0, %s47
    %s67 = sphi 0, %s69
    %s70 = sphi 0, %s67
    %s71 = sphi 0, %s70
    %s87 = sphi 0, %s71
    %s93 = sphi 0, %s95
    %s96 = sphi 0, %s93
    %s97 = sphi 0, %s96
    %s113 = sphi 0, %s97
  $region4: #{basic_block_forward.3} parent=0 // loop_header_branch
    %13 = sbr.rel (%p11) target = $region8
  $region5: #{basic_block_forward.3} parent=0 // loop_body
    %s15 = ssub.s32 %s10, 1
    %s16 = ssub.s32 %s10, 2
    %s17 = sadd.s32 %s10, 1
    %s18 = ssub.s32 %s10, %s17
    %p19 = scmp.eq.s32.totalorder %s18, 0
    %s21 = sadd.s32 %s20, 1
    %s22 = scalar_select %p19, %s20, %s21
    %p25 = pneg %p19
    %p26 = scmp.eq.s32.totalorder %s10, 1
    %p27 = por %p25, %p26
    %p28 = scmp.ne.s32.totalorder %s20, %s23
    %p29 = scmp.eq.s32.totalorder %s10, 0
    %p30 = por %p28, %p29
    %p31 = scmp.ne.s32.totalorder %s20, %s23
    %p32 = scmp.eq.s32.totalorder %s15, 1
    %p33 = por %p31, %p32
    %p34 = scmp.ne.s32.totalorder %s23, %s24
    %p35 = scmp.eq.s32.totalorder %s15, 0
    %p36 = por %p34, %p35
    %p37 = scmp.ne.s32.totalorder %s23, %s24
    %p38 = scmp.eq.s32.totalorder %s16, 1
    %p39 = por %p37, %p38
    %p41 = scmp.ne.s32.totalorder %s24, %s40
    %p42 = scmp.eq.s32.totalorder %s16, 0
    %p43 = por %p41, %p42
    %s45 = sadd.s32 %s44, 1
    %p48 = scmp.eq.s32.totalorder %s10, 1
    %p49 = scmp.ne.s32.totalorder %s44, %s46
    %p50 = scmp.eq.s32.totalorder %s10, 0
    %p51 = por %p49, %p50
    %p52 = scmp.ne.s32.totalorder %s44, %s46
    %p53 = scmp.eq.s32.totalorder %s15, 1
    %p54 = por %p52, %p53
    %p55 = scmp.ne.s32.totalorder %s46, %s47
    %p56 = scmp.eq.s32.totalorder %s15, 0
    %p57 = por %p55, %p56
    %p58 = scmp.ne.s32.totalorder %s46, %s47
    %p59 = scmp.eq.s32.totalorder %s16, 1
    %p60 = por %p58, %p59
    %p62 = scmp.ne.s32.totalorder %s47, %s61
    %p63 = scmp.eq.s32.totalorder %s16, 0
    %p64 = por %p62, %p63
    %s65 = ssub.s32 %s10, %s17
    %p66 = scmp.eq.s32.totalorder %s65, 0
    %s68 = sadd.s32 %s67, 1
    %s69 = scalar_select %p66, %s67, %s68
    %p72 = pneg %p66
    %p73 = scmp.eq.s32.totalorder %s10, 1
    %p74 = por %p72, %p73
    %p75 = scmp.ne.s32.totalorder %s67, %s70
    %p76 = scmp.eq.s32.totalorder %s10, 0
    %p77 = por %p75, %p76
    %p78 = scmp.ne.s32.totalorder %s67, %s70
    %p79 = scmp.eq.s32.totalorder %s15, 1
    %p80 = por %p78, %p79
    %p81 = scmp.ne.s32.totalorder %s70, %s71
    %p82 = scmp.eq.s32.totalorder %s15, 0
    %p83 = por %p81, %p82
    %p84 = scmp.ne.s32.totalorder %s70, %s71
    %p85 = scmp.eq.s32.totalorder %s16, 1
    %p86 = por %p84, %p85
    %p88 = scmp.ne.s32.totalorder %s71, %s87
    %p89 = scmp.eq.s32.totalorder %s16, 0
    %p90 = por %p88, %p89
    %s91 = ssub.s32 %s10, %s17
    %p92 = scmp.eq.s32.totalorder %s91, 0
    %s94 = sadd.s32 %s93, 1
    %s95 = scalar_select %p92, %s93, %s94
    %p98 = pneg %p92
    %p99 = scmp.eq.s32.totalorder %s10, 1
    %p100 = por %p98, %p99
    %p101 = scmp.ne.s32.totalorder %s93, %s96
    %p102 = scmp.eq.s32.totalorder %s10, 0
    %p103 = por %p101, %p102
    %p104 = scmp.ne.s32.totalorder %s93, %s96
    %p105 = scmp.eq.s32.totalorder %s15, 1
    %p106 = por %p104, %p105
    %p107 = scmp.ne.s32.totalorder %s96, %s97
    %p108 = scmp.eq.s32.totalorder %s15, 0
    %p109 = por %p107, %p108
    %p110 = scmp.ne.s32.totalorder %s96, %s97
    %p111 = scmp.eq.s32.totalorder %s16, 1
    %p112 = por %p110, %p111
    %p114 = scmp.ne.s32.totalorder %s97, %s113
    %p115 = scmp.eq.s32.totalorder %s16, 0
    %p116 = por %p114, %p115
    %p117 = scmp.le.s32.totalorder 1, %s10
    %p118 = scmp.lt.s32.totalorder %s10, 3
    %p119 = pnand %p117, %p118
    %p120 = pneg %p119
    // Predicated region
    $region9: #{basic_block_forward.3} parent=5 // pred_check
      _
    $region10: #{basic_block_forward.3} parent=5 // pred_check_branch
      %122 = sbr.rel (%p119) target = $region12
    $region11: #{basic_block_forward.3} parent=5 // pred_region
      %s123 = ssub.s32 %s10, 1
      // Predicated region
      $region13: #{basic_block_forward.3} parent=11 // pred_check
        %p124 = pneg %p57
      $region14: #{basic_block_forward.3} parent=11 // pred_check_branch
        %126 = sbr.rel (%p124) target = $region16
      $region15: #{basic_block_forward.3} parent=11 // pred_region
        _
      $region16: #{basic_block_forward.3} parent=11 // pred_fallthru
        _
    $region12: #{basic_block_forward.3} parent=5 // pred_fallthru
      _
    %p127 = scmp.lt.s32.totalorder %s10, 2
    // Predicated region
    $region17: #{basic_block_forward.3} parent=5 // pred_check
      %p128 = pneg %p127
    $region18: #{basic_block_forward.3} parent=5 // pred_check_branch
      %130 = sbr.rel (%p128) target = $region20
    $region19: #{basic_block_forward.3} parent=5 // pred_region
      // Predicated region
      $region21: #{basic_block_forward.3} parent=19 // pred_check
        %p131 = pneg %p30
      $region22: #{basic_block_forward.3} parent=19 // pred_check_branch
        %133 = sbr.rel (%p131) target = $region24
      $region23: #{basic_block_forward.3} parent=19 // pred_region
        %p134 = scmp.lt.s32.totalorder %s10, 1
        %s135 = scalar_select %p134, %s10, 1
        %s136 = smul.addr %s135, 54
        %s137 = smul.addr %s136, 8
        %s138 = scalar_lea.vmem %s0, %s137
      $region24: #{basic_block_forward.3} parent=19 // pred_fallthru
        _
    $region20: #{basic_block_forward.3} parent=5 // pred_fallthru
      _
    %p139 = scmp.le.s32.totalorder 1, %s10
    %p140 = scmp.lt.s32.totalorder %s10, 3
    %p141 = pnand %p139, %p140
    %p142 = pneg %p141
    // Predicated region
    $region25: #{basic_block_forward.3} parent=5 // pred_check
      _
    $region26: #{basic_block_forward.3} parent=5 // pred_check_branch
      %144 = sbr.rel (%p141) target = $region28
    $region27: #{basic_block_forward.3} parent=5 // pred_region
      %s145 = ssub.s32 %s10, 1
      %p146 = scmp.lt.s32.totalorder %s15, 1
      %s147 = scalar_select %p146, %s15, 1
      %s148 = smul.addr %s147, 54
      %s149 = smul.addr %s148, 8
      %s150 = scalar_lea.vmem %s0, %s149
      %p151 = pneg %p36
      %p152 = pneg %p33
      %p153 = pneg %p57
      %p154 = pneg %p54
      %p155 = pneg %p83
      %p156 = pneg %p80
      %p157 = scmp.lt.s32.totalorder %s15, 1
      %s158 = scalar_select %p157, %s15, 1
      %s159 = smul.addr %s158, 32
      %s160 = smul.addr %s159, 4
      %s161 = scalar_lea.vmem %s2, %s160
      %p162 = pneg %p109
      %p163 = pneg %p106
      %p164 = scmp.lt.s32.totalorder %s15, 1
      %s165 = scalar_select %p164, %s15, 1
      %s166 = smul.addr %s165, 2
      %s167 = scalar_lea.vmem %s3, %s166
      %p168 = scmp.lt.s32.totalorder %s15, 1
      %s169 = scalar_select %p168, %s15, 1
      %s170 = smul.addr %s169, 54
      %s171 = smul.addr %s170, 8
      %s172 = scalar_lea.vmem %s0, %s171
      %p173 = scmp.lt.s32.totalorder %s15, 1
      %s174 = scalar_select %p173, %s15, 1
      %s175 = smul.addr %s174, 32
      %s176 = smul.addr %s175, 4
      %s177 = scalar_lea.vmem %s2, %s176
      %p178 = scmp.lt.s32.totalorder %s15, 1
      %s179 = scalar_select %p178, %s15, 1
      %s180 = smul.addr %s179, 2
      %s181 = scalar_lea.vmem %s3, %s180
      %v183 = vld [vmem:[%s172] sm:$0xff]
      %v184 = vld [vmem:[%s172 + $0x8] sm:$0xff]
      %v185 = vld [vmem:[%s172 + $0x18] sm:$0xff]
      %v186 = vld [vmem:[%s172 + $0x20] sm:$0xff]
      %v187 = vld [vmem:[%s172 + $0x30] sm:$0xff]
      %v188 = vld [vmem:[%s172 + $0x38] sm:$0xff]
      %v189 = vld [vmem:[%s172 + $0x48] sm:$0xff]
      %v190 = vld [vmem:[%s172 + $0x50] sm:$0xff]
      %v191 = vld [vmem:[%s172 + $0x60] sm:$0xff]
      %v192 = vld [vmem:[%s172 + $0x68] sm:$0xff]
      %v193 = vld [vmem:[%s172 + $0x78] sm:$0xff]
      %v194 = vld [vmem:[%s172 + $0x80] sm:$0xff]
      %v195 = vld [vmem:[%s172 + $0x90] sm:$0xff]
      %v196 = vld [vmem:[%s172 + $0x98] sm:$0xff]
      %v197 = vld [vmem:[%s172 + $0xa8] sm:$0xff]
      %v198 = vld [vmem:[%s172 + $0xb0] sm:$0xff]
      %v199 = vld [vmem:[%s172 + $0xc0] sm:$0xff]
      %v200 = vld [vmem:[%s172 + $0xc8] sm:$0xff]
      %v201 = vld [vmem:[%s172 + $0xd8] sm:$0xff]
      %v202 = vld [vmem:[%s172 + $0xe0] sm:$0xff]
      %v203 = vld [vmem:[%s172 + $0xf0] sm:$0xff]
      %v204 = vld [vmem:[%s172 + $0xf8] sm:$0xff]
      %v205 = vld [vmem:[%s172 + $0x108] sm:$0xff]
      %v206 = vld [vmem:[%s172 + $0x110] sm:$0xff]
      %v207 = vld [vmem:[%s172 + $0x120] sm:$0xff]
      %v208 = vld [vmem:[%s172 + $0x128] sm:$0xff]
      %v209 = vld [vmem:[%s172 + $0x138] sm:$0xff]
      %v210 = vld [vmem:[%s172 + $0x140] sm:$0xff]
      %v211 = vld [vmem:[%s172 + $0x150] sm:$0xff]
      %v212 = vld [vmem:[%s172 + $0x158] sm:$0xff]
      %v213 = vld [vmem:[%s172 + $0x168] sm:$0xff]
      %v214 = vld [vmem:[%s172 + $0x170] sm:$0xff]
      %v215 = vld [vmem:[%s172 + $0x1] sm:$0xff]
      %v216 = vld [vmem:[%s172 + $0x9] sm:$0xff]
      %v217 = vld [vmem:[%s172 + $0x19] sm:$0xff]
      %v218 = vld [vmem:[%s172 + $0x21] sm:$0xff]
      %v219 = vld [vmem:[%s172 + $0x31] sm:$0xff]
      %v220 = vld [vmem:[%s172 + $0x39] sm:$0xff]
      %v221 = vld [vmem:[%s172 + $0x49] sm:$0xff]
      %v222 = vld [vmem:[%s172 + $0x51] sm:$0xff]
      %v223 = vld [vmem:[%s172 + $0x61] sm:$0xff]
      %v224 = vld [vmem:[%s172 + $0x69] sm:$0xff]
      %v225 = vld [vmem:[%s172 + $0x79] sm:$0xff]
      %v226 = vld [vmem:[%s172 + $0x81] sm:$0xff]
      %v227 = vld [vmem:[%s172 + $0x91] sm:$0xff]
      %v228 = vld [vmem:[%s172 + $0x99] sm:$0xff]
      %v229 = vld [vmem:[%s172 + $0xa9] sm:$0xff]
      %v230 = vld [vmem:[%s172 + $0xb1] sm:$0xff]
      %v231 = vld [vmem:[%s172 + $0xc1] sm:$0xff]
      %v232 = vld [vmem:[%s172 + $0xc9] sm:$0xff]
      %v233 = vld [vmem:[%s172 + $0xd9] sm:$0xff]
      %v234 = vld [vmem:[%s172 + $0xe1] sm:$0xff]
      %v235 = vld [vmem:[%s172 + $0xf1] sm:$0xff]
      %v236 = vld [vmem:[%s172 + $0xf9] sm:$0xff]
      %v237 = vld [vmem:[%s172 + $0x109] sm:$0xff]
      %v238 = vld [vmem:[%s172 + $0x111] sm:$0xff]
      %v239 = vld [vmem:[%s172 + $0x121] sm:$0xff]
      %v240 = vld [vmem:[%s172 + $0x129] sm:$0xff]
      %v241 = vld [vmem:[%s172 + $0x139] sm:$0xff]
      %v242 = vld [vmem:[%s172 + $0x141] sm:$0xff]
      %v243 = vld [vmem:[%s172 + $0x151] sm:$0xff]
      %v244 = vld [vmem:[%s172 + $0x159] sm:$0xff]
      %v245 = vld [vmem:[%s172 + $0x169] sm:$0xff]
      %v246 = vld [vmem:[%s172 + $0x171] sm:$0xff]
      %v247 = vld [vmem:[%s172 + $0x2] sm:$0xff]
      %v248 = vld [vmem:[%s172 + $0xa] sm:$0xff]
      %v249 = vld [vmem:[%s172 + $0x1a] sm:$0xff]
      %v250 = vld [vmem:[%s172 + $0x22] sm:$0xff]
      %v251 = vld [vmem:[%s172 + $0x32] sm:$0xff]
      %v252 = vld [vmem:[%s172 + $0x3a] sm:$0xff]
      %v253 = vld [vmem:[%s172 + $0x4a] sm:$0xff]
      %v254 = vld [vmem:[%s172 + $0x52] sm:$0xff]
      %v255 = vld [vmem:[%s172 + $0x62] sm:$0xff]
      %v256 = vld [vmem:[%s172 + $0x6a] sm:$0xff]
      %v257 = vld [vmem:[%s172 + $0x7a] sm:$0xff]
      %v258 = vld [vmem:[%s172 + $0x82] sm:$0xff]
      %v259 = vld [vmem:[%s172 + $0x92] sm:$0xff]
      %v260 = vld [vmem:[%s172 + $0x9a] sm:$0xff]
      %v261 = vld [vmem:[%s172 + $0xaa] sm:$0xff]
      %v262 = vld [vmem:[%s172 + $0xb2] sm:$0xff]
      %v263 = vld [vmem:[%s172 + $0xc2] sm:$0xff]
      %v264 = vld [vmem:[%s172 + $0xca] sm:$0xff]
      %v265 = vld [vmem:[%s172 + $0xda] sm:$0xff]
      %v266 = vld [vmem:[%s172 + $0xe2] sm:$0xff]
      %v267 = vld [vmem:[%s172 + $0xf2] sm:$0xff]
      %v268 = vld [vmem:[%s172 + $0xfa] sm:$0xff]
      %v269 = vld [vmem:[%s172 + $0x10a] sm:$0xff]
      %v270 = vld [vmem:[%s172 + $0x112] sm:$0xff]
      %v271 = vld [vmem:[%s172 + $0x122] sm:$0xff]
      %v272 = vld [vmem:[%s172 + $0x12a] sm:$0xff]
      %v273 = vld [vmem:[%s172 + $0x13a] sm:$0xff]
      %v274 = vld [vmem:[%s172 + $0x142] sm:$0xff]
      %v275 = vld [vmem:[%s172 + $0x152] sm:$0xff]
      %v276 = vld [vmem:[%s172 + $0x15a] sm:$0xff]
      %v277 = vld [vmem:[%s172 + $0x16a] sm:$0xff]
      %v278 = vld [vmem:[%s172 + $0x172] sm:$0xff]
      %s279 = scalar_lea.vmem %s172, 24
      %v280 = vld [vmem:[%s279] sm:$0xff]
      %v281 = vld [vmem:[%s279 + $0x8] sm:$0xff]
      %v282 = vld [vmem:[%s279 + $0x18] sm:$0xff]
      %v283 = vld [vmem:[%s279 + $0x20] sm:$0xff]
      %v284 = vld [vmem:[%s279 + $0x30] sm:$0xff]
      %v285 = vld [vmem:[%s279 + $0x38] sm:$0xff]
      %v286 = vld [vmem:[%s279 + $0x48] sm:$0xff]
      %v287 = vld [vmem:[%s279 + $0x50] sm:$0xff]
      %v288 = vld [vmem:[%s279 + $0x60] sm:$0xff]
      %v289 = vld [vmem:[%s279 + $0x68] sm:$0xff]
      %v290 = vld [vmem:[%s279 + $0x78] sm:$0xff]
      %v291 = vld [vmem:[%s279 + $0x80] sm:$0xff]
      %v292 = vld [vmem:[%s279 + $0x90] sm:$0xff]
      %v293 = vld [vmem:[%s279 + $0x98] sm:$0xff]
      %v294 = vld [vmem:[%s279 + $0xa8] sm:$0xff]
      %v295 = vld [vmem:[%s279 + $0xb0] sm:$0xff]
      %v296 = vld [vmem:[%s279 + $0xc0] sm:$0xff]
      %v297 = vld [vmem:[%s279 + $0xc8] sm:$0xff]
      %v298 = vld [vmem:[%s279 + $0xd8] sm:$0xff]
      %v299 = vld [vmem:[%s279 + $0xe0] sm:$0xff]
      %v300 = vld [vmem:[%s279 + $0xf0] sm:$0xff]
      %v301 = vld [vmem:[%s279 + $0xf8] sm:$0xff]
      %v302 = vld [vmem:[%s279 + $0x108] sm:$0xff]
      %v303 = vld [vmem:[%s279 + $0x110] sm:$0xff]
      %v304 = vld [vmem:[%s279 + $0x120] sm:$0xff]
      %v305 = vld [vmem:[%s279 + $0x128] sm:$0xff]
      %v306 = vld [vmem:[%s279 + $0x138] sm:$0xff]
      %v307 = vld [vmem:[%s279 + $0x140] sm:$0xff]
      %v308 = vld [vmem:[%s279 + $0x150] sm:$0xff]
      %v309 = vld [vmem:[%s279 + $0x158] sm:$0xff]
      %v310 = vld [vmem:[%s279 + $0x168] sm:$0xff]
      %v311 = vld [vmem:[%s279 + $0x170] sm:$0xff]
      %v312 = vld [vmem:[%s279 + $0x1] sm:$0xff]
      %v313 = vld [vmem:[%s279 + $0x9] sm:$0xff]
      %v314 = vld [vmem:[%s279 + $0x19] sm:$0xff]
      %v315 = vld [vmem:[%s279 + $0x21] sm:$0xff]
      %v316 = vld [vmem:[%s279 + $0x31] sm:$0xff]
      %v317 = vld [vmem:[%s279 + $0x39] sm:$0xff]
      %v318 = vld [vmem:[%s279 + $0x49] sm:$0xff]
      %v319 = vld [vmem:[%s279 + $0x51] sm:$0xff]
      %v320 = vld [vmem:[%s279 + $0x61] sm:$0xff]
      %v321 = vld [vmem:[%s279 + $0x69] sm:$0xff]
      %v322 = vld [vmem:[%s279 + $0x79] sm:$0xff]
      %v323 = vld [vmem:[%s279 + $0x81] sm:$0xff]
      %v324 = vld [vmem:[%s279 + $0x91] sm:$0xff]
      %v325 = vld [vmem:[%s279 + $0x99] sm:$0xff]
      %v326 = vld [vmem:[%s279 + $0xa9] sm:$0xff]
      %v327 = vld [vmem:[%s279 + $0xb1] sm:$0xff]
      %v328 = vld [vmem:[%s279 + $0xc1] sm:$0xff]
      %v329 = vld [vmem:[%s279 + $0xc9] sm:$0xff]
      %v330 = vld [vmem:[%s279 + $0xd9] sm:$0xff]
      %v331 = vld [vmem:[%s279 + $0xe1] sm:$0xff]
      %v332 = vld [vmem:[%s279 + $0xf1] sm:$0xff]
      %v333 = vld [vmem:[%s279 + $0xf9] sm:$0xff]
      %v334 = vld [vmem:[%s279 + $0x109] sm:$0xff]
      %v335 = vld [vmem:[%s279 + $0x111] sm:$0xff]
      %v336 = vld [vmem:[%s279 + $0x121] sm:$0xff]
      %v337 = vld [vmem:[%s279 + $0x129] sm:$0xff]
      %v338 = vld [vmem:[%s279 + $0x139] sm:$0xff]
      %v339 = vld [vmem:[%s279 + $0x141] sm:$0xff]
      %v340 = vld [vmem:[%s279 + $0x151] sm:$0xff]
      %v341 = vld [vmem:[%s279 + $0x159] sm:$0xff]
      %v342 = vld [vmem:[%s279 + $0x169] sm:$0xff]
      %v343 = vld [vmem:[%s279 + $0x171] sm:$0xff]
      %v344 = vld [vmem:[%s279 + $0x2] sm:$0xff]
      %v345 = vld [vmem:[%s279 + $0xa] sm:$0xff]
      %v346 = vld [vmem:[%s279 + $0x1a] sm:$0xff]
      %v347 = vld [vmem:[%s279 + $0x22] sm:$0xff]
      %v348 = vld [vmem:[%s279 + $0x32] sm:$0xff]
      %v349 = vld [vmem:[%s279 + $0x3a] sm:$0xff]
      %v350 = vld [vmem:[%s279 + $0x4a] sm:$0xff]
      %v351 = vld [vmem:[%s279 + $0x52] sm:$0xff]
      %v352 = vld [vmem:[%s279 + $0x62] sm:$0xff]
      %v353 = vld [vmem:[%s279 + $0x6a] sm:$0xff]
      %v354 = vld [vmem:[%s279 + $0x7a] sm:$0xff]
      %v355 = vld [vmem:[%s279 + $0x82] sm:$0xff]
      %v356 = vld [vmem:[%s279 + $0x92] sm:$0xff]
      %v357 = vld [vmem:[%s279 + $0x9a] sm:$0xff]
      %v358 = vld [vmem:[%s279 + $0xaa] sm:$0xff]
      %v359 = vld [vmem:[%s279 + $0xb2] sm:$0xff]
      %v360 = vld [vmem:[%s279 + $0xc2] sm:$0xff]
      %v361 = vld [vmem:[%s279 + $0xca] sm:$0xff]
      %v362 = vld [vmem:[%s279 + $0xda] sm:$0xff]
      %v363 = vld [vmem:[%s279 + $0xe2] sm:$0xff]
      %v364 = vld [vmem:[%s279 + $0xf2] sm:$0xff]
      %v365 = vld [vmem:[%s279 + $0xfa] sm:$0xff]
      %v366 = vld [vmem:[%s279 + $0x10a] sm:$0xff]
      %v367 = vld [vmem:[%s279 + $0x112] sm:$0xff]
      %v368 = vld [vmem:[%s279 + $0x122] sm:$0xff]
      %v369 = vld [vmem:[%s279 + $0x12a] sm:$0xff]
      %v370 = vld [vmem:[%s279 + $0x13a] sm:$0xff]
      %v371 = vld [vmem:[%s279 + $0x142] sm:$0xff]
      %v372 = vld [vmem:[%s279 + $0x152] sm:$0xff]
      %v373 = vld [vmem:[%s279 + $0x15a] sm:$0xff]
      %v374 = vld [vmem:[%s279 + $0x16a] sm:$0xff]
      %v375 = vld [vmem:[%s279 + $0x172] sm:$0xff]
      %s376 = scalar_lea.vmem %s172, 48
      %v377 = vld [vmem:[%s376] sm:$0xff]
      %v378 = vld [vmem:[%s376 + $0x8] sm:$0xff]
      %v379 = vld [vmem:[%s376 + $0x18] sm:$0xff]
      %v380 = vld [vmem:[%s376 + $0x20] sm:$0xff]
      %v381 = vld [vmem:[%s376 + $0x30] sm:$0xff]
      %v382 = vld [vmem:[%s376 + $0x38] sm:$0xff]
      %v383 = vld [vmem:[%s376 + $0x48] sm:$0xff]
      %v384 = vld [vmem:[%s376 + $0x50] sm:$0xff]
      %v385 = vld [vmem:[%s376 + $0x60] sm:$0xff]
      %v386 = vld [vmem:[%s376 + $0x68] sm:$0xff]
      %v387 = vld [vmem:[%s376 + $0x78] sm:$0xff]
      %v388 = vld [vmem:[%s376 + $0x80] sm:$0xff]
      %v389 = vld [vmem:[%s376 + $0x90] sm:$0xff]
      %v390 = vld [vmem:[%s376 + $0x98] sm:$0xff]
      %v391 = vld [vmem:[%s376 + $0xa8] sm:$0xff]
      %v392 = vld [vmem:[%s376 + $0xb0] sm:$0xff]
      %v393 = vld [vmem:[%s376 + $0xc0] sm:$0xff]
      %v394 = vld [vmem:[%s376 + $0xc8] sm:$0xff]
      %v395 = vld [vmem:[%s376 + $0xd8] sm:$0xff]
      %v396 = vld [vmem:[%s376 + $0xe0] sm:$0xff]
      %v397 = vld [vmem:[%s376 + $0xf0] sm:$0xff]
      %v398 = vld [vmem:[%s376 + $0xf8] sm:$0xff]
      %v399 = vld [vmem:[%s376 + $0x108] sm:$0xff]
      %v400 = vld [vmem:[%s376 + $0x110] sm:$0xff]
      %v401 = vld [vmem:[%s376 + $0x120] sm:$0xff]
      %v402 = vld [vmem:[%s376 + $0x128] sm:$0xff]
      %v403 = vld [vmem:[%s376 + $0x138] sm:$0xff]
      %v404 = vld [vmem:[%s376 + $0x140] sm:$0xff]
      %v405 = vld [vmem:[%s376 + $0x150] sm:$0xff]
      %v406 = vld [vmem:[%s376 + $0x158] sm:$0xff]
      %v407 = vld [vmem:[%s376 + $0x168] sm:$0xff]
      %v408 = vld [vmem:[%s376 + $0x170] sm:$0xff]
      %v409 = vld [vmem:[%s376 + $0x1] sm:$0xff]
      %v410 = vld [vmem:[%s376 + $0x9] sm:$0xff]
      %v411 = vld [vmem:[%s376 + $0x19] sm:$0xff]
      %v412 = vld [vmem:[%s376 + $0x21] sm:$0xff]
      %v413 = vld [vmem:[%s376 + $0x31] sm:$0xff]
      %v414 = vld [vmem:[%s376 + $0x39] sm:$0xff]
      %v415 = vld [vmem:[%s376 + $0x49] sm:$0xff]
      %v416 = vld [vmem:[%s376 + $0x51] sm:$0xff]
      %v417 = vld [vmem:[%s376 + $0x61] sm:$0xff]
      %v418 = vld [vmem:[%s376 + $0x69] sm:$0xff]
      %v419 = vld [vmem:[%s376 + $0x79] sm:$0xff]
      %v420 = vld [vmem:[%s376 + $0x81] sm:$0xff]
      %v421 = vld [vmem:[%s376 + $0x91] sm:$0xff]
      %v422 = vld [vmem:[%s376 + $0x99] sm:$0xff]
      %v423 = vld [vmem:[%s376 + $0xa9] sm:$0xff]
      %v424 = vld [vmem:[%s376 + $0xb1] sm:$0xff]
      %v425 = vld [vmem:[%s376 + $0xc1] sm:$0xff]
      %v426 = vld [vmem:[%s376 + $0xc9] sm:$0xff]
      %v427 = vld [vmem:[%s376 + $0xd9] sm:$0xff]
      %v428 = vld [vmem:[%s376 + $0xe1] sm:$0xff]
      %v429 = vld [vmem:[%s376 + $0xf1] sm:$0xff]
      %v430 = vld [vmem:[%s376 + $0xf9] sm:$0xff]
      %v431 = vld [vmem:[%s376 + $0x109] sm:$0xff]
      %v432 = vld [vmem:[%s376 + $0x111] sm:$0xff]
      %v433 = vld [vmem:[%s376 + $0x121] sm:$0xff]
      %v434 = vld [vmem:[%s376 + $0x129] sm:$0xff]
      %v435 = vld [vmem:[%s376 + $0x139] sm:$0xff]
      %v436 = vld [vmem:[%s376 + $0x141] sm:$0xff]
      %v437 = vld [vmem:[%s376 + $0x151] sm:$0xff]
      %v438 = vld [vmem:[%s376 + $0x159] sm:$0xff]
      %v439 = vld [vmem:[%s376 + $0x169] sm:$0xff]
      %v440 = vld [vmem:[%s376 + $0x171] sm:$0xff]
      %v441 = vld [vmem:[%s376 + $0x2] sm:$0xff]
      %v442 = vld [vmem:[%s376 + $0xa] sm:$0xff]
      %v443 = vld [vmem:[%s376 + $0x1a] sm:$0xff]
      %v444 = vld [vmem:[%s376 + $0x22] sm:$0xff]
      %v445 = vld [vmem:[%s376 + $0x32] sm:$0xff]
      %v446 = vld [vmem:[%s376 + $0x3a] sm:$0xff]
      %v447 = vld [vmem:[%s376 + $0x4a] sm:$0xff]
      %v448 = vld [vmem:[%s376 + $0x52] sm:$0xff]
      %v449 = vld [vmem:[%s376 + $0x62] sm:$0xff]
      %v450 = vld [vmem:[%s376 + $0x6a] sm:$0xff]
      %v451 = vld [vmem:[%s376 + $0x7a] sm:$0xff]
      %v452 = vld [vmem:[%s376 + $0x82] sm:$0xff]
      %v453 = vld [vmem:[%s376 + $0x92] sm:$0xff]
      %v454 = vld [vmem:[%s376 + $0x9a] sm:$0xff]
      %v455 = vld [vmem:[%s376 + $0xaa] sm:$0xff]
      %v456 = vld [vmem:[%s376 + $0xb2] sm:$0xff]
      %v457 = vld [vmem:[%s376 + $0xc2] sm:$0xff]
      %v458 = vld [vmem:[%s376 + $0xca] sm:$0xff]
      %v459 = vld [vmem:[%s376 + $0xda] sm:$0xff]
      %v460 = vld [vmem:[%s376 + $0xe2] sm:$0xff]
      %v461 = vld [vmem:[%s376 + $0xf2] sm:$0xff]
      %v462 = vld [vmem:[%s376 + $0xfa] sm:$0xff]
      %v463 = vld [vmem:[%s376 + $0x10a] sm:$0xff]
      %v464 = vld [vmem:[%s376 + $0x112] sm:$0xff]
      %v465 = vld [vmem:[%s376 + $0x122] sm:$0xff]
      %v466 = vld [vmem:[%s376 + $0x12a] sm:$0xff]
      %v467 = vld [vmem:[%s376 + $0x13a] sm:$0xff]
      %v468 = vld [vmem:[%s376 + $0x142] sm:$0xff]
      %v469 = vld [vmem:[%s376 + $0x152] sm:$0xff]
      %v470 = vld [vmem:[%s376 + $0x15a] sm:$0xff]
      %v471 = vld [vmem:[%s376 + $0x16a] sm:$0xff]
      %v472 = vld [vmem:[%s376 + $0x172] sm:$0xff]
      %505 = vrot.lane.b32.xlu0 %v215, 8
      %v506 = vpop.permute.xlu0 %505
      %507 = vrot.lane.b32.xlu0 %v216, 8
      %v508 = vpop.permute.xlu0 %507
      %509 = vrot.lane.b32.xlu0 %v217, 8
      %v510 = vpop.permute.xlu0 %509
      %511 = vrot.lane.b32.xlu0 %v218, 8
      %v512 = vpop.permute.xlu0 %511
      %513 = vrot.lane.b32.xlu0 %v219, 8
      %v514 = vpop.permute.xlu0 %513
      %515 = vrot.lane.b32.xlu0 %v220, 8
      %v516 = vpop.permute.xlu0 %515
      %517 = vrot.lane.b32.xlu0 %v221, 8
      %v518 = vpop.permute.xlu0 %517
      %519 = vrot.lane.b32.xlu0 %v222, 8
      %v520 = vpop.permute.xlu0 %519
      %521 = vrot.lane.b32.xlu0 %v223, 8
      %v522 = vpop.permute.xlu0 %521
      %523 = vrot.lane.b32.xlu0 %v224, 8
      %v524 = vpop.permute.xlu0 %523
      %525 = vrot.lane.b32.xlu0 %v225, 8
      %v526 = vpop.permute.xlu0 %525
      %527 = vrot.lane.b32.xlu0 %v226, 8
      %v528 = vpop.permute.xlu0 %527
      %529 = vrot.lane.b32.xlu0 %v227, 8
      %v530 = vpop.permute.xlu0 %529
      %531 = vrot.lane.b32.xlu0 %v228, 8
      %v532 = vpop.permute.xlu0 %531
      %533 = vrot.lane.b32.xlu0 %v229, 8
      %v534 = vpop.permute.xlu0 %533
      %535 = vrot.lane.b32.xlu0 %v230, 8
      %v536 = vpop.permute.xlu0 %535
      %537 = vrot.lane.b32.xlu0 %v231, 8
      %v538 = vpop.permute.xlu0 %537
      %539 = vrot.lane.b32.xlu0 %v232, 8
      %v540 = vpop.permute.xlu0 %539
      %541 = vrot.lane.b32.xlu0 %v233, 8
      %v542 = vpop.permute.xlu0 %541
      %543 = vrot.lane.b32.xlu0 %v234, 8
      %v544 = vpop.permute.xlu0 %543
      %545 = vrot.lane.b32.xlu0 %v235, 8
      %v546 = vpop.permute.xlu0 %545
      %547 = vrot.lane.b32.xlu0 %v236, 8
      %v548 = vpop.permute.xlu0 %547
      %549 = vrot.lane.b32.xlu0 %v237, 8
      %v550 = vpop.permute.xlu0 %549
      %551 = vrot.lane.b32.xlu0 %v238, 8
      %v552 = vpop.permute.xlu0 %551
      %553 = vrot.lane.b32.xlu0 %v239, 8
      %v554 = vpop.permute.xlu0 %553
      %555 = vrot.lane.b32.xlu0 %v240, 8
      %v556 = vpop.permute.xlu0 %555
      %557 = vrot.lane.b32.xlu0 %v241, 8
      %v558 = vpop.permute.xlu0 %557
      %559 = vrot.lane.b32.xlu0 %v242, 8
      %v560 = vpop.permute.xlu0 %559
      %561 = vrot.lane.b32.xlu0 %v243, 8
      %v562 = vpop.permute.xlu0 %561
      %563 = vrot.lane.b32.xlu0 %v244, 8
      %v564 = vpop.permute.xlu0 %563
      %565 = vrot.lane.b32.xlu0 %v245, 8
      %v566 = vpop.permute.xlu0 %565
      %567 = vrot.lane.b32.xlu0 %v246, 8
      %v568 = vpop.permute.xlu0 %567
      %633 = vrot.lane.b32.xlu0 %v247, 16
      %v634 = vpop.permute.xlu0 %633
      %635 = vrot.lane.b32.xlu0 %v248, 16
      %v636 = vpop.permute.xlu0 %635
      %637 = vrot.lane.b32.xlu0 %v249, 16
      %v638 = vpop.permute.xlu0 %637
      %639 = vrot.lane.b32.xlu0 %v250, 16
      %v640 = vpop.permute.xlu0 %639
      %641 = vrot.lane.b32.xlu0 %v251, 16
      %v642 = vpop.permute.xlu0 %641
      %643 = vrot.lane.b32.xlu0 %v252, 16
      %v644 = vpop.permute.xlu0 %643
      %645 = vrot.lane.b32.xlu0 %v253, 16
      %v646 = vpop.permute.xlu0 %645
      %647 = vrot.lane.b32.xlu0 %v254, 16
      %v648 = vpop.permute.xlu0 %647
      %649 = vrot.lane.b32.xlu0 %v255, 16
      %v650 = vpop.permute.xlu0 %649
      %651 = vrot.lane.b32.xlu0 %v256, 16
      %v652 = vpop.permute.xlu0 %651
      %653 = vrot.lane.b32.xlu0 %v257, 16
      %v654 = vpop.permute.xlu0 %653
      %655 = vrot.lane.b32.xlu0 %v258, 16
      %v656 = vpop.permute.xlu0 %655
      %657 = vrot.lane.b32.xlu0 %v259, 16
      %v658 = vpop.permute.xlu0 %657
      %659 = vrot.lane.b32.xlu0 %v260, 16
      %v660 = vpop.permute.xlu0 %659
      %661 = vrot.lane.b32.xlu0 %v261, 16
      %v662 = vpop.permute.xlu0 %661
      %663 = vrot.lane.b32.xlu0 %v262, 16
      %v664 = vpop.permute.xlu0 %663
      %665 = vrot.lane.b32.xlu0 %v263, 16
      %v666 = vpop.permute.xlu0 %665
      %667 = vrot.lane.b32.xlu0 %v264, 16
      %v668 = vpop.permute.xlu0 %667
      %669 = vrot.lane.b32.xlu0 %v265, 16
      %v670 = vpop.permute.xlu0 %669
      %671 = vrot.lane.b32.xlu0 %v266, 16
      %v672 = vpop.permute.xlu0 %671
      %673 = vrot.lane.b32.xlu0 %v267, 16
      %v674 = vpop.permute.xlu0 %673
      %675 = vrot.lane.b32.xlu0 %v268, 16
      %v676 = vpop.permute.xlu0 %675
      %677 = vrot.lane.b32.xlu0 %v269, 16
      %v678 = vpop.permute.xlu0 %677
      %679 = vrot.lane.b32.xlu0 %v270, 16
      %v680 = vpop.permute.xlu0 %679
      %681 = vrot.lane.b32.xlu0 %v271, 16
      %v682 = vpop.permute.xlu0 %681
      %683 = vrot.lane.b32.xlu0 %v272, 16
      %v684 = vpop.permute.xlu0 %683
      %685 = vrot.lane.b32.xlu0 %v273, 16
      %v686 = vpop.permute.xlu0 %685
      %687 = vrot.lane.b32.xlu0 %v274, 16
      %v688 = vpop.permute.xlu0 %687
      %689 = vrot.lane.b32.xlu0 %v275, 16
      %v690 = vpop.permute.xlu0 %689
      %691 = vrot.lane.b32.xlu0 %v276, 16
      %v692 = vpop.permute.xlu0 %691
      %693 = vrot.lane.b32.xlu0 %v277, 16
      %v694 = vpop.permute.xlu0 %693
      %695 = vrot.lane.b32.xlu0 %v278, 16
      %v696 = vpop.permute.xlu0 %695
      %761 = vrot.lane.b32.xlu0 %v280, 24
      %v762 = vpop.permute.xlu0 %761
      %763 = vrot.lane.b32.xlu0 %v281, 24
      %v764 = vpop.permute.xlu0 %763
      %765 = vrot.lane.b32.xlu0 %v282, 24
      %v766 = vpop.permute.xlu0 %765
      %767 = vrot.lane.b32.xlu0 %v283, 24
      %v768 = vpop.permute.xlu0 %767
      %769 = vrot.lane.b32.xlu0 %v284, 24
      %v770 = vpop.permute.xlu0 %769
      %771 = vrot.lane.b32.xlu0 %v285, 24
      %v772 = vpop.permute.xlu0 %771
      %773 = vrot.lane.b32.xlu0 %v286, 24
      %v774 = vpop.permute.xlu0 %773
      %775 = vrot.lane.b32.xlu0 %v287, 24
      %v776 = vpop.permute.xlu0 %775
      %777 = vrot.lane.b32.xlu0 %v288, 24
      %v778 = vpop.permute.xlu0 %777
      %779 = vrot.lane.b32.xlu0 %v289, 24
      %v780 = vpop.permute.xlu0 %779
      %781 = vrot.lane.b32.xlu0 %v290, 24
      %v782 = vpop.permute.xlu0 %781
      %783 = vrot.lane.b32.xlu0 %v291, 24
      %v784 = vpop.permute.xlu0 %783
      %785 = vrot.lane.b32.xlu0 %v292, 24
      %v786 = vpop.permute.xlu0 %785
      %787 = vrot.lane.b32.xlu0 %v293, 24
      %v788 = vpop.permute.xlu0 %787
      %789 = vrot.lane.b32.xlu0 %v294, 24
      %v790 = vpop.permute.xlu0 %789
      %791 = vrot.lane.b32.xlu0 %v295, 24
      %v792 = vpop.permute.xlu0 %791
      %793 = vrot.lane.b32.xlu0 %v296, 24
      %v794 = vpop.permute.xlu0 %793
      %795 = vrot.lane.b32.xlu0 %v297, 24
      %v796 = vpop.permute.xlu0 %795
      %797 = vrot.lane.b32.xlu0 %v298, 24
      %v798 = vpop.permute.xlu0 %797
      %799 = vrot.lane.b32.xlu0 %v299, 24
      %v800 = vpop.permute.xlu0 %799
      %801 = vrot.lane.b32.xlu0 %v300, 24
      %v802 = vpop.permute.xlu0 %801
      %803 = vrot.lane.b32.xlu0 %v301, 24
      %v804 = vpop.permute.xlu0 %803
      %805 = vrot.lane.b32.xlu0 %v302, 24
      %v806 = vpop.permute.xlu0 %805
      %807 = vrot.lane.b32.xlu0 %v303, 24
      %v808 = vpop.permute.xlu0 %807
      %809 = vrot.lane.b32.xlu0 %v304, 24
      %v810 = vpop.permute.xlu0 %809
      %811 = vrot.lane.b32.xlu0 %v305, 24
      %v812 = vpop.permute.xlu0 %811
      %813 = vrot.lane.b32.xlu0 %v306, 24
      %v814 = vpop.permute.xlu0 %813
      %815 = vrot.lane.b32.xlu0 %v307, 24
      %v816 = vpop.permute.xlu0 %815
      %817 = vrot.lane.b32.xlu0 %v308, 24
      %v818 = vpop.permute.xlu0 %817
      %819 = vrot.lane.b32.xlu0 %v309, 24
      %v820 = vpop.permute.xlu0 %819
      %821 = vrot.lane.b32.xlu0 %v310, 24
      %v822 = vpop.permute.xlu0 %821
      %823 = vrot.lane.b32.xlu0 %v311, 24
      %v824 = vpop.permute.xlu0 %823
      %889 = vrot.lane.b32.xlu0 %v312, 32
      %v890 = vpop.permute.xlu0 %889
      %891 = vrot.lane.b32.xlu0 %v313, 32
      %v892 = vpop.permute.xlu0 %891
      %893 = vrot.lane.b32.xlu0 %v314, 32
      %v894 = vpop.permute.xlu0 %893
      %895 = vrot.lane.b32.xlu0 %v315, 32
      %v896 = vpop.permute.xlu0 %895
      %897 = vrot.lane.b32.xlu0 %v316, 32
      %v898 = vpop.permute.xlu0 %897
      %899 = vrot.lane.b32.xlu0 %v317, 32
      %v900 = vpop.permute.xlu0 %899
      %901 = vrot.lane.b32.xlu0 %v318, 32
      %v902 = vpop.permute.xlu0 %901
      %903 = vrot.lane.b32.xlu0 %v319, 32
      %v904 = vpop.permute.xlu0 %903
      %905 = vrot.lane.b32.xlu0 %v320, 32
      %v906 = vpop.permute.xlu0 %905
      %907 = vrot.lane.b32.xlu0 %v321, 32
      %v908 = vpop.permute.xlu0 %907
      %909 = vrot.lane.b32.xlu0 %v322, 32
      %v910 = vpop.permute.xlu0 %909
      %911 = vrot.lane.b32.xlu0 %v323, 32
      %v912 = vpop.permute.xlu0 %911
      %913 = vrot.lane.b32.xlu0 %v324, 32
      %v914 = vpop.permute.xlu0 %913
      %915 = vrot.lane.b32.xlu0 %v325, 32
      %v916 = vpop.permute.xlu0 %915
      %917 = vrot.lane.b32.xlu0 %v326, 32
      %v918 = vpop.permute.xlu0 %917
      %919 = vrot.lane.b32.xlu0 %v327, 32
      %v920 = vpop.permute.xlu0 %919
      %921 = vrot.lane.b32.xlu0 %v328, 32
      %v922 = vpop.permute.xlu0 %921
      %923 = vrot.lane.b32.xlu0 %v329, 32
      %v924 = vpop.permute.xlu0 %923
      %925 = vrot.lane.b32.xlu0 %v330, 32
      %v926 = vpop.permute.xlu0 %925
      %927 = vrot.lane.b32.xlu0 %v331, 32
      %v928 = vpop.permute.xlu0 %927
      %929 = vrot.lane.b32.xlu0 %v332, 32
      %v930 = vpop.permute.xlu0 %929
      %931 = vrot.lane.b32.xlu0 %v333, 32
      %v932 = vpop.permute.xlu0 %931
      %933 = vrot.lane.b32.xlu0 %v334, 32
      %v934 = vpop.permute.xlu0 %933
      %935 = vrot.lane.b32.xlu0 %v335, 32
      %v936 = vpop.permute.xlu0 %935
      %937 = vrot.lane.b32.xlu0 %v336, 32
      %v938 = vpop.permute.xlu0 %937
      %939 = vrot.lane.b32.xlu0 %v337, 32
      %v940 = vpop.permute.xlu0 %939
      %941 = vrot.lane.b32.xlu0 %v338, 32
      %v942 = vpop.permute.xlu0 %941
      %943 = vrot.lane.b32.xlu0 %v339, 32
      %v944 = vpop.permute.xlu0 %943
      %945 = vrot.lane.b32.xlu0 %v340, 32
      %v946 = vpop.permute.xlu0 %945
      %947 = vrot.lane.b32.xlu0 %v341, 32
      %v948 = vpop.permute.xlu0 %947
      %949 = vrot.lane.b32.xlu0 %v342, 32
      %v950 = vpop.permute.xlu0 %949
      %951 = vrot.lane.b32.xlu0 %v343, 32
      %v952 = vpop.permute.xlu0 %951
      %1017 = vrot.lane.b32.xlu0 %v344, 40
      %v1018 = vpop.permute.xlu0 %1017
      %1019 = vrot.lane.b32.xlu0 %v345, 40
      %v1020 = vpop.permute.xlu0 %1019
      %1021 = vrot.lane.b32.xlu0 %v346, 40
      %v1022 = vpop.permute.xlu0 %1021
      %1023 = vrot.lane.b32.xlu0 %v347, 40
      %v1024 = vpop.permute.xlu0 %1023
      %1025 = vrot.lane.b32.xlu0 %v348, 40
      %v1026 = vpop.permute.xlu0 %1025
      %1027 = vrot.lane.b32.xlu0 %v349, 40
      %v1028 = vpop.permute.xlu0 %1027
      %1029 = vrot.lane.b32.xlu0 %v350, 40
      %v1030 = vpop.permute.xlu0 %1029
      %1031 = vrot.lane.b32.xlu0 %v351, 40
      %v1032 = vpop.permute.xlu0 %1031
      %1033 = vrot.lane.b32.xlu0 %v352, 40
      %v1034 = vpop.permute.xlu0 %1033
      %1035 = vrot.lane.b32.xlu0 %v353, 40
      %v1036 = vpop.permute.xlu0 %1035
      %1037 = vrot.lane.b32.xlu0 %v354, 40
      %v1038 = vpop.permute.xlu0 %1037
      %1039 = vrot.lane.b32.xlu0 %v355, 40
      %v1040 = vpop.permute.xlu0 %1039
      %1041 = vrot.lane.b32.xlu0 %v356, 40
      %v1042 = vpop.permute.xlu0 %1041
      %1043 = vrot.lane.b32.xlu0 %v357, 40
      %v1044 = vpop.permute.xlu0 %1043
      %1045 = vrot.lane.b32.xlu0 %v358, 40
      %v1046 = vpop.permute.xlu0 %1045
      %1047 = vrot.lane.b32.xlu0 %v359, 40
      %v1048 = vpop.permute.xlu0 %1047
      %1049 = vrot.lane.b32.xlu0 %v360, 40
      %v1050 = vpop.permute.xlu0 %1049
      %1051 = vrot.lane.b32.xlu0 %v361, 40
      %v1052 = vpop.permute.xlu0 %1051
      %1053 = vrot.lane.b32.xlu0 %v362, 40
      %v1054 = vpop.permute.xlu0 %1053
      %1055 = vrot.lane.b32.xlu0 %v363, 40
      %v1056 = vpop.permute.xlu0 %1055
      %1057 = vrot.lane.b32.xlu0 %v364, 40
      %v1058 = vpop.permute.xlu0 %1057
      %1059 = vrot.lane.b32.xlu0 %v365, 40
      %v1060 = vpop.permute.xlu0 %1059
      %1061 = vrot.lane.b32.xlu0 %v366, 40
      %v1062 = vpop.permute.xlu0 %1061
      %1063 = vrot.lane.b32.xlu0 %v367, 40
      %v1064 = vpop.permute.xlu0 %1063
      %1065 = vrot.lane.b32.xlu0 %v368, 40
      %v1066 = vpop.permute.xlu0 %1065
      %1067 = vrot.lane.b32.xlu0 %v369, 40
      %v1068 = vpop.permute.xlu0 %1067
      %1069 = vrot.lane.b32.xlu0 %v370, 40
      %v1070 = vpop.permute.xlu0 %1069
      %1071 = vrot.lane.b32.xlu0 %v371, 40
      %v1072 = vpop.permute.xlu0 %1071
      %1073 = vrot.lane.b32.xlu0 %v372, 40
      %v1074 = vpop.permute.xlu0 %1073
      %1075 = vrot.lane.b32.xlu0 %v373, 40
      %v1076 = vpop.permute.xlu0 %1075
      %1077 = vrot.lane.b32.xlu0 %v374, 40
      %v1078 = vpop.permute.xlu0 %1077
      %1079 = vrot.lane.b32.xlu0 %v375, 40
      %v1080 = vpop.permute.xlu0 %1079
      %1145 = vrot.lane.b32.xlu0 %v377, 48
      %v1146 = vpop.permute.xlu0 %1145
      %1147 = vrot.lane.b32.xlu0 %v378, 48
      %v1148 = vpop.permute.xlu0 %1147
      %1149 = vrot.lane.b32.xlu0 %v379, 48
      %v1150 = vpop.permute.xlu0 %1149
      %1151 = vrot.lane.b32.xlu0 %v380, 48
      %v1152 = vpop.permute.xlu0 %1151
      %1153 = vrot.lane.b32.xlu0 %v381, 48
      %v1154 = vpop.permute.xlu0 %1153
      %1155 = vrot.lane.b32.xlu0 %v382, 48
      %v1156 = vpop.permute.xlu0 %1155
      %1157 = vrot.lane.b32.xlu0 %v383, 48
      %v1158 = vpop.permute.xlu0 %1157
      %1159 = vrot.lane.b32.xlu0 %v384, 48
      %v1160 = vpop.permute.xlu0 %1159
      %1161 = vrot.lane.b32.xlu0 %v385, 48
      %v1162 = vpop.permute.xlu0 %1161
      %1163 = vrot.lane.b32.xlu0 %v386, 48
      %v1164 = vpop.permute.xlu0 %1163
      %1165 = vrot.lane.b32.xlu0 %v387, 48
      %v1166 = vpop.permute.xlu0 %1165
      %1167 = vrot.lane.b32.xlu0 %v388, 48
      %v1168 = vpop.permute.xlu0 %1167
      %1169 = vrot.lane.b32.xlu0 %v389, 48
      %v1170 = vpop.permute.xlu0 %1169
      %1171 = vrot.lane.b32.xlu0 %v390, 48
      %v1172 = vpop.permute.xlu0 %1171
      %1173 = vrot.lane.b32.xlu0 %v391, 48
      %v1174 = vpop.permute.xlu0 %1173
      %1175 = vrot.lane.b32.xlu0 %v392, 48
      %v1176 = vpop.permute.xlu0 %1175
      %1177 = vrot.lane.b32.xlu0 %v393, 48
      %v1178 = vpop.permute.xlu0 %1177
      %1179 = vrot.lane.b32.xlu0 %v394, 48
      %v1180 = vpop.permute.xlu0 %1179
      %1181 = vrot.lane.b32.xlu0 %v395, 48
      %v1182 = vpop.permute.xlu0 %1181
      %1183 = vrot.lane.b32.xlu0 %v396, 48
      %v1184 = vpop.permute.xlu0 %1183
      %1185 = vrot.lane.b32.xlu0 %v397, 48
      %v1186 = vpop.permute.xlu0 %1185
      %1187 = vrot.lane.b32.xlu0 %v398, 48
      %v1188 = vpop.permute.xlu0 %1187
      %1189 = vrot.lane.b32.xlu0 %v399, 48
      %v1190 = vpop.permute.xlu0 %1189
      %1191 = vrot.lane.b32.xlu0 %v400, 48
      %v1192 = vpop.permute.xlu0 %1191
      %1193 = vrot.lane.b32.xlu0 %v401, 48
      %v1194 = vpop.permute.xlu0 %1193
      %1195 = vrot.lane.b32.xlu0 %v402, 48
      %v1196 = vpop.permute.xlu0 %1195
      %1197 = vrot.lane.b32.xlu0 %v403, 48
      %v1198 = vpop.permute.xlu0 %1197
      %1199 = vrot.lane.b32.xlu0 %v404, 48
      %v1200 = vpop.permute.xlu0 %1199
      %1201 = vrot.lane.b32.xlu0 %v405, 48
      %v1202 = vpop.permute.xlu0 %1201
      %1203 = vrot.lane.b32.xlu0 %v406, 48
      %v1204 = vpop.permute.xlu0 %1203
      %1205 = vrot.lane.b32.xlu0 %v407, 48
      %v1206 = vpop.permute.xlu0 %1205
      %1207 = vrot.lane.b32.xlu0 %v408, 48
      %v1208 = vpop.permute.xlu0 %1207
      %1273 = vrot.lane.b32.xlu0 %v409, 56
      %v1274 = vpop.permute.xlu0 %1273
      %1275 = vrot.lane.b32.xlu0 %v410, 56
      %v1276 = vpop.permute.xlu0 %1275
      %1277 = vrot.lane.b32.xlu0 %v411, 56
      %v1278 = vpop.permute.xlu0 %1277
      %1279 = vrot.lane.b32.xlu0 %v412, 56
      %v1280 = vpop.permute.xlu0 %1279
      %1281 = vrot.lane.b32.xlu0 %v413, 56
      %v1282 = vpop.permute.xlu0 %1281
      %1283 = vrot.lane.b32.xlu0 %v414, 56
      %v1284 = vpop.permute.xlu0 %1283
      %1285 = vrot.lane.b32.xlu0 %v415, 56
      %v1286 = vpop.permute.xlu0 %1285
      %1287 = vrot.lane.b32.xlu0 %v416, 56
      %v1288 = vpop.permute.xlu0 %1287
      %1289 = vrot.lane.b32.xlu0 %v417, 56
      %v1290 = vpop.permute.xlu0 %1289
      %1291 = vrot.lane.b32.xlu0 %v418, 56
      %v1292 = vpop.permute.xlu0 %1291
      %1293 = vrot.lane.b32.xlu0 %v419, 56
      %v1294 = vpop.permute.xlu0 %1293
      %1295 = vrot.lane.b32.xlu0 %v420, 56
      %v1296 = vpop.permute.xlu0 %1295
      %1297 = vrot.lane.b32.xlu0 %v421, 56
      %v1298 = vpop.permute.xlu0 %1297
      %1299 = vrot.lane.b32.xlu0 %v422, 56
      %v1300 = vpop.permute.xlu0 %1299
      %1301 = vrot.lane.b32.xlu0 %v423, 56
      %v1302 = vpop.permute.xlu0 %1301
      %1303 = vrot.lane.b32.xlu0 %v424, 56
      %v1304 = vpop.permute.xlu0 %1303
      %1305 = vrot.lane.b32.xlu0 %v425, 56
      %v1306 = vpop.permute.xlu0 %1305
      %1307 = vrot.lane.b32.xlu0 %v426, 56
      %v1308 = vpop.permute.xlu0 %1307
      %1309 = vrot.lane.b32.xlu0 %v427, 56
      %v1310 = vpop.permute.xlu0 %1309
      %1311 = vrot.lane.b32.xlu0 %v428, 56
      %v1312 = vpop.permute.xlu0 %1311
      %1313 = vrot.lane.b32.xlu0 %v429, 56
      %v1314 = vpop.permute.xlu0 %1313
      %1315 = vrot.lane.b32.xlu0 %v430, 56
      %v1316 = vpop.permute.xlu0 %1315
      %1317 = vrot.lane.b32.xlu0 %v431, 56
      %v1318 = vpop.permute.xlu0 %1317
      %1319 = vrot.lane.b32.xlu0 %v432, 56
      %v1320 = vpop.permute.xlu0 %1319
      %1321 = vrot.lane.b32.xlu0 %v433, 56
      %v1322 = vpop.permute.xlu0 %1321
      %1323 = vrot.lane.b32.xlu0 %v434, 56
      %v1324 = vpop.permute.xlu0 %1323
      %1325 = vrot.lane.b32.xlu0 %v435, 56
      %v1326 = vpop.permute.xlu0 %1325
      %1327 = vrot.lane.b32.xlu0 %v436, 56
      %v1328 = vpop.permute.xlu0 %1327
      %1329 = vrot.lane.b32.xlu0 %v437, 56
      %v1330 = vpop.permute.xlu0 %1329
      %1331 = vrot.lane.b32.xlu0 %v438, 56
      %v1332 = vpop.permute.xlu0 %1331
      %1333 = vrot.lane.b32.xlu0 %v439, 56
      %v1334 = vpop.permute.xlu0 %1333
      %1335 = vrot.lane.b32.xlu0 %v440, 56
      %v1336 = vpop.permute.xlu0 %1335
      %1401 = vrot.lane.b32.xlu0 %v441, 64
      %v1402 = vpop.permute.xlu0 %1401
      %1403 = vrot.lane.b32.xlu0 %v442, 64
      %v1404 = vpop.permute.xlu0 %1403
      %1405 = vrot.lane.b32.xlu0 %v443, 64
      %v1406 = vpop.permute.xlu0 %1405
      %1407 = vrot.lane.b32.xlu0 %v444, 64
      %v1408 = vpop.permute.xlu0 %1407
      %1409 = vrot.lane.b32.xlu0 %v445, 64
      %v1410 = vpop.permute.xlu0 %1409
      %1411 = vrot.lane.b32.xlu0 %v446, 64
      %v1412 = vpop.permute.xlu0 %1411
      %1413 = vrot.lane.b32.xlu0 %v447, 64
      %v1414 = vpop.permute.xlu0 %1413
      %1415 = vrot.lane.b32.xlu0 %v448, 64
      %v1416 = vpop.permute.xlu0 %1415
      %1417 = vrot.lane.b32.xlu0 %v449, 64
      %v1418 = vpop.permute.xlu0 %1417
      %1419 = vrot.lane.b32.xlu0 %v450, 64
      %v1420 = vpop.permute.xlu0 %1419
      %1421 = vrot.lane.b32.xlu0 %v451, 64
      %v1422 = vpop.permute.xlu0 %1421
      %1423 = vrot.lane.b32.xlu0 %v452, 64
      %v1424 = vpop.permute.xlu0 %1423
      %1425 = vrot.lane.b32.xlu0 %v453, 64
      %v1426 = vpop.permute.xlu0 %1425
      %1427 = vrot.lane.b32.xlu0 %v454, 64
      %v1428 = vpop.permute.xlu0 %1427
      %1429 = vrot.lane.b32.xlu0 %v455, 64
      %v1430 = vpop.permute.xlu0 %1429
      %1431 = vrot.lane.b32.xlu0 %v456, 64
      %v1432 = vpop.permute.xlu0 %1431
      %1433 = vrot.lane.b32.xlu0 %v457, 64
      %v1434 = vpop.permute.xlu0 %1433
      %1435 = vrot.lane.b32.xlu0 %v458, 64
      %v1436 = vpop.permute.xlu0 %1435
      %1437 = vrot.lane.b32.xlu0 %v459, 64
      %v1438 = vpop.permute.xlu0 %1437
      %1439 = vrot.lane.b32.xlu0 %v460, 64
      %v1440 = vpop.permute.xlu0 %1439
      %1441 = vrot.lane.b32.xlu0 %v461, 64
      %v1442 = vpop.permute.xlu0 %1441
      %1443 = vrot.lane.b32.xlu0 %v462, 64
      %v1444 = vpop.permute.xlu0 %1443
      %1445 = vrot.lane.b32.xlu0 %v463, 64
      %v1446 = vpop.permute.xlu0 %1445
      %1447 = vrot.lane.b32.xlu0 %v464, 64
      %v1448 = vpop.permute.xlu0 %1447
      %1449 = vrot.lane.b32.xlu0 %v465, 64
      %v1450 = vpop.permute.xlu0 %1449
      %1451 = vrot.lane.b32.xlu0 %v466, 64
      %v1452 = vpop.permute.xlu0 %1451
      %1453 = vrot.lane.b32.xlu0 %v467, 64
      %v1454 = vpop.permute.xlu0 %1453
      %1455 = vrot.lane.b32.xlu0 %v468, 64
      %v1456 = vpop.permute.xlu0 %1455
      %1457 = vrot.lane.b32.xlu0 %v469, 64
      %v1458 = vpop.permute.xlu0 %1457
      %1459 = vrot.lane.b32.xlu0 %v470, 64
      %v1460 = vpop.permute.xlu0 %1459
      %1461 = vrot.lane.b32.xlu0 %v471, 64
      %v1462 = vpop.permute.xlu0 %1461
      %1463 = vrot.lane.b32.xlu0 %v472, 64
      %v1464 = vpop.permute.xlu0 %1463
      %vm1497 = vcmask 64512
      %v1498 = vsel %vm1497, %v183, %v506
      %v1499 = vsel %vm1497, %v184, %v508
      %v1500 = vsel %vm1497, %v185, %v510
      %v1501 = vsel %vm1497, %v186, %v512
      %v1502 = vsel %vm1497, %v187, %v514
      %v1503 = vsel %vm1497, %v188, %v516
      %v1504 = vsel %vm1497, %v189, %v518
      %v1505 = vsel %vm1497, %v190, %v520
      %v1506 = vsel %vm1497, %v191, %v522
      %v1507 = vsel %vm1497, %v192, %v524
      %v1508 = vsel %vm1497, %v193, %v526
      %v1509 = vsel %vm1497, %v194, %v528
      %v1510 = vsel %vm1497, %v195, %v530
      %v1511 = vsel %vm1497, %v196, %v532
      %v1512 = vsel %vm1497, %v197, %v534
      %v1513 = vsel %vm1497, %v198, %v536
      %v1514 = vsel %vm1497, %v199, %v538
      %v1515 = vsel %vm1497, %v200, %v540
      %v1516 = vsel %vm1497, %v201, %v542
      %v1517 = vsel %vm1497, %v202, %v544
      %v1518 = vsel %vm1497, %v203, %v546
      %v1519 = vsel %vm1497, %v204, %v548
      %v1520 = vsel %vm1497, %v205, %v550
      %v1521 = vsel %vm1497, %v206, %v552
      %v1522 = vsel %vm1497, %v207, %v554
      %v1523 = vsel %vm1497, %v208, %v556
      %v1524 = vsel %vm1497, %v209, %v558
      %v1525 = vsel %vm1497, %v210, %v560
      %v1526 = vsel %vm1497, %v211, %v562
      %v1527 = vsel %vm1497, %v212, %v564
      %v1528 = vsel %vm1497, %v213, %v566
      %v1529 = vsel %vm1497, %v214, %v568
      %vm1530 = vcmask 130048
      %v1531 = vsel %vm1530, %v1498, %v634
      %v1532 = vsel %vm1530, %v1499, %v636
      %v1533 = vsel %vm1530, %v1500, %v638
      %v1534 = vsel %vm1530, %v1501, %v640
      %v1535 = vsel %vm1530, %v1502, %v642
      %v1536 = vsel %vm1530, %v1503, %v644
      %v1537 = vsel %vm1530, %v1504, %v646
      %v1538 = vsel %vm1530, %v1505, %v648
      %v1539 = vsel %vm1530, %v1506, %v650
      %v1540 = vsel %vm1530, %v1507, %v652
      %v1541 = vsel %vm1530, %v1508, %v654
      %v1542 = vsel %vm1530, %v1509, %v656
      %v1543 = vsel %vm1530, %v1510, %v658
      %v1544 = vsel %vm1530, %v1511, %v660
      %v1545 = vsel %vm1530, %v1512, %v662
      %v1546 = vsel %vm1530, %v1513, %v664
      %v1547 = vsel %vm1530, %v1514, %v666
      %v1548 = vsel %vm1530, %v1515, %v668
      %v1549 = vsel %vm1530, %v1516, %v670
      %v1550 = vsel %vm1530, %v1517, %v672
      %v1551 = vsel %vm1530, %v1518, %v674
      %v1552 = vsel %vm1530, %v1519, %v676
      %v1553 = vsel %vm1530, %v1520, %v678
      %v1554 = vsel %vm1530, %v1521, %v680
      %v1555 = vsel %vm1530, %v1522, %v682
      %v1556 = vsel %vm1530, %v1523, %v684
      %v1557 = vsel %vm1530, %v1524, %v686
      %v1558 = vsel %vm1530, %v1525, %v688
      %v1559 = vsel %vm1530, %v1526, %v690
      %v1560 = vsel %vm1530, %v1527, %v692
      %v1561 = vsel %vm1530, %v1528, %v694
      %v1562 = vsel %vm1530, %v1529, %v696
      %vm1563 = vcmask 195584
      %v1564 = vsel %vm1563, %v1531, %v762
      %v1565 = vsel %vm1563, %v1532, %v764
      %v1566 = vsel %vm1563, %v1533, %v766
      %v1567 = vsel %vm1563, %v1534, %v768
      %v1568 = vsel %vm1563, %v1535, %v770
      %v1569 = vsel %vm1563, %v1536, %v772
      %v1570 = vsel %vm1563, %v1537, %v774
      %v1571 = vsel %vm1563, %v1538, %v776
      %v1572 = vsel %vm1563, %v1539, %v778
      %v1573 = vsel %vm1563, %v1540, %v780
      %v1574 = vsel %vm1563, %v1541, %v782
      %v1575 = vsel %vm1563, %v1542, %v784
      %v1576 = vsel %vm1563, %v1543, %v786
      %v1577 = vsel %vm1563, %v1544, %v788
      %v1578 = vsel %vm1563, %v1545, %v790
      %v1579 = vsel %vm1563, %v1546, %v792
      %v1580 = vsel %vm1563, %v1547, %v794
      %v1581 = vsel %vm1563, %v1548, %v796
      %v1582 = vsel %vm1563, %v1549, %v798
      %v1583 = vsel %vm1563, %v1550, %v800
      %v1584 = vsel %vm1563, %v1551, %v802
      %v1585 = vsel %vm1563, %v1552, %v804
      %v1586 = vsel %vm1563, %v1553, %v806
      %v1587 = vsel %vm1563, %v1554, %v808
      %v1588 = vsel %vm1563, %v1555, %v810
      %v1589 = vsel %vm1563, %v1556, %v812
      %v1590 = vsel %vm1563, %v1557, %v814
      %v1591 = vsel %vm1563, %v1558, %v816
      %v1592 = vsel %vm1563, %v1559, %v818
      %v1593 = vsel %vm1563, %v1560, %v820
      %v1594 = vsel %vm1563, %v1561, %v822
      %v1595 = vsel %vm1563, %v1562, %v824
      %vm1596 = vcmask 261120
      %v1597 = vsel %vm1596, %v1564, %v890
      %v1598 = vsel %vm1596, %v1565, %v892
      %v1599 = vsel %vm1596, %v1566, %v894
      %v1600 = vsel %vm1596, %v1567, %v896
      %v1601 = vsel %vm1596, %v1568, %v898
      %v1602 = vsel %vm1596, %v1569, %v900
      %v1603 = vsel %vm1596, %v1570, %v902
      %v1604 = vsel %vm1596, %v1571, %v904
      %v1605 = vsel %vm1596, %v1572, %v906
      %v1606 = vsel %vm1596, %v1573, %v908
      %v1607 = vsel %vm1596, %v1574, %v910
      %v1608 = vsel %vm1596, %v1575, %v912
      %v1609 = vsel %vm1596, %v1576, %v914
      %v1610 = vsel %vm1596, %v1577, %v916
      %v1611 = vsel %vm1596, %v1578, %v918
      %v1612 = vsel %vm1596, %v1579, %v920
      %v1613 = vsel %vm1596, %v1580, %v922
      %v1614 = vsel %vm1596, %v1581, %v924
      %v1615 = vsel %vm1596, %v1582, %v926
      %v1616 = vsel %vm1596, %v1583, %v928
      %v1617 = vsel %vm1596, %v1584, %v930
      %v1618 = vsel %vm1596, %v1585, %v932
      %v1619 = vsel %vm1596, %v1586, %v934
      %v1620 = vsel %vm1596, %v1587, %v936
      %v1621 = vsel %vm1596, %v1588, %v938
      %v1622 = vsel %vm1596, %v1589, %v940
      %v1623 = vsel %vm1596, %v1590, %v942
      %v1624 = vsel %vm1596, %v1591, %v944
      %v1625 = vsel %vm1596, %v1592, %v946
      %v1626 = vsel %vm1596, %v1593, %v948
      %v1627 = vsel %vm1596, %v1594, %v950
      %v1628 = vsel %vm1596, %v1595, %v952
      %vm1629 = vcmask 326656
      %v1630 = vsel %vm1629, %v1597, %v1018
      %v1631 = vsel %vm1629, %v1598, %v1020
      %v1632 = vsel %vm1629, %v1599, %v1022
      %v1633 = vsel %vm1629, %v1600, %v1024
      %v1634 = vsel %vm1629, %v1601, %v1026
      %v1635 = vsel %vm1629, %v1602, %v1028
      %v1636 = vsel %vm1629, %v1603, %v1030
      %v1637 = vsel %vm1629, %v1604, %v1032
      %v1638 = vsel %vm1629, %v1605, %v1034
      %v1639 = vsel %vm1629, %v1606, %v1036
      %v1640 = vsel %vm1629, %v1607, %v1038
      %v1641 = vsel %vm1629, %v1608, %v1040
      %v1642 = vsel %vm1629, %v1609, %v1042
      %v1643 = vsel %vm1629, %v1610, %v1044
      %v1644 = vsel %vm1629, %v1611, %v1046
      %v1645 = vsel %vm1629, %v1612, %v1048
      %v1646 = vsel %vm1629, %v1613, %v1050
      %v1647 = vsel %vm1629, %v1614, %v1052
      %v1648 = vsel %vm1629, %v1615, %v1054
      %v1649 = vsel %vm1629, %v1616, %v1056
      %v1650 = vsel %vm1629, %v1617, %v1058
      %v1651 = vsel %vm1629, %v1618, %v1060
      %v1652 = vsel %vm1629, %v1619, %v1062
      %v1653 = vsel %vm1629, %v1620, %v1064
      %v1654 = vsel %vm1629, %v1621, %v1066
      %v1655 = vsel %vm1629, %v1622, %v1068
      %v1656 = vsel %vm1629, %v1623, %v1070
      %v1657 = vsel %vm1629, %v1624, %v1072
      %v1658 = vsel %vm1629, %v1625, %v1074
      %v1659 = vsel %vm1629, %v1626, %v1076
      %v1660 = vsel %vm1629, %v1627, %v1078
      %v1661 = vsel %vm1629, %v1628, %v1080
      %vm1662 = vcmask 392192
      %v1663 = vsel %vm1662, %v1630, %v1146
      %v1664 = vsel %vm1662, %v1631, %v1148
      %v1665 = vsel %vm1662, %v1632, %v1150
      %v1666 = vsel %vm1662, %v1633, %v1152
      %v1667 = vsel %vm1662, %v1634, %v1154
      %v1668 = vsel %vm1662, %v1635, %v1156
      %v1669 = vsel %vm1662, %v1636, %v1158
      %v1670 = vsel %vm1662, %v1637, %v1160
      %v1671 = vsel %vm1662, %v1638, %v1162
      %v1672 = vsel %vm1662, %v1639, %v1164
      %v1673 = vsel %vm1662, %v1640, %v1166
      %v1674 = vsel %vm1662, %v1641, %v1168
      %v1675 = vsel %vm1662, %v1642, %v1170
      %v1676 = vsel %vm1662, %v1643, %v1172
      %v1677 = vsel %vm1662, %v1644, %v1174
      %v1678 = vsel %vm1662, %v1645, %v1176
      %v1679 = vsel %vm1662, %v1646, %v1178
      %v1680 = vsel %vm1662, %v1647, %v1180
      %v1681 = vsel %vm1662, %v1648, %v1182
      %v1682 = vsel %vm1662, %v1649, %v1184
      %v1683 = vsel %vm1662, %v1650, %v1186
      %v1684 = vsel %vm1662, %v1651, %v1188
      %v1685 = vsel %vm1662, %v1652, %v1190
      %v1686 = vsel %vm1662, %v1653, %v1192
      %v1687 = vsel %vm1662, %v1654, %v1194
      %v1688 = vsel %vm1662, %v1655, %v1196
      %v1689 = vsel %vm1662, %v1656, %v1198
      %v1690 = vsel %vm1662, %v1657, %v1200
      %v1691 = vsel %vm1662, %v1658, %v1202
      %v1692 = vsel %vm1662, %v1659, %v1204
      %v1693 = vsel %vm1662, %v1660, %v1206
      %v1694 = vsel %vm1662, %v1661, %v1208
      %vm1695 = vcmask 457728
      %v1696 = vsel %vm1695, %v1663, %v1274
      %v1697 = vsel %vm1695, %v1664, %v1276
      %v1698 = vsel %vm1695, %v1665, %v1278
      %v1699 = vsel %vm1695, %v1666, %v1280
      %v1700 = vsel %vm1695, %v1667, %v1282
      %v1701 = vsel %vm1695, %v1668, %v1284
      %v1702 = vsel %vm1695, %v1669, %v1286
      %v1703 = vsel %vm1695, %v1670, %v1288
      %v1704 = vsel %vm1695, %v1671, %v1290
      %v1705 = vsel %vm1695, %v1672, %v1292
      %v1706 = vsel %vm1695, %v1673, %v1294
      %v1707 = vsel %vm1695, %v1674, %v1296
      %v1708 = vsel %vm1695, %v1675, %v1298
      %v1709 = vsel %vm1695, %v1676, %v1300
      %v1710 = vsel %vm1695, %v1677, %v1302
      %v1711 = vsel %vm1695, %v1678, %v1304
      %v1712 = vsel %vm1695, %v1679, %v1306
      %v1713 = vsel %vm1695, %v1680, %v1308
      %v1714 = vsel %vm1695, %v1681, %v1310
      %v1715 = vsel %vm1695, %v1682, %v1312
      %v1716 = vsel %vm1695, %v1683, %v1314
      %v1717 = vsel %vm1695, %v1684, %v1316
      %v1718 = vsel %vm1695, %v1685, %v1318
      %v1719 = vsel %vm1695, %v1686, %v1320
      %v1720 = vsel %vm1695, %v1687, %v1322
      %v1721 = vsel %vm1695, %v1688, %v1324
      %v1722 = vsel %vm1695, %v1689, %v1326
      %v1723 = vsel %vm1695, %v1690, %v1328
      %v1724 = vsel %vm1695, %v1691, %v1330
      %v1725 = vsel %vm1695, %v1692, %v1332
      %v1726 = vsel %vm1695, %v1693, %v1334
      %v1727 = vsel %vm1695, %v1694, %v1336
      %vm1728 = vcmask 523264
      %v1729 = vsel %vm1728, %v1696, %v1402
      %v1730 = vsel %vm1728, %v1697, %v1404
      %v1731 = vsel %vm1728, %v1698, %v1406
      %v1732 = vsel %vm1728, %v1699, %v1408
      %v1733 = vsel %vm1728, %v1700, %v1410
      %v1734 = vsel %vm1728, %v1701, %v1412
      %v1735 = vsel %vm1728, %v1702, %v1414
      %v1736 = vsel %vm1728, %v1703, %v1416
      %v1737 = vsel %vm1728, %v1704, %v1418
      %v1738 = vsel %vm1728, %v1705, %v1420
      %v1739 = vsel %vm1728, %v1706, %v1422
      %v1740 = vsel %vm1728, %v1707, %v1424
      %v1741 = vsel %vm1728, %v1708, %v1426
      %v1742 = vsel %vm1728, %v1709, %v1428
      %v1743 = vsel %vm1728, %v1710, %v1430
      %v1744 = vsel %vm1728, %v1711, %v1432
      %v1745 = vsel %vm1728, %v1712, %v1434
      %v1746 = vsel %vm1728, %v1713, %v1436
      %v1747 = vsel %vm1728, %v1714, %v1438
      %v1748 = vsel %vm1728, %v1715, %v1440
      %v1749 = vsel %vm1728, %v1716, %v1442
      %v1750 = vsel %vm1728, %v1717, %v1444
      %v1751 = vsel %vm1728, %v1718, %v1446
      %v1752 = vsel %vm1728, %v1719, %v1448
      %v1753 = vsel %vm1728, %v1720, %v1450
      %v1754 = vsel %vm1728, %v1721, %v1452
      %v1755 = vsel %vm1728, %v1722, %v1454
      %v1756 = vsel %vm1728, %v1723, %v1456
      %v1757 = vsel %vm1728, %v1724, %v1458
      %v1758 = vsel %vm1728, %v1725, %v1460
      %v1759 = vsel %vm1728, %v1726, %v1462
      %v1760 = vsel %vm1728, %v1727, %v1464
      %v1761 = vpack.c.bf16 %v1730, %v1729
      %v1762 = vpack.c.bf16 %v1732, %v1731
      %v1763 = vpack.c.bf16 %v1734, %v1733
      %v1764 = vpack.c.bf16 %v1736, %v1735
      %v1765 = vpack.c.bf16 %v1738, %v1737
      %v1766 = vpack.c.bf16 %v1740, %v1739
      %v1767 = vpack.c.bf16 %v1742, %v1741
      %v1768 = vpack.c.bf16 %v1744, %v1743
      %v1769 = vpack.c.bf16 %v1746, %v1745
      %v1770 = vpack.c.bf16 %v1748, %v1747
      %v1771 = vpack.c.bf16 %v1750, %v1749
      %v1772 = vpack.c.bf16 %v1752, %v1751
      %v1773 = vpack.c.bf16 %v1754, %v1753
      %v1774 = vpack.c.bf16 %v1756, %v1755
      %v1775 = vpack.c.bf16 %v1758, %v1757
      %v1776 = vpack.c.bf16 %v1760, %v1759
      %v1777 = vld [vmem:[%s1] sm:$0xf]
      %v1778 = vld [vmem:[%s1 + $0x4] sm:$0xf]
      %v1779 = vld [vmem:[%s1 + $0x8] sm:$0xf]
      %v1780 = vld [vmem:[%s1 + $0xc] sm:$0xf]
      %v1781 = vld [vmem:[%s1 + $0x10] sm:$0xf]
      %v1782 = vld [vmem:[%s1 + $0x14] sm:$0xf]
      %v1783 = vld [vmem:[%s1 + $0x18] sm:$0xf]
      %v1784 = vld [vmem:[%s1 + $0x1c] sm:$0xf]
      %v1785 = vld [vmem:[%s1 + $0x20] sm:$0xf]
      %v1795 = vunpack.c.l.b16 %v1777
      %v1796 = vunpack.c.l.b16 %v1778
      %v1797 = vunpack.c.l.b16 %v1779
      %v1798 = vunpack.c.l.b16 %v1780
      %v1799 = vunpack.c.l.b16 %v1781
      %v1800 = vunpack.c.l.b16 %v1782
      %v1801 = vunpack.c.l.b16 %v1783
      %v1802 = vunpack.c.l.b16 %v1784
      %v1803 = vunpack.c.l.b16 %v1785
      %v1804 = vpack.c.b16 %v1796, %v1795
      %v1805 = vpack.c.b16 %v1798, %v1797
      %v1806 = vpack.c.b16 %v1800, %v1799
      %v1807 = vpack.c.b16 %v1802, %v1801
      %v1808 = vpack.c.b16 %v1803, %v1803
      %vm1813 = vcmask 588800
      %v1815 = vsel %vm1813, %v1761, 0
      %v1818 = vsel %vm1813, %v1762, 0
      %v1821 = vsel %vm1813, %v1763, 0
      %v1824 = vsel %vm1813, %v1764, 0
      %v1827 = vsel %vm1813, %v1765, 0
      %v1830 = vsel %vm1813, %v1766, 0
      %v1833 = vsel %vm1813, %v1767, 0
      %v1836 = vsel %vm1813, %v1768, 0
      %v1839 = vsel %vm1813, %v1769, 0
      %v1842 = vsel %vm1813, %v1770, 0
      %v1845 = vsel %vm1813, %v1771, 0
      %v1848 = vsel %vm1813, %v1772, 0
      %v1851 = vsel %vm1813, %v1773, 0
      %v1854 = vsel %vm1813, %v1774, 0
      %v1857 = vsel %vm1813, %v1775, 0
      %v1860 = vsel %vm1813, %v1776, 0
      %vm1862 = vcmask 1043456
      %v1864 = vsel %vm1862, %v1808, 0
      %1866 = vmatprep.subr.bf16.mxu0 0
      %1867 = vmatpush1.bf16.msra.mxu0 0
      %1868 = vmatprep.subr.bf16.mxu0 0
      %1869 = vmatpush1.bf16.msra.mxu0 0
      %1870 = vmatprep.subr.bf16.mxu0 0
      %1871 = vmatpush1.bf16.msra.mxu0 0
      %1872 = vmatprep.subr.bf16.mxu0 0
      %1873 = vmatpush1.bf16.msra.mxu0 %v1864
      %1874 = vmatprep.subr.bf16.mxu0 0
      %1875 = vmatpush1.bf16.msra.mxu0 %v1807
      %1876 = vmatprep.subr.bf16.mxu0 0
      %1877 = vmatpush1.bf16.msra.mxu0 %v1806
      %1878 = vmatprep.subr.bf16.mxu0 0
      %1879 = vmatpush1.bf16.msra.mxu0 %v1805
      %1880 = vmatprep.subr.bf16.mxu0 0
      %1881 = vmatpush1.bf16.msra.mxu0 %v1804
      %1882 = vmatprep.subr.bf16.mxu0 0
      %1883 = vmatpush2.bf16.msra.mxu0 0
      %1884 = vmatprep.subr.bf16.mxu0 0
      %1885 = vmatpush2.bf16.msra.mxu0 0
      %1886 = vmatprep.subr.bf16.mxu0 0
      %1887 = vmatpush2.bf16.msra.mxu0 0
      %1888 = vmatprep.subr.bf16.mxu0 0
      %1889 = vmatpush2.bf16.msra.mxu0 0
      %1890 = vmatprep.subr.bf16.mxu0 0
      %1891 = vmatpush2.bf16.msra.mxu0 0
      %1892 = vmatprep.subr.bf16.mxu0 0
      %1893 = vmatpush2.bf16.msra.mxu0 0
      %1894 = vmatprep.subr.bf16.mxu0 0
      %1895 = vmatpush2.bf16.msra.mxu0 0
      %1896 = vmatprep.subr.bf16.mxu0 0
      %1897 = vmatpush2.bf16.msra.mxu0 0
      %1898 = vmatprep.mubr.bf16.mxu0 0
      %1899 = vmatmul.mubr.bf16.gmra.mxu0 %v1815
      %v1900 = vpop.f32.mrf.mxu0
      %v1901 = vadd.f32 0.0, %v1900
      %v1902 = vpop.f32.mrf.mxu0
      %v1903 = vpop.f32.mrf.mxu0
      %v1904 = vadd.f32 0.0, %v1903
      %v1905 = vpop.f32.mrf.mxu0
      %1906 = vmatprep.mubr.bf16.mxu0 0
      %1907 = vmatmul.mubr.bf16.gmra.mxu0 %v1818
      %v1908 = vpop.f32.mrf.mxu0
      %v1909 = vadd.f32 0.0, %v1908
      %v1910 = vpop.f32.mrf.mxu0
      %v1911 = vpop.f32.mrf.mxu0
      %v1912 = vadd.f32 0.0, %v1911
      %v1913 = vpop.f32.mrf.mxu0
      %1914 = vmatprep.mubr.bf16.mxu0 0
      %1915 = vmatmul.mubr.bf16.gmra.mxu0 %v1821
      %v1916 = vpop.f32.mrf.mxu0
      %v1917 = vadd.f32 0.0, %v1916
      %v1918 = vpop.f32.mrf.mxu0
      %v1919 = vpop.f32.mrf.mxu0
      %v1920 = vadd.f32 0.0, %v1919
      %v1921 = vpop.f32.mrf.mxu0
      %1922 = vmatprep.mubr.bf16.mxu0 0
      %1923 = vmatmul.mubr.bf16.gmra.mxu0 %v1824
      %v1924 = vpop.f32.mrf.mxu0
      %v1925 = vadd.f32 0.0, %v1924
      %v1926 = vpop.f32.mrf.mxu0
      %v1927 = vpop.f32.mrf.mxu0
      %v1928 = vadd.f32 0.0, %v1927
      %v1929 = vpop.f32.mrf.mxu0
      %1930 = vmatprep.mubr.bf16.mxu0 0
      %1931 = vmatmul.mubr.bf16.gmra.mxu0 %v1827
      %v1932 = vpop.f32.mrf.mxu0
      %v1933 = vadd.f32 0.0, %v1932
      %v1934 = vpop.f32.mrf.mxu0
      %v1935 = vpop.f32.mrf.mxu0
      %v1936 = vadd.f32 0.0, %v1935
      %v1937 = vpop.f32.mrf.mxu0
      %1938 = vmatprep.mubr.bf16.mxu0 0
      %1939 = vmatmul.mubr.bf16.gmra.mxu0 %v1830
      %v1940 = vpop.f32.mrf.mxu0
      %v1941 = vadd.f32 0.0, %v1940
      %v1942 = vpop.f32.mrf.mxu0
      %v1943 = vpop.f32.mrf.mxu0
      %v1944 = vadd.f32 0.0, %v1943
      %v1945 = vpop.f32.mrf.mxu0
      %1946 = vmatprep.mubr.bf16.mxu0 0
      %1947 = vmatmul.mubr.bf16.gmra.mxu0 %v1833
      %v1948 = vpop.f32.mrf.mxu0
      %v1949 = vadd.f32 0.0, %v1948
      %v1950 = vpop.f32.mrf.mxu0
      %v1951 = vpop.f32.mrf.mxu0
      %v1952 = vadd.f32 0.0, %v1951
      %v1953 = vpop.f32.mrf.mxu0
      %1954 = vmatprep.mubr.bf16.mxu0 0
      %1955 = vmatmul.mubr.bf16.gmra.mxu0 %v1836
      %v1956 = vpop.f32.mrf.mxu0
      %v1957 = vadd.f32 0.0, %v1956
      %v1958 = vpop.f32.mrf.mxu0
      %v1959 = vpop.f32.mrf.mxu0
      %v1960 = vadd.f32 0.0, %v1959
      %v1961 = vpop.f32.mrf.mxu0
      %1962 = vmatprep.mubr.bf16.mxu0 0
      %1963 = vmatmul.mubr.bf16.gmra.mxu0 %v1839
      %v1964 = vpop.f32.mrf.mxu0
      %v1965 = vadd.f32 0.0, %v1964
      %v1966 = vpop.f32.mrf.mxu0
      %v1967 = vpop.f32.mrf.mxu0
      %v1968 = vadd.f32 0.0, %v1967
      %v1969 = vpop.f32.mrf.mxu0
      %1970 = vmatprep.mubr.bf16.mxu0 0
      %1971 = vmatmul.mubr.bf16.gmra.mxu0 %v1842
      %v1972 = vpop.f32.mrf.mxu0
      %v1973 = vadd.f32 0.0, %v1972
      %v1974 = vpop.f32.mrf.mxu0
      %v1975 = vpop.f32.mrf.mxu0
      %v1976 = vadd.f32 0.0, %v1975
      %v1977 = vpop.f32.mrf.mxu0
      %1978 = vmatprep.mubr.bf16.mxu0 0
      %1979 = vmatmul.mubr.bf16.gmra.mxu0 %v1845
      %v1980 = vpop.f32.mrf.mxu0
      %v1981 = vadd.f32 0.0, %v1980
      %v1982 = vpop.f32.mrf.mxu0
      %v1983 = vpop.f32.mrf.mxu0
      %v1984 = vadd.f32 0.0, %v1983
      %v1985 = vpop.f32.mrf.mxu0
      %1986 = vmatprep.mubr.bf16.mxu0 0
      %1987 = vmatmul.mubr.bf16.gmra.mxu0 %v1848
      %v1988 = vpop.f32.mrf.mxu0
      %v1989 = vadd.f32 0.0, %v1988
      %v1990 = vpop.f32.mrf.mxu0
      %v1991 = vpop.f32.mrf.mxu0
      %v1992 = vadd.f32 0.0, %v1991
      %v1993 = vpop.f32.mrf.mxu0
      %1994 = vmatprep.mubr.bf16.mxu0 0
      %1995 = vmatmul.mubr.bf16.gmra.mxu0 %v1851
      %v1996 = vpop.f32.mrf.mxu0
      %v1997 = vadd.f32 0.0, %v1996
      %v1998 = vpop.f32.mrf.mxu0
      %v1999 = vpop.f32.mrf.mxu0
      %v2000 = vadd.f32 0.0, %v1999
      %v2001 = vpop.f32.mrf.mxu0
      %2002 = vmatprep.mubr.bf16.mxu0 0
      %2003 = vmatmul.mubr.bf16.gmra.mxu0 %v1854
      %v2004 = vpop.f32.mrf.mxu0
      %v2005 = vadd.f32 0.0, %v2004
      %v2006 = vpop.f32.mrf.mxu0
      %v2007 = vpop.f32.mrf.mxu0
      %v2008 = vadd.f32 0.0, %v2007
      %v2009 = vpop.f32.mrf.mxu0
      %2010 = vmatprep.mubr.bf16.mxu0 0
      %2011 = vmatmul.mubr.bf16.gmra.mxu0 %v1857
      %v2012 = vpop.f32.mrf.mxu0
      %v2013 = vadd.f32 0.0, %v2012
      %v2014 = vpop.f32.mrf.mxu0
      %v2015 = vpop.f32.mrf.mxu0
      %v2016 = vadd.f32 0.0, %v2015
      %v2017 = vpop.f32.mrf.mxu0
      %2018 = vmatprep.mubr.bf16.mxu0 0
      %2019 = vmatmul.mubr.bf16.gmra.mxu0 %v1860
      %v2020 = vpop.f32.mrf.mxu0
      %v2021 = vadd.f32 0.0, %v2020
      %v2022 = vpop.f32.mrf.mxu0
      %v2023 = vpop.f32.mrf.mxu0
      %v2024 = vadd.f32 0.0, %v2023
      %v2025 = vpop.f32.mrf.mxu0
      %2026 = vdwg.mxu0
      %v2027 = vpack.c.bf16 %v1904, %v1901
      %v2028 = vpack.c.bf16 %v1912, %v1909
      %v2029 = vpack.c.bf16 %v1920, %v1917
      %v2030 = vpack.c.bf16 %v1928, %v1925
      %v2031 = vpack.c.bf16 %v1936, %v1933
      %v2032 = vpack.c.bf16 %v1944, %v1941
      %v2033 = vpack.c.bf16 %v1952, %v1949
      %v2034 = vpack.c.bf16 %v1960, %v1957
      %v2035 = vpack.c.bf16 %v1968, %v1965
      %v2036 = vpack.c.bf16 %v1976, %v1973
      %v2037 = vpack.c.bf16 %v1984, %v1981
      %v2038 = vpack.c.bf16 %v1992, %v1989
      %v2039 = vpack.c.bf16 %v2000, %v1997
      %v2040 = vpack.c.bf16 %v2008, %v2005
      %v2041 = vpack.c.bf16 %v2016, %v2013
      %v2042 = vpack.c.bf16 %v2024, %v2021
      %v2059 = vunpack.c.l.b16 %v2027
      %v2060 = vunpack.c.h.b16 %v2027
      %v2061 = vunpack.c.l.b16 %v2028
      %v2062 = vunpack.c.h.b16 %v2028
      %v2063 = vunpack.c.l.b16 %v2029
      %v2064 = vunpack.c.h.b16 %v2029
      %v2065 = vunpack.c.l.b16 %v2030
      %v2066 = vunpack.c.h.b16 %v2030
      %v2067 = vunpack.c.l.b16 %v2031
      %v2068 = vunpack.c.h.b16 %v2031
      %v2069 = vunpack.c.l.b16 %v2032
      %v2070 = vunpack.c.h.b16 %v2032
      %v2071 = vunpack.c.l.b16 %v2033
      %v2072 = vunpack.c.h.b16 %v2033
      %v2073 = vunpack.c.l.b16 %v2034
      %v2074 = vunpack.c.h.b16 %v2034
      %v2075 = vunpack.c.l.b16 %v2035
      %v2076 = vunpack.c.h.b16 %v2035
      %v2077 = vunpack.c.l.b16 %v2036
      %v2078 = vunpack.c.h.b16 %v2036
      %v2079 = vunpack.c.l.b16 %v2037
      %v2080 = vunpack.c.h.b16 %v2037
      %v2081 = vunpack.c.l.b16 %v2038
      %v2082 = vunpack.c.h.b16 %v2038
      %v2083 = vunpack.c.l.b16 %v2039
      %v2084 = vunpack.c.h.b16 %v2039
      %v2085 = vunpack.c.l.b16 %v2040
      %v2086 = vunpack.c.h.b16 %v2040
      %v2087 = vunpack.c.l.b16 %v2041
      %v2088 = vunpack.c.h.b16 %v2041
      %v2089 = vunpack.c.l.b16 %v2042
      %v2090 = vunpack.c.h.b16 %v2042
      %v2091 = vpack.c.b16 %v2059, %v2059
      %v2092 = vpack.c.b16 %v2060, %v2060
      %v2093 = vpack.c.b16 %v2061, %v2061
      %v2094 = vpack.c.b16 %v2062, %v2062
      %v2095 = vpack.c.b16 %v2063, %v2063
      %v2096 = vpack.c.b16 %v2064, %v2064
      %v2097 = vpack.c.b16 %v2065, %v2065
      %v2098 = vpack.c.b16 %v2066, %v2066
      %v2099 = vpack.c.b16 %v2067, %v2067
      %v2100 = vpack.c.b16 %v2068, %v2068
      %v2101 = vpack.c.b16 %v2069, %v2069
      %v2102 = vpack.c.b16 %v2070, %v2070
      %v2103 = vpack.c.b16 %v2071, %v2071
      %v2104 = vpack.c.b16 %v2072, %v2072
      %v2105 = vpack.c.b16 %v2073, %v2073
      %v2106 = vpack.c.b16 %v2074, %v2074
      %v2107 = vpack.c.b16 %v2075, %v2075
      %v2108 = vpack.c.b16 %v2076, %v2076
      %v2109 = vpack.c.b16 %v2077, %v2077
      %v2110 = vpack.c.b16 %v2078, %v2078
      %v2111 = vpack.c.b16 %v2079, %v2079
      %v2112 = vpack.c.b16 %v2080, %v2080
      %v2113 = vpack.c.b16 %v2081, %v2081
      %v2114 = vpack.c.b16 %v2082, %v2082
      %v2115 = vpack.c.b16 %v2083, %v2083
      %v2116 = vpack.c.b16 %v2084, %v2084
      %v2117 = vpack.c.b16 %v2085, %v2085
      %v2118 = vpack.c.b16 %v2086, %v2086
      %v2119 = vpack.c.b16 %v2087, %v2087
      %v2120 = vpack.c.b16 %v2088, %v2088
      %v2121 = vpack.c.b16 %v2089, %v2089
      %v2122 = vpack.c.b16 %v2090, %v2090
      %2155 = vst [vmem:[%s177] sm:$0xf] %v2091
      %2156 = vst [vmem:[%s177 + $0x4] sm:$0xf] %v2092
      %2157 = vst [vmem:[%s177 + $0x8] sm:$0xf] %v2093
      %2158 = vst [vmem:[%s177 + $0xc] sm:$0xf] %v2094
      %2159 = vst [vmem:[%s177 + $0x10] sm:$0xf] %v2095
      %2160 = vst [vmem:[%s177 + $0x14] sm:$0xf] %v2096
      %2161 = vst [vmem:[%s177 + $0x18] sm:$0xf] %v2097
      %2162 = vst [vmem:[%s177 + $0x1c] sm:$0xf] %v2098
      %2163 = vst [vmem:[%s177 + $0x20] sm:$0xf] %v2099
      %2164 = vst [vmem:[%s177 + $0x24] sm:$0xf] %v2100
      %2165 = vst [vmem:[%s177 + $0x28] sm:$0xf] %v2101
      %2166 = vst [vmem:[%s177 + $0x2c] sm:$0xf] %v2102
      %2167 = vst [vmem:[%s177 + $0x30] sm:$0xf] %v2103
      %2168 = vst [vmem:[%s177 + $0x34] sm:$0xf] %v2104
      %2169 = vst [vmem:[%s177 + $0x38] sm:$0xf] %v2105
      %2170 = vst [vmem:[%s177 + $0x3c] sm:$0xf] %v2106
      %2171 = vst [vmem:[%s177 + $0x40] sm:$0xf] %v2107
      %2172 = vst [vmem:[%s177 + $0x44] sm:$0xf] %v2108
      %2173 = vst [vmem:[%s177 + $0x48] sm:$0xf] %v2109
      %2174 = vst [vmem:[%s177 + $0x4c] sm:$0xf] %v2110
      %2175 = vst [vmem:[%s177 + $0x50] sm:$0xf] %v2111
      %2176 = vst [vmem:[%s177 + $0x54] sm:$0xf] %v2112
      %2177 = vst [vmem:[%s177 + $0x58] sm:$0xf] %v2113
      %2178 = vst [vmem:[%s177 + $0x5c] sm:$0xf] %v2114
      %2179 = vst [vmem:[%s177 + $0x60] sm:$0xf] %v2115
      %2180 = vst [vmem:[%s177 + $0x64] sm:$0xf] %v2116
      %2181 = vst [vmem:[%s177 + $0x68] sm:$0xf] %v2117
      %2182 = vst [vmem:[%s177 + $0x6c] sm:$0xf] %v2118
      %2183 = vst [vmem:[%s177 + $0x70] sm:$0xf] %v2119
      %2184 = vst [vmem:[%s177 + $0x74] sm:$0xf] %v2120
      %2185 = vst [vmem:[%s177 + $0x78] sm:$0xf] %v2121
      %2186 = vst [vmem:[%s177 + $0x7c] sm:$0xf] %v2122
      %v2187 = vadd.f32 %v1901, %v1904
      %v2188 = vadd.f32 %v2187, %v1909
      %v2189 = vadd.f32 %v2188, %v1912
      %v2190 = vadd.f32 %v2189, %v1917
      %v2191 = vadd.f32 %v2190, %v1920
      %v2192 = vadd.f32 %v2191, %v1925
      %v2193 = vadd.f32 %v2192, %v1928
      %v2194 = vadd.f32 %v2193, %v1933
      %v2195 = vadd.f32 %v2194, %v1936
      %v2196 = vadd.f32 %v2195, %v1941
      %v2197 = vadd.f32 %v2196, %v1944
      %v2198 = vadd.f32 %v2197, %v1949
      %v2199 = vadd.f32 %v2198, %v1952
      %v2200 = vadd.f32 %v2199, %v1957
      %v2201 = vadd.f32 %v2200, %v1960
      %v2202 = vadd.f32 %v2201, %v1965
      %v2203 = vadd.f32 %v2202, %v1968
      %v2204 = vadd.f32 %v2203, %v1973
      %v2205 = vadd.f32 %v2204, %v1976
      %v2206 = vadd.f32 %v2205, %v1981
      %v2207 = vadd.f32 %v2206, %v1984
      %v2208 = vadd.f32 %v2207, %v1989
      %v2209 = vadd.f32 %v2208, %v1992
      %v2210 = vadd.f32 %v2209, %v1997
      %v2211 = vadd.f32 %v2210, %v2000
      %v2212 = vadd.f32 %v2211, %v2005
      %v2213 = vadd.f32 %v2212, %v2008
      %v2214 = vadd.f32 %v2213, %v2013
      %v2215 = vadd.f32 %v2214, %v2016
      %v2216 = vadd.f32 %v2215, %v2021
      %v2217 = vadd.f32 %v2216, %v2024
      %v2218 = vrot.slane %v2217, 4
      %v2219 = vadd.f32 %v2217, %v2218
      %v2220 = vrot.slane %v2219, 2
      %v2221 = vadd.f32 %v2219, %v2220
      %v2222 = vrot.slane %v2221, 1
      %v2223 = vadd.f32 %v2221, %v2222
      %v2224 = vmul.f32 %v1901, %v1901
      %v2225 = vmul.f32 %v1904, %v1904
      %v2226 = vmul.f32 %v1909, %v1909
      %v2227 = vmul.f32 %v1912, %v1912
      %v2228 = vmul.f32 %v1917, %v1917
      %v2229 = vmul.f32 %v1920, %v1920
      %v2230 = vmul.f32 %v1925, %v1925
      %v2231 = vmul.f32 %v1928, %v1928
      %v2232 = vmul.f32 %v1933, %v1933
      %v2233 = vmul.f32 %v1936, %v1936
      %v2234 = vmul.f32 %v1941, %v1941
      %v2235 = vmul.f32 %v1944, %v1944
      %v2236 = vmul.f32 %v1949, %v1949
      %v2237 = vmul.f32 %v1952, %v1952
      %v2238 = vmul.f32 %v1957, %v1957
      %v2239 = vmul.f32 %v1960, %v1960
      %v2240 = vmul.f32 %v1965, %v1965
      %v2241 = vmul.f32 %v1968, %v1968
      %v2242 = vmul.f32 %v1973, %v1973
      %v2243 = vmul.f32 %v1976, %v1976
      %v2244 = vmul.f32 %v1981, %v1981
      %v2245 = vmul.f32 %v1984, %v1984
      %v2246 = vmul.f32 %v1989, %v1989
      %v2247 = vmul.f32 %v1992, %v1992
      %v2248 = vmul.f32 %v1997, %v1997
      %v2249 = vmul.f32 %v2000, %v2000
      %v2250 = vmul.f32 %v2005, %v2005
      %v2251 = vmul.f32 %v2008, %v2008
      %v2252 = vmul.f32 %v2013, %v2013
      %v2253 = vmul.f32 %v2016, %v2016
      %v2254 = vmul.f32 %v2021, %v2021
      %v2255 = vmul.f32 %v2024, %v2024
      %v2256 = vadd.f32 %v2224, %v2225
      %v2257 = vadd.f32 %v2256, %v2226
      %v2258 = vadd.f32 %v2257, %v2227
      %v2259 = vadd.f32 %v2258, %v2228
      %v2260 = vadd.f32 %v2259, %v2229
      %v2261 = vadd.f32 %v2260, %v2230
      %v2262 = vadd.f32 %v2261, %v2231
      %v2263 = vadd.f32 %v2262, %v2232
      %v2264 = vadd.f32 %v2263, %v2233
      %v2265 = vadd.f32 %v2264, %v2234
      %v2266 = vadd.f32 %v2265, %v2235
      %v2267 = vadd.f32 %v2266, %v2236
      %v2268 = vadd.f32 %v2267, %v2237
      %v2269 = vadd.f32 %v2268, %v2238
      %v2270 = vadd.f32 %v2269, %v2239
      %v2271 = vadd.f32 %v2270, %v2240
      %v2272 = vadd.f32 %v2271, %v2241
      %v2273 = vadd.f32 %v2272, %v2242
      %v2274 = vadd.f32 %v2273, %v2243
      %v2275 = vadd.f32 %v2274, %v2244
      %v2276 = vadd.f32 %v2275, %v2245
      %v2277 = vadd.f32 %v2276, %v2246
      %v2278 = vadd.f32 %v2277, %v2247
      %v2279 = vadd.f32 %v2278, %v2248
      %v2280 = vadd.f32 %v2279, %v2249
      %v2281 = vadd.f32 %v2280, %v2250
      %v2282 = vadd.f32 %v2281, %v2251
      %v2283 = vadd.f32 %v2282, %v2252
      %v2284 = vadd.f32 %v2283, %v2253
      %v2285 = vadd.f32 %v2284, %v2254
      %v2286 = vadd.f32 %v2285, %v2255
      %v2287 = vrot.slane %v2286, 4
      %v2288 = vadd.f32 %v2286, %v2287
      %v2289 = vrot.slane %v2288, 2
      %v2290 = vadd.f32 %v2288, %v2289
      %v2291 = vrot.slane %v2290, 1
      %v2292 = vadd.f32 %v2290, %v2291
      %vm2293 = vcmask 1040384
      %v2294 = vsel %vm2293, %v2223, %v2292
      %2295 = vst [vmem:[%s181] sm:$0x3] %v2294
      %p2296 = scmp.lt.s32.totalorder %s15, 1
      %s2297 = scalar_select %p2296, %s15, 1
      %s2298 = smul.addr %s2297, 32
      %s2299 = smul.addr %s2298, 4
      %s2300 = scalar_lea.vmem %s2, %s2299
      %p2301 = scmp.lt.s32.totalorder %s15, 1
      %s2302 = scalar_select %p2301, %s15, 1
      %s2303 = smul.addr %s2302, 2
      %s2304 = scalar_lea.vmem %s3, %s2303
      // Predicated region
      $region29: #{basic_block_forward.3} parent=27 // pred_check
        %p2305 = pneg %p80
      $region30: #{basic_block_forward.3} parent=27 // pred_check_branch
        %2307 = sbr.rel (%p2305) target = $region32
      $region31: #{basic_block_forward.3} parent=27 // pred_region
        _
      $region32: #{basic_block_forward.3} parent=27 // pred_fallthru
        _
      // Predicated region
      $region33: #{basic_block_forward.3} parent=27 // pred_check
        %p2308 = pneg %p106
      $region34: #{basic_block_forward.3} parent=27 // pred_check_branch
        %2310 = sbr.rel (%p2308) target = $region36
      $region35: #{basic_block_forward.3} parent=27 // pred_region
        _
      $region36: #{basic_block_forward.3} parent=27 // pred_fallthru
        _
    $region28: #{basic_block_forward.3} parent=5 // pred_fallthru
      _
    %p2311 = scmp.le.s32.totalorder 2, %s10
    // Predicated region
    $region37: #{basic_block_forward.3} parent=5 // pred_check
      %p2312 = pneg %p2311
    $region38: #{basic_block_forward.3} parent=5 // pred_check_branch
      %2314 = sbr.rel (%p2312) target = $region40
    $region39: #{basic_block_forward.3} parent=5 // pred_region
      %s2315 = ssub.s32 %s10, 2
      // Predicated region
      $region41: #{basic_block_forward.3} parent=39 // pred_check
        %p2316 = pneg %p86
      $region42: #{basic_block_forward.3} parent=39 // pred_check_branch
        %2318 = sbr.rel (%p2316) target = $region44
      $region43: #{basic_block_forward.3} parent=39 // pred_region
        %p2319 = scmp.lt.s32.totalorder %s16, 1
        %s2320 = scalar_select %p2319, %s16, 1
        %s2321 = smul.addr %s2320, 32
        %s2322 = smul.addr %s2321, 4
        %s2323 = scalar_lea.vmem %s2, %s2322
      $region44: #{basic_block_forward.3} parent=39 // pred_fallthru
        _
      // Predicated region
      $region45: #{basic_block_forward.3} parent=39 // pred_check
        %p2324 = pneg %p112
      $region46: #{basic_block_forward.3} parent=39 // pred_check_branch
        %2326 = sbr.rel (%p2324) target = $region48
      $region47: #{basic_block_forward.3} parent=39 // pred_region
        %p2327 = scmp.lt.s32.totalorder %s16, 1
        %s2328 = scalar_select %p2327, %s16, 1
        %s2329 = smul.addr %s2328, 2
        %s2330 = scalar_lea.vmem %s3, %s2329
      $region48: #{basic_block_forward.3} parent=39 // pred_fallthru
        _
    $region40: #{basic_block_forward.3} parent=5 // pred_fallthru
      _
  $region6: #{basic_block_forward.3} parent=0 // loop_footer
    %s14 = sadd.s32 1, %s10
  $region7: #{basic_block_forward.3} parent=0 // loop_footer_branch
    %9 = sbr.rel target = $region3
  $region8: #{basic_block_forward.3} parent=0 // loop_exit
    _

</llo_original>
